<compile_context>
chip_gen: v5e
topology: v5e:2x2
jax: 0.10.0
libtpu: 0.0.40
codegen_flags: <defaults>
</compile_context>

<pallas_src>
import functools

import jax
import jax.numpy as jnp
from jax.experimental import pallas as pl
from jax.experimental.pallas import tpu as pltpu


def sppf_kernel(x_ref, col_ref, w1_ref, b1_ref, w2_ref, b2_ref, o_ref, buf,
                *, H, W, C1, C_, C2):
    """One batch element per grid step.  All tensors are flat (H*W, C) tiles.

    buf: VMEM scratch of shape (H*W + 4*W, C_), f32.  Rows [2W, 2W+H*W) hold
    the current pooling operand; the 2W rows on each side are a -inf border so
    H-axis shifts need no masks.
    """
    M = H * W
    base = 2 * W
    NEG = -1e30  # pool pad; safe: pool inputs are post-SiLU (>= -0.2785)

    # ---- -inf border rows of the pooling scratch (top & bottom) ------------
    border = jnp.full((base, C_), NEG, dtype=jnp.float32)   # staged in-kernel
    buf[pl.ds(0, base)] = border
    buf[pl.ds(M + base, base)] = border

    # ---- W-axis row-boundary masks (identical for all three pools) ---------
    col = col_ref[...]                       # (M, 1) int32, col[m] = m % W
    wmask = {-2: col >= 2, -1: col >= 1, 1: col < W - 1, 2: col < W - 2}

    def pool5(t):
        """5x5 max pool, stride 1, pad 2 (-inf), separable, on flat (M, C_)."""
        # pool along H: shifts by +-W, +-2W; the -inf border handles edges.
        buf[pl.ds(base, M)] = t                      # aligned store (2W % 8==0)
        r = t
        for dh in (-2, -1, 1, 2):
            r = jnp.maximum(r, buf[pl.ds(base + dh * W, M)])
        # pool along W: shifts by +-1, +-2; mask reads that cross an image row.
        buf[pl.ds(base, M)] = r
        o = r
        for dw in (-2, -1, 1, 2):
            o = jnp.maximum(
                o, jnp.where(wmask[dw], buf[pl.ds(base + dw, M)], NEG))
        return o

    # ---- cv1: 1x1 conv (bf16 MXU, f32 acc) + folded-BN bias + SiLU ---------
    x = x_ref[0].astype(jnp.bfloat16)                        # (M, C1)
    y = jnp.dot(x, w1_ref[...], preferred_element_type=jnp.float32)
    y = y + b1_ref[...]
    t0 = y * jax.nn.sigmoid(y)                               # (M, C_) f32

    # ---- max-pool pyramid ---------------------------------------------------
    t1 = pool5(t0)
    t2 = pool5(t1)
    t3 = pool5(t2)

    # ---- cv2: four accumulating K=C_ matmuls (no channel concat) -----------
    z = jnp.dot(t0.astype(jnp.bfloat16), w2_ref[0],
                preferred_element_type=jnp.float32)
    z = z + jnp.dot(t1.astype(jnp.bfloat16), w2_ref[1],
                    preferred_element_type=jnp.float32)
    z = z + jnp.dot(t2.astype(jnp.bfloat16), w2_ref[2],
                    preferred_element_type=jnp.float32)
    z = z + jnp.dot(t3.astype(jnp.bfloat16), w2_ref[3],
                    preferred_element_type=jnp.float32)
    z = z + b2_ref[...]
    o_ref[0] = z * jax.nn.sigmoid(z)


def sppf_forward_nhwc(x_nhwc, params):
    """x_nhwc: (N, H, W, C1) float32.  Returns (N, H, W, C2) float32."""
    w1, b1, w2, b2 = params    # w1 (C1,C_) bf16, w2 (4C_,C2) bf16, biases f32
    N, H, W, C1 = x_nhwc.shape
    C_ = w1.shape[1]
    C2 = w2.shape[1]
    M = H * W

    x_flat = x_nhwc.reshape(N, M, C1)                 # metadata-only reshape
    w2s = w2.reshape(4, C_, C2)                       # per-pyramid-level slabs
    colw = (jnp.arange(M, dtype=jnp.int32) % W).reshape(M, 1)
    b1v = b1.reshape(1, C_).astype(jnp.float32)
    b2v = b2.reshape(1, C2).astype(jnp.float32)

    kernel = functools.partial(sppf_kernel, H=H, W=W, C1=C1, C_=C_, C2=C2)

    # Advisory cost hint so XLA schedules neighbouring ops around the call.
    flops = 2 * N * M * (C1 * C_ + 4 * C_ * C2)
    transcendentals = N * M * (C_ + C2)               # sigmoids
    bytes_accessed = (4 * N * M * (C1 + C2)           # in / out (f32)
                      + 2 * (C1 * C_ + 4 * C_ * C2)   # weights (bf16)
                      + 4 * (C_ + C2) + 4 * M)        # biases + col table

    # Per-step VMEM working set (rough, with safety factor), honouring the
    # 64 MiB physical limit of v7x.
    work = (2 * M * (C1 + C2) * 4                     # in/out blocks, 2x buf
            + (M + 4 * W) * C_ * 4                    # pool scratch
            + 8 * M * C_ * 4                          # t0..t3 + pool temps
            + 2 * 2 * (C1 * C_ + 4 * C_ * C2))        # bf16 weights, 2x buf
    vmem_limit = int(min(64 * 2**20, max(32 * 2**20, 4 * work)))

    out = pl.pallas_call(
        kernel,
        out_shape=jax.ShapeDtypeStruct((N, M, C2), jnp.float32),
        grid=(N,),
        in_specs=[
            pl.BlockSpec((1, M, C1), lambda n: (n, 0, 0)),
            pl.BlockSpec((M, 1), lambda n: (0, 0)),
            pl.BlockSpec((C1, C_), lambda n: (0, 0)),
            pl.BlockSpec((1, C_), lambda n: (0, 0)),
            pl.BlockSpec((4, C_, C2), lambda n: (0, 0, 0)),
            pl.BlockSpec((1, C2), lambda n: (0, 0)),
        ],
        out_specs=pl.BlockSpec((1, M, C2), lambda n: (n, 0, 0)),
        scratch_shapes=[pltpu.VMEM((M + 4 * W, C_), jnp.float32)],
        compiler_params=pltpu.CompilerParams(
            dimension_semantics=("parallel",),
            vmem_limit_bytes=vmem_limit),
        cost_estimate=pl.CostEstimate(
            flops=flops, transcendentals=transcendentals,
            bytes_accessed=bytes_accessed),
    )(x_flat, colw, w1, b1v, w2s, b2v)
    return out.reshape(N, H, W, C2)


def sppf_forward(x_nchw, params):
    """PyTorch-layout entry point: (N, C1, H, W) -> (N, C2, H, W)."""
    x = jnp.transpose(x_nchw, (0, 2, 3, 1))           # NCHW -> NHWC
    out = sppf_forward_nhwc(x, params)
    return jnp.transpose(out, (0, 3, 1, 2))           # NHWC -> NCHW


# ----------------------- parameter setup (deterministic) --------------------
def make_params(key, c1, c2):
    c_ = c1 // 2
    ks = jax.random.split(key, 4)
    eps = 1e-5

    def bn_fold(k, c):
        kg, kb, km, kv = jax.random.split(k, 4)
        gamma = 1.0 + 0.1 * jax.random.normal(kg, (c,), jnp.float32)
        beta = 0.1 * jax.random.normal(kb, (c,), jnp.float32)
        mean = 0.1 * jax.random.normal(km, (c,), jnp.float32)
        var = jnp.abs(1.0 + 0.1 * jax.random.normal(kv, (c,), jnp.float32))
        scale = gamma / jnp.sqrt(var + eps)
        bias = beta - mean * scale
        return scale, bias

    # PyTorch conv weights: (Cout, Cin, 1, 1), no conv bias.
    w1_t = 0.1 * jax.random.normal(ks[0], (c_, c1, 1, 1), jnp.float32)
    w2_t = 0.1 * jax.random.normal(ks[1], (c2, 4 * c_, 1, 1), jnp.float32)
    s1, b1 = bn_fold(ks[2], c_)
    s2, b2 = bn_fold(ks[3], c2)

    # Fold BN scale into the weights in f32, transpose to (Cin, Cout) for the
    # channels-last matmuls, cast the fused weight to bf16.
    w1_k = (w1_t[:, :, 0, 0] * s1[:, None]).T.astype(jnp.bfloat16)  # (c1, c_)
    w2_k = (w2_t[:, :, 0, 0] * s2[:, None]).T.astype(jnp.bfloat16)  # (4c_, c2)

    kernel_params = (w1_k, b1, w2_k, b2)
    torch_params = (w1_t, w2_t, s1, b1, s2, b2)
    return kernel_params, torch_params


# ----------------------- pure-JAX reference (NCHW, like PyTorch, f32) -------
def ref_forward(x, torch_params):
    w1_t, w2_t, s1, b1, s2, b2 = torch_params

    def conv_bn_silu(x, w, scale, bias):
        y = jax.lax.conv_general_dilated(
            x, w, window_strides=(1, 1), padding=[(0, 0), (0, 0)],
            dimension_numbers=('NCHW', 'OIHW', 'NCHW'))
        y = y * scale[None, :, None, None] + bias[None, :, None, None]
        return y * jax.nn.sigmoid(y)

    def maxpool5(t):
        return jax.lax.reduce_window(
            t, -jnp.inf, jax.lax.max,
            window_dimensions=(1, 1, 5, 5), window_strides=(1, 1, 1, 1),
            padding=[(0, 0), (0, 0), (2, 2), (2, 2)])

    y = conv_bn_silu(x, w1_t, s1, b1)
    y1 = maxpool5(y)
    y2 = maxpool5(y1)
    y3 = maxpool5(y2)
    cat = jnp.concatenate([y, y1, y2, y3], axis=1)
    return conv_bn_silu(cat, w2_t, s2, b2)


if __name__ == "__main__":
    # Small, SPPF-consistent shapes: c_ = C1 // 2 = 8, concat = 32 channels.
    N, C1, C2, H, W = 2, 16, 16, 16, 16
    key = jax.random.PRNGKey(0)
    kx, kp = jax.random.split(key)
    x = jax.random.normal(kx, (N, C1, H, W), jnp.float32)

    kernel_params, torch_params = make_params(kp, C1, C2)

    out = sppf_forward(x, kernel_params)
    out = jax.block_until_ready(out)

    ref = ref_forward(x, torch_params)
    assert out.shape == (N, C2, H, W)
    err = float(jnp.max(jnp.abs(out - ref)))
    # bf16 matmul operands (activations + BN-folded weights) with f32
    # accumulation -> tolerance loosened accordingly.
    assert jnp.allclose(out, ref, atol=5e-2, rtol=5e-2), err

    print("KERNEL_OK")
</pallas_src>

<mosaic_0001>
module attributes {stable_mosaic.version = 11 : i64} {
  func.func @sppf_kernel(%arg0: i32, %arg1: memref<1x256x16xf32, #tpu.memory_space<vmem>>, %arg2: memref<256x1xi32, #tpu.memory_space<vmem>>, %arg3: memref<16x8xbf16, #tpu.memory_space<vmem>>, %arg4: memref<1x8xf32, #tpu.memory_space<vmem>>, %arg5: memref<4x8x16xbf16, #tpu.memory_space<vmem>>, %arg6: memref<1x16xf32, #tpu.memory_space<vmem>>, %arg7: memref<1x256x16xf32, #tpu.memory_space<vmem>>, %arg8: memref<320x8xf32, #tpu.memory_space<vmem>>) attributes {dimension_semantics = [#tpu.dimension_semantics<parallel>], iteration_bounds = array<i64: 2>, scalar_prefetch = 0 : i64, scratch_operands = 1 : i64, tpu.core_type = #tpu.core_type<tc>, window_params = [{transform_indices = @transform_0, window_bounds = array<i64: 1, 256, 16>}, {pipeline_mode = #tpu.pipeline_mode<synchronous>, transform_indices = @transform_1, window_bounds = array<i64: 256, 1>}, {pipeline_mode = #tpu.pipeline_mode<synchronous>, transform_indices = @transform_2, window_bounds = array<i64: 16, 8>}, {pipeline_mode = #tpu.pipeline_mode<synchronous>, transform_indices = @transform_3, window_bounds = array<i64: 1, 8>}, {pipeline_mode = #tpu.pipeline_mode<synchronous>, transform_indices = @transform_4, window_bounds = array<i64: 4, 8, 16>}, {pipeline_mode = #tpu.pipeline_mode<synchronous>, transform_indices = @transform_5, window_bounds = array<i64: 1, 16>}, {transform_indices = @transform_6, window_bounds = array<i64: 1, 256, 16>}]} {
    %cst = arith.constant -1.000000e+30 : f32
    %0 = vector.broadcast %cst : f32 to vector<32x8xf32>
    %c0 = arith.constant 0 : index
    %c0_0 = arith.constant 0 : index
    %1 = vector.load %arg8[%c0, %c0_0] : memref<320x8xf32, #tpu.memory_space<vmem>>, vector<32x8xf32>
    tpu.vector_store %arg8[%c0, %c0_0], %0 {strides = array<i32>} : memref<320x8xf32, #tpu.memory_space<vmem>>, vector<32x8xf32>,
    %c288 = arith.constant 288 : index
    %c0_1 = arith.constant 0 : index
    %2 = vector.load %arg8[%c288, %c0_1] : memref<320x8xf32, #tpu.memory_space<vmem>>, vector<32x8xf32>
    tpu.vector_store %arg8[%c288, %c0_1], %0 {strides = array<i32>} : memref<320x8xf32, #tpu.memory_space<vmem>>, vector<32x8xf32>,
    %c0_2 = arith.constant 0 : index
    %c0_3 = arith.constant 0 : index
    %3 = vector.load %arg2[%c0_2, %c0_3] : memref<256x1xi32, #tpu.memory_space<vmem>>, vector<256x1xi32>
    %c2_i32 = arith.constant 2 : i32
    %4 = vector.broadcast %c2_i32 : i32 to vector<256x1xi32>
    %5 = arith.cmpi sge, %3, %4 : vector<256x1xi32>
    %c1_i32 = arith.constant 1 : i32
    %6 = vector.broadcast %c1_i32 : i32 to vector<256x1xi32>
    %7 = arith.cmpi sge, %3, %6 : vector<256x1xi32>
    %c15_i32 = arith.constant 15 : i32
    %8 = vector.broadcast %c15_i32 : i32 to vector<256x1xi32>
    %9 = arith.cmpi slt, %3, %8 : vector<256x1xi32>
    %c14_i32 = arith.constant 14 : i32
    %10 = vector.broadcast %c14_i32 : i32 to vector<256x1xi32>
    %11 = arith.cmpi slt, %3, %10 : vector<256x1xi32>
    %c0_4 = arith.constant 0 : index
    %c0_5 = arith.constant 0 : index
    %c0_6 = arith.constant 0 : index
    %12 = vector.load %arg1[%c0_4, %c0_5, %c0_6] : memref<1x256x16xf32, #tpu.memory_space<vmem>>, vector<1x256x16xf32>
    %13 = vector.shape_cast %12 : vector<1x256x16xf32> to vector<256x16xf32>
    %14 = arith.truncf %13 : vector<256x16xf32> to vector<256x16xbf16>
    %c0_7 = arith.constant 0 : index
    %c0_8 = arith.constant 0 : index
    %15 = vector.load %arg3[%c0_7, %c0_8] : memref<16x8xbf16, #tpu.memory_space<vmem>>, vector<16x8xbf16>
    %cst_9 = arith.constant dense<0.000000e+00> : vector<256x8xf32>
    %16 = tpu.matmul %14, %15, %cst_9 {dimension_numbers = #tpu.dot_dimension_numbers<[1], [0], [0], [1], [0, 0, 1, 1], [], []>} : vector<256x16xbf16>, vector<16x8xbf16>, vector<256x8xf32> -> vector<256x8xf32>
    %c0_10 = arith.constant 0 : index
    %c0_11 = arith.constant 0 : index
    %17 = vector.load %arg4[%c0_10, %c0_11] : memref<1x8xf32, #tpu.memory_space<vmem>>, vector<1x8xf32>
    %18 = vector.broadcast %17 : vector<1x8xf32> to vector<256x8xf32>
    %19 = arith.addf %16, %18 : vector<256x8xf32>
    %20 = arith.negf %19 : vector<256x8xf32>
    %21 = math.exp %20 : vector<256x8xf32>
    %cst_12 = arith.constant 1.000000e+00 : f32
    %22 = vector.broadcast %cst_12 : f32 to vector<256x8xf32>
    %23 = arith.addf %22, %21 : vector<256x8xf32>
    %24 = arith.divf %22, %23 : vector<256x8xf32>
    %25 = arith.mulf %19, %24 : vector<256x8xf32>
    %c32 = arith.constant 32 : index
    %c0_13 = arith.constant 0 : index
    %26 = vector.load %arg8[%c32, %c0_13] : memref<320x8xf32, #tpu.memory_space<vmem>>, vector<256x8xf32>
    tpu.vector_store %arg8[%c32, %c0_13], %25 {strides = array<i32>} : memref<320x8xf32, #tpu.memory_space<vmem>>, vector<256x8xf32>,
    %c0_14 = arith.constant 0 : index
    %c0_15 = arith.constant 0 : index
    %27 = vector.load %arg8[%c0_14, %c0_15] : memref<320x8xf32, #tpu.memory_space<vmem>>, vector<256x8xf32>
    %28 = arith.maximumf %25, %27 : vector<256x8xf32>
    %c16 = arith.constant 16 : index
    %c0_16 = arith.constant 0 : index
    %29 = vector.load %arg8[%c16, %c0_16] : memref<320x8xf32, #tpu.memory_space<vmem>>, vector<256x8xf32>
    %30 = arith.maximumf %28, %29 : vector<256x8xf32>
    %c48 = arith.constant 48 : index
    %c0_17 = arith.constant 0 : index
    %31 = vector.load %arg8[%c48, %c0_17] : memref<320x8xf32, #tpu.memory_space<vmem>>, vector<256x8xf32>
    %32 = arith.maximumf %30, %31 : vector<256x8xf32>
    %c64 = arith.constant 64 : index
    %c0_18 = arith.constant 0 : index
    %33 = vector.load %arg8[%c64, %c0_18] : memref<320x8xf32, #tpu.memory_space<vmem>>, vector<256x8xf32>
    %34 = arith.maximumf %32, %33 : vector<256x8xf32>
    %c32_19 = arith.constant 32 : index
    %c0_20 = arith.constant 0 : index
    %35 = vector.load %arg8[%c32_19, %c0_20] : memref<320x8xf32, #tpu.memory_space<vmem>>, vector<256x8xf32>
    tpu.vector_store %arg8[%c32_19, %c0_20], %34 {strides = array<i32>} : memref<320x8xf32, #tpu.memory_space<vmem>>, vector<256x8xf32>,
    %c30 = arith.constant 30 : index
    %c0_21 = arith.constant 0 : index
    %36 = vector.load %arg8[%c30, %c0_21] : memref<320x8xf32, #tpu.memory_space<vmem>>, vector<256x8xf32>
    %cst_22 = arith.constant -1.000000e+30 : f32
    %37 = vector.shape_cast %5 : vector<256x1xi1> to vector<256x1xi1>
    %38 = vector.broadcast %37 : vector<256x1xi1> to vector<256x8xi1>
    %39 = vector.broadcast %cst_22 : f32 to vector<256x8xf32>
    %40 = arith.select %38, %36, %39 : vector<256x8xi1>, vector<256x8xf32>
    %41 = arith.maximumf %34, %40 : vector<256x8xf32>
    %c31 = arith.constant 31 : index
    %c0_23 = arith.constant 0 : index
    %42 = vector.load %arg8[%c31, %c0_23] : memref<320x8xf32, #tpu.memory_space<vmem>>, vector<256x8xf32>
    %cst_24 = arith.constant -1.000000e+30 : f32
    %43 = vector.shape_cast %7 : vector<256x1xi1> to vector<256x1xi1>
    %44 = vector.broadcast %43 : vector<256x1xi1> to vector<256x8xi1>
    %45 = vector.broadcast %cst_24 : f32 to vector<256x8xf32>
    %46 = arith.select %44, %42, %45 : vector<256x8xi1>, vector<256x8xf32>
    %47 = arith.maximumf %41, %46 : vector<256x8xf32>
    %c33 = arith.constant 33 : index
    %c0_25 = arith.constant 0 : index
    %48 = vector.load %arg8[%c33, %c0_25] : memref<320x8xf32, #tpu.memory_space<vmem>>, vector<256x8xf32>
    %cst_26 = arith.constant -1.000000e+30 : f32
    %49 = vector.shape_cast %9 : vector<256x1xi1> to vector<256x1xi1>
    %50 = vector.broadcast %49 : vector<256x1xi1> to vector<256x8xi1>
    %51 = vector.broadcast %cst_26 : f32 to vector<256x8xf32>
    %52 = arith.select %50, %48, %51 : vector<256x8xi1>, vector<256x8xf32>
    %53 = arith.maximumf %47, %52 : vector<256x8xf32>
    %c34 = arith.constant 34 : index
    %c0_27 = arith.constant 0 : index
    %54 = vector.load %arg8[%c34, %c0_27] : memref<320x8xf32, #tpu.memory_space<vmem>>, vector<256x8xf32>
    %cst_28 = arith.constant -1.000000e+30 : f32
    %55 = vector.shape_cast %11 : vector<256x1xi1> to vector<256x1xi1>
    %56 = vector.broadcast %55 : vector<256x1xi1> to vector<256x8xi1>
    %57 = vector.broadcast %cst_28 : f32 to vector<256x8xf32>
    %58 = arith.select %56, %54, %57 : vector<256x8xi1>, vector<256x8xf32>
    %59 = arith.maximumf %53, %58 : vector<256x8xf32>
    %c32_29 = arith.constant 32 : index
    %c0_30 = arith.constant 0 : index
    %60 = vector.load %arg8[%c32_29, %c0_30] : memref<320x8xf32, #tpu.memory_space<vmem>>, vector<256x8xf32>
    tpu.vector_store %arg8[%c32_29, %c0_30], %59 {strides = array<i32>} : memref<320x8xf32, #tpu.memory_space<vmem>>, vector<256x8xf32>,
    %c0_31 = arith.constant 0 : index
    %c0_32 = arith.constant 0 : index
    %61 = vector.load %arg8[%c0_31, %c0_32] : memref<320x8xf32, #tpu.memory_space<vmem>>, vector<256x8xf32>
    %62 = arith.maximumf %59, %61 : vector<256x8xf32>
    %c16_33 = arith.constant 16 : index
    %c0_34 = arith.constant 0 : index
    %63 = vector.load %arg8[%c16_33, %c0_34] : memref<320x8xf32, #tpu.memory_space<vmem>>, vector<256x8xf32>
    %64 = arith.maximumf %62, %63 : vector<256x8xf32>
    %c48_35 = arith.constant 48 : index
    %c0_36 = arith.constant 0 : index
    %65 = vector.load %arg8[%c48_35, %c0_36] : memref<320x8xf32, #tpu.memory_space<vmem>>, vector<256x8xf32>
    %66 = arith.maximumf %64, %65 : vector<256x8xf32>
    %c64_37 = arith.constant 64 : index
    %c0_38 = arith.constant 0 : index
    %67 = vector.load %arg8[%c64_37, %c0_38] : memref<320x8xf32, #tpu.memory_space<vmem>>, vector<256x8xf32>
    %68 = arith.maximumf %66, %67 : vector<256x8xf32>
    %c32_39 = arith.constant 32 : index
    %c0_40 = arith.constant 0 : index
    %69 = vector.load %arg8[%c32_39, %c0_40] : memref<320x8xf32, #tpu.memory_space<vmem>>, vector<256x8xf32>
    tpu.vector_store %arg8[%c32_39, %c0_40], %68 {strides = array<i32>} : memref<320x8xf32, #tpu.memory_space<vmem>>, vector<256x8xf32>,
    %c30_41 = arith.constant 30 : index
    %c0_42 = arith.constant 0 : index
    %70 = vector.load %arg8[%c30_41, %c0_42] : memref<320x8xf32, #tpu.memory_space<vmem>>, vector<256x8xf32>
    %cst_43 = arith.constant -1.000000e+30 : f32
    %71 = vector.shape_cast %5 : vector<256x1xi1> to vector<256x1xi1>
    %72 = vector.broadcast %71 : vector<256x1xi1> to vector<256x8xi1>
    %73 = vector.broadcast %cst_43 : f32 to vector<256x8xf32>
    %74 = arith.select %72, %70, %73 : vector<256x8xi1>, vector<256x8xf32>
    %75 = arith.maximumf %68, %74 : vector<256x8xf32>
    %c31_44 = arith.constant 31 : index
    %c0_45 = arith.constant 0 : index
    %76 = vector.load %arg8[%c31_44, %c0_45] : memref<320x8xf32, #tpu.memory_space<vmem>>, vector<256x8xf32>
    %cst_46 = arith.constant -1.000000e+30 : f32
    %77 = vector.shape_cast %7 : vector<256x1xi1> to vector<256x1xi1>
    %78 = vector.broadcast %77 : vector<256x1xi1> to vector<256x8xi1>
    %79 = vector.broadcast %cst_46 : f32 to vector<256x8xf32>
    %80 = arith.select %78, %76, %79 : vector<256x8xi1>, vector<256x8xf32>
    %81 = arith.maximumf %75, %80 : vector<256x8xf32>
    %c33_47 = arith.constant 33 : index
    %c0_48 = arith.constant 0 : index
    %82 = vector.load %arg8[%c33_47, %c0_48] : memref<320x8xf32, #tpu.memory_space<vmem>>, vector<256x8xf32>
    %cst_49 = arith.constant -1.000000e+30 : f32
    %83 = vector.shape_cast %9 : vector<256x1xi1> to vector<256x1xi1>
    %84 = vector.broadcast %83 : vector<256x1xi1> to vector<256x8xi1>
    %85 = vector.broadcast %cst_49 : f32 to vector<256x8xf32>
    %86 = arith.select %84, %82, %85 : vector<256x8xi1>, vector<256x8xf32>
    %87 = arith.maximumf %81, %86 : vector<256x8xf32>
    %c34_50 = arith.constant 34 : index
    %c0_51 = arith.constant 0 : index
    %88 = vector.load %arg8[%c34_50, %c0_51] : memref<320x8xf32, #tpu.memory_space<vmem>>, vector<256x8xf32>
    %cst_52 = arith.constant -1.000000e+30 : f32
    %89 = vector.shape_cast %11 : vector<256x1xi1> to vector<256x1xi1>
    %90 = vector.broadcast %89 : vector<256x1xi1> to vector<256x8xi1>
    %91 = vector.broadcast %cst_52 : f32 to vector<256x8xf32>
    %92 = arith.select %90, %88, %91 : vector<256x8xi1>, vector<256x8xf32>
    %93 = arith.maximumf %87, %92 : vector<256x8xf32>
    %c32_53 = arith.constant 32 : index
    %c0_54 = arith.constant 0 : index
    %94 = vector.load %arg8[%c32_53, %c0_54] : memref<320x8xf32, #tpu.memory_space<vmem>>, vector<256x8xf32>
    tpu.vector_store %arg8[%c32_53, %c0_54], %93 {strides = array<i32>} : memref<320x8xf32, #tpu.memory_space<vmem>>, vector<256x8xf32>,
    %c0_55 = arith.constant 0 : index
    %c0_56 = arith.constant 0 : index
    %95 = vector.load %arg8[%c0_55, %c0_56] : memref<320x8xf32, #tpu.memory_space<vmem>>, vector<256x8xf32>
    %96 = arith.maximumf %93, %95 : vector<256x8xf32>
    %c16_57 = arith.constant 16 : index
    %c0_58 = arith.constant 0 : index
    %97 = vector.load %arg8[%c16_57, %c0_58] : memref<320x8xf32, #tpu.memory_space<vmem>>, vector<256x8xf32>
    %98 = arith.maximumf %96, %97 : vector<256x8xf32>
    %c48_59 = arith.constant 48 : index
    %c0_60 = arith.constant 0 : index
    %99 = vector.load %arg8[%c48_59, %c0_60] : memref<320x8xf32, #tpu.memory_space<vmem>>, vector<256x8xf32>
    %100 = arith.maximumf %98, %99 : vector<256x8xf32>
    %c64_61 = arith.constant 64 : index
    %c0_62 = arith.constant 0 : index
    %101 = vector.load %arg8[%c64_61, %c0_62] : memref<320x8xf32, #tpu.memory_space<vmem>>, vector<256x8xf32>
    %102 = arith.maximumf %100, %101 : vector<256x8xf32>
    %c32_63 = arith.constant 32 : index
    %c0_64 = arith.constant 0 : index
    %103 = vector.load %arg8[%c32_63, %c0_64] : memref<320x8xf32, #tpu.memory_space<vmem>>, vector<256x8xf32>
    tpu.vector_store %arg8[%c32_63, %c0_64], %102 {strides = array<i32>} : memref<320x8xf32, #tpu.memory_space<vmem>>, vector<256x8xf32>,
    %c30_65 = arith.constant 30 : index
    %c0_66 = arith.constant 0 : index
    %104 = vector.load %arg8[%c30_65, %c0_66] : memref<320x8xf32, #tpu.memory_space<vmem>>, vector<256x8xf32>
    %cst_67 = arith.constant -1.000000e+30 : f32
    %105 = vector.shape_cast %5 : vector<256x1xi1> to vector<256x1xi1>
    %106 = vector.broadcast %105 : vector<256x1xi1> to vector<256x8xi1>
    %107 = vector.broadcast %cst_67 : f32 to vector<256x8xf32>
    %108 = arith.select %106, %104, %107 : vector<256x8xi1>, vector<256x8xf32>
    %109 = arith.maximumf %102, %108 : vector<256x8xf32>
    %c31_68 = arith.constant 31 : index
    %c0_69 = arith.constant 0 : index
    %110 = vector.load %arg8[%c31_68, %c0_69] : memref<320x8xf32, #tpu.memory_space<vmem>>, vector<256x8xf32>
    %cst_70 = arith.constant -1.000000e+30 : f32
    %111 = vector.shape_cast %7 : vector<256x1xi1> to vector<256x1xi1>
    %112 = vector.broadcast %111 : vector<256x1xi1> to vector<256x8xi1>
    %113 = vector.broadcast %cst_70 : f32 to vector<256x8xf32>
    %114 = arith.select %112, %110, %113 : vector<256x8xi1>, vector<256x8xf32>
    %115 = arith.maximumf %109, %114 : vector<256x8xf32>
    %c33_71 = arith.constant 33 : index
    %c0_72 = arith.constant 0 : index
    %116 = vector.load %arg8[%c33_71, %c0_72] : memref<320x8xf32, #tpu.memory_space<vmem>>, vector<256x8xf32>
    %cst_73 = arith.constant -1.000000e+30 : f32
    %117 = vector.shape_cast %9 : vector<256x1xi1> to vector<256x1xi1>
    %118 = vector.broadcast %117 : vector<256x1xi1> to vector<256x8xi1>
    %119 = vector.broadcast %cst_73 : f32 to vector<256x8xf32>
    %120 = arith.select %118, %116, %119 : vector<256x8xi1>, vector<256x8xf32>
    %121 = arith.maximumf %115, %120 : vector<256x8xf32>
    %c34_74 = arith.constant 34 : index
    %c0_75 = arith.constant 0 : index
    %122 = vector.load %arg8[%c34_74, %c0_75] : memref<320x8xf32, #tpu.memory_space<vmem>>, vector<256x8xf32>
    %cst_76 = arith.constant -1.000000e+30 : f32
    %123 = vector.shape_cast %11 : vector<256x1xi1> to vector<256x1xi1>
    %124 = vector.broadcast %123 : vector<256x1xi1> to vector<256x8xi1>
    %125 = vector.broadcast %cst_76 : f32 to vector<256x8xf32>
    %126 = arith.select %124, %122, %125 : vector<256x8xi1>, vector<256x8xf32>
    %127 = arith.maximumf %121, %126 : vector<256x8xf32>
    %128 = arith.truncf %25 : vector<256x8xf32> to vector<256x8xbf16>
    %c0_77 = arith.constant 0 : index
    %c0_78 = arith.constant 0 : index
    %c0_79 = arith.constant 0 : index
    %129 = vector.load %arg5[%c0_77, %c0_78, %c0_79] : memref<4x8x16xbf16, #tpu.memory_space<vmem>>, vector<1x8x16xbf16>
    %130 = vector.shape_cast %129 : vector<1x8x16xbf16> to vector<8x16xbf16>
    %cst_80 = arith.constant dense<0.000000e+00> : vector<256x16xf32>
    %131 = tpu.matmul %128, %130, %cst_80 {dimension_numbers = #tpu.dot_dimension_numbers<[1], [0], [0], [1], [0, 0, 1, 1], [], []>} : vector<256x8xbf16>, vector<8x16xbf16>, vector<256x16xf32> -> vector<256x16xf32>
    %132 = arith.truncf %59 : vector<256x8xf32> to vector<256x8xbf16>
    %c1 = arith.constant 1 : index
    %c0_81 = arith.constant 0 : index
    %c0_82 = arith.constant 0 : index
    %133 = vector.load %arg5[%c1, %c0_81, %c0_82] : memref<4x8x16xbf16, #tpu.memory_space<vmem>>, vector<1x8x16xbf16>
    %134 = vector.shape_cast %133 : vector<1x8x16xbf16> to vector<8x16xbf16>
    %cst_83 = arith.constant dense<0.000000e+00> : vector<256x16xf32>
    %135 = tpu.matmul %132, %134, %cst_83 {dimension_numbers = #tpu.dot_dimension_numbers<[1], [0], [0], [1], [0, 0, 1, 1], [], []>} : vector<256x8xbf16>, vector<8x16xbf16>, vector<256x16xf32> -> vector<256x16xf32>
    %136 = arith.addf %131, %135 : vector<256x16xf32>
    %137 = arith.truncf %93 : vector<256x8xf32> to vector<256x8xbf16>
    %c2 = arith.constant 2 : index
    %c0_84 = arith.constant 0 : index
    %c0_85 = arith.constant 0 : index
    %138 = vector.load %arg5[%c2, %c0_84, %c0_85] : memref<4x8x16xbf16, #tpu.memory_space<vmem>>, vector<1x8x16xbf16>
    %139 = vector.shape_cast %138 : vector<1x8x16xbf16> to vector<8x16xbf16>
    %cst_86 = arith.constant dense<0.000000e+00> : vector<256x16xf32>
    %140 = tpu.matmul %137, %139, %cst_86 {dimension_numbers = #tpu.dot_dimension_numbers<[1], [0], [0], [1], [0, 0, 1, 1], [], []>} : vector<256x8xbf16>, vector<8x16xbf16>, vector<256x16xf32> -> vector<256x16xf32>
    %141 = arith.addf %136, %140 : vector<256x16xf32>
    %142 = arith.truncf %127 : vector<256x8xf32> to vector<256x8xbf16>
    %c3 = arith.constant 3 : index
    %c0_87 = arith.constant 0 : index
    %c0_88 = arith.constant 0 : index
    %143 = vector.load %arg5[%c3, %c0_87, %c0_88] : memref<4x8x16xbf16, #tpu.memory_space<vmem>>, vector<1x8x16xbf16>
    %144 = vector.shape_cast %143 : vector<1x8x16xbf16> to vector<8x16xbf16>
    %cst_89 = arith.constant dense<0.000000e+00> : vector<256x16xf32>
    %145 = tpu.matmul %142, %144, %cst_89 {dimension_numbers = #tpu.dot_dimension_numbers<[1], [0], [0], [1], [0, 0, 1, 1], [], []>} : vector<256x8xbf16>, vector<8x16xbf16>, vector<256x16xf32> -> vector<256x16xf32>
    %146 = arith.addf %141, %145 : vector<256x16xf32>
    %c0_90 = arith.constant 0 : index
    %c0_91 = arith.constant 0 : index
    %147 = vector.load %arg6[%c0_90, %c0_91] : memref<1x16xf32, #tpu.memory_space<vmem>>, vector<1x16xf32>
    %148 = vector.broadcast %147 : vector<1x16xf32> to vector<256x16xf32>
    %149 = arith.addf %146, %148 : vector<256x16xf32>
    %150 = arith.negf %149 : vector<256x16xf32>
    %151 = math.exp %150 : vector<256x16xf32>
    %cst_92 = arith.constant 1.000000e+00 : f32
    %152 = vector.broadcast %cst_92 : f32 to vector<256x16xf32>
    %153 = arith.addf %152, %151 : vector<256x16xf32>
    %154 = arith.divf %152, %153 : vector<256x16xf32>
    %155 = arith.mulf %149, %154 : vector<256x16xf32>
    %c0_93 = arith.constant 0 : index
    %c0_94 = arith.constant 0 : index
    %c0_95 = arith.constant 0 : index
    %156 = vector.load %arg7[%c0_93, %c0_94, %c0_95] : memref<1x256x16xf32, #tpu.memory_space<vmem>>, vector<1x256x16xf32>
    %157 = vector.shape_cast %156 : vector<1x256x16xf32> to vector<256x16xf32>
    %158 = vector.shape_cast %155 : vector<256x16xf32> to vector<1x256x16xf32>
    tpu.vector_store %arg7[%c0_93, %c0_94, %c0_95], %158 {strides = array<i32>} : memref<1x256x16xf32, #tpu.memory_space<vmem>>, vector<1x256x16xf32>,
    return
  }
  func.func @transform_0(%arg0: i32) -> (i32, i32, i32) {
    %c0_i32 = arith.constant 0 : i32
    %c0_i32_0 = arith.constant 0 : i32
    %c0_i32_1 = arith.constant 0 : i32
    return %arg0, %c0_i32, %c0_i32_0 : i32, i32, i32
  }
  func.func @transform_1(%arg0: i32) -> (i32, i32) {
    %c0_i32 = arith.constant 0 : i32
    %c0_i32_0 = arith.constant 0 : i32
    %c0_i32_1 = arith.constant 0 : i32
    return %c0_i32, %c0_i32_0 : i32, i32
  }
  func.func @transform_2(%arg0: i32) -> (i32, i32) {
    %c0_i32 = arith.constant 0 : i32
    %c0_i32_0 = arith.constant 0 : i32
    %c0_i32_1 = arith.constant 0 : i32
    return %c0_i32, %c0_i32_0 : i32, i32
  }
  func.func @transform_3(%arg0: i32) -> (i32, i32) {
    %c0_i32 = arith.constant 0 : i32
    %c0_i32_0 = arith.constant 0 : i32
    %c0_i32_1 = arith.constant 0 : i32
    return %c0_i32, %c0_i32_0 : i32, i32
  }
  func.func @transform_4(%arg0: i32) -> (i32, i32, i32) {
    %c0_i32 = arith.constant 0 : i32
    %c0_i32_0 = arith.constant 0 : i32
    %c0_i32_1 = arith.constant 0 : i32
    %c0_i32_2 = arith.constant 0 : i32
    return %c0_i32, %c0_i32_0, %c0_i32_1 : i32, i32, i32
  }
  func.func @transform_5(%arg0: i32) -> (i32, i32) {
    %c0_i32 = arith.constant 0 : i32
    %c0_i32_0 = arith.constant 0 : i32
    %c0_i32_1 = arith.constant 0 : i32
    return %c0_i32, %c0_i32_0 : i32, i32
  }
  func.func @transform_6(%arg0: i32) -> (i32, i32, i32) {
    %c0_i32 = arith.constant 0 : i32
    %c0_i32_0 = arith.constant 0 : i32
    %c0_i32_1 = arith.constant 0 : i32
    return %arg0, %c0_i32, %c0_i32_0 : i32, i32, i32
  }
}

</mosaic_0001>

<llo_original>
// kernel: tpu_custom_call.1
$region0: #{tpu_custom_call.1}
  #allocation0 [shape = 'u32[]', space=smem, size = 0x4, offset = 0x4, fixed_abs, tag = 'smem constant byte address 0x4 - core index']
  #allocation1 [shape = 'u32[72,128]{1,0:T(1,128)}', space=vmem, size = 0x9000, scoped, tag = 'internal scratch']
  #allocation2 [shape = 'f32[320,8]{1,0:T(8,128)}', space=vmem, size = 0x28000, scoped, tag = 'scratch operand']
  %s0 = inlined_call_operand.vmem [shape: f32[2,256,16], index: 0, kind: input, shape index: {}]
  %s1 = inlined_call_operand.vmem [shape: s32[256,1], index: 1, kind: input, shape index: {}]
  %s2 = inlined_call_operand.vmem [shape: bf16[16,8], index: 2, kind: input, shape index: {}]
  %s3 = inlined_call_operand.vmem [shape: f32[1,8], index: 3, kind: input, shape index: {}]
  %s4 = inlined_call_operand.vmem [shape: bf16[4,8,16], index: 4, kind: input, shape index: {}]
  %s5 = inlined_call_operand.vmem [shape: f32[1,16], index: 5, kind: input, shape index: {}]
  %s6 = inlined_call_operand.vmem [shape: f32[2,256,16], index: 6, kind: output, shape index: {}]
  %s7 = sld [smem:[#allocation0]]
  $region57: #{tpu_custom_call.1} parent=0
    _
  %s9 = ssub.s32 1, %s7
  %s10 = scalar_select 0, %s9, %s7
  loop: start=0, step=1, limit=4
  $region2: #{tpu_custom_call.1} parent=0 // loop_pre_header
    _
  $region3: #{tpu_custom_call.1} parent=0 // loop_header
    %s12 = sphi 0, %s16
    %p13 = scmp.ge.s32.totalorder %s12, 4
    %s22 = sphi 0, %s24
    %s25 = sphi 0, %s22
    %s26 = sphi 0, %s25
    %s42 = sphi 0, %s26
    %s46 = sphi 0, %s46
    %s48 = sphi 0, %s46
    %s49 = sphi 0, %s48
    %s63 = sphi 0, %s49
    %s67 = sphi 0, %s67
    %s69 = sphi 0, %s67
    %s70 = sphi 0, %s69
    %s84 = sphi 0, %s70
    %s88 = sphi 0, %s88
    %s90 = sphi 0, %s88
    %s91 = sphi 0, %s90
    %s105 = sphi 0, %s91
    %s109 = sphi 0, %s109
    %s111 = sphi 0, %s109
    %s112 = sphi 0, %s111
    %s126 = sphi 0, %s112
    %s130 = sphi 0, %s130
    %s132 = sphi 0, %s130
    %s133 = sphi 0, %s132
    %s147 = sphi 0, %s133
    %s153 = sphi 0, %s155
    %s156 = sphi 0, %s153
    %s157 = sphi 0, %s156
    %s173 = sphi 0, %s157
  $region4: #{tpu_custom_call.1} parent=0 // loop_header_branch
    %15 = sbr.rel (%p13) target = $region8
  $region5: #{tpu_custom_call.1} parent=0 // loop_body
    %s17 = ssub.s32 %s12, 1
    %s18 = ssub.s32 %s12, 2
    %s19 = sadd.s32 %s12, 1
    %s20 = ssub.s32 %s12, %s19
    %p21 = scmp.eq.s32.totalorder %s20, 0
    %s23 = sadd.s32 %s22, 1
    %s24 = scalar_select %p21, %s22, %s23
    %p27 = pneg %p21
    %p28 = scmp.eq.s32.totalorder %s12, 1
    %p29 = por %p27, %p28
    %p30 = scmp.ne.s32.totalorder %s22, %s25
    %p31 = scmp.eq.s32.totalorder %s12, 0
    %p32 = por %p30, %p31
    %p33 = scmp.ne.s32.totalorder %s22, %s25
    %p34 = scmp.eq.s32.totalorder %s17, 1
    %p35 = por %p33, %p34
    %p36 = scmp.ne.s32.totalorder %s25, %s26
    %p37 = scmp.eq.s32.totalorder %s17, 0
    %p38 = por %p36, %p37
    %p39 = scmp.ne.s32.totalorder %s25, %s26
    %p40 = scmp.eq.s32.totalorder %s18, 1
    %p41 = por %p39, %p40
    %p43 = scmp.ne.s32.totalorder %s26, %s42
    %p44 = scmp.eq.s32.totalorder %s18, 0
    %p45 = por %p43, %p44
    %s47 = sadd.s32 %s46, 1
    %p50 = scmp.eq.s32.totalorder %s12, 1
    %p51 = scmp.ne.s32.totalorder %s46, %s48
    %p52 = scmp.eq.s32.totalorder %s12, 0
    %p53 = por %p51, %p52
    %p54 = scmp.ne.s32.totalorder %s46, %s48
    %p55 = scmp.eq.s32.totalorder %s17, 1
    %p56 = por %p54, %p55
    %p57 = scmp.ne.s32.totalorder %s48, %s49
    %p58 = scmp.eq.s32.totalorder %s17, 0
    %p59 = por %p57, %p58
    %p60 = scmp.ne.s32.totalorder %s48, %s49
    %p61 = scmp.eq.s32.totalorder %s18, 1
    %p62 = por %p60, %p61
    %p64 = scmp.ne.s32.totalorder %s49, %s63
    %p65 = scmp.eq.s32.totalorder %s18, 0
    %p66 = por %p64, %p65
    %s68 = sadd.s32 %s67, 1
    %p71 = scmp.eq.s32.totalorder %s12, 1
    %p72 = scmp.ne.s32.totalorder %s67, %s69
    %p73 = scmp.eq.s32.totalorder %s12, 0
    %p74 = por %p72, %p73
    %p75 = scmp.ne.s32.totalorder %s67, %s69
    %p76 = scmp.eq.s32.totalorder %s17, 1
    %p77 = por %p75, %p76
    %p78 = scmp.ne.s32.totalorder %s69, %s70
    %p79 = scmp.eq.s32.totalorder %s17, 0
    %p80 = por %p78, %p79
    %p81 = scmp.ne.s32.totalorder %s69, %s70
    %p82 = scmp.eq.s32.totalorder %s18, 1
    %p83 = por %p81, %p82
    %p85 = scmp.ne.s32.totalorder %s70, %s84
    %p86 = scmp.eq.s32.totalorder %s18, 0
    %p87 = por %p85, %p86
    %s89 = sadd.s32 %s88, 1
    %p92 = scmp.eq.s32.totalorder %s12, 1
    %p93 = scmp.ne.s32.totalorder %s88, %s90
    %p94 = scmp.eq.s32.totalorder %s12, 0
    %p95 = por %p93, %p94
    %p96 = scmp.ne.s32.totalorder %s88, %s90
    %p97 = scmp.eq.s32.totalorder %s17, 1
    %p98 = por %p96, %p97
    %p99 = scmp.ne.s32.totalorder %s90, %s91
    %p100 = scmp.eq.s32.totalorder %s17, 0
    %p101 = por %p99, %p100
    %p102 = scmp.ne.s32.totalorder %s90, %s91
    %p103 = scmp.eq.s32.totalorder %s18, 1
    %p104 = por %p102, %p103
    %p106 = scmp.ne.s32.totalorder %s91, %s105
    %p107 = scmp.eq.s32.totalorder %s18, 0
    %p108 = por %p106, %p107
    %s110 = sadd.s32 %s109, 1
    %p113 = scmp.eq.s32.totalorder %s12, 1
    %p114 = scmp.ne.s32.totalorder %s109, %s111
    %p115 = scmp.eq.s32.totalorder %s12, 0
    %p116 = por %p114, %p115
    %p117 = scmp.ne.s32.totalorder %s109, %s111
    %p118 = scmp.eq.s32.totalorder %s17, 1
    %p119 = por %p117, %p118
    %p120 = scmp.ne.s32.totalorder %s111, %s112
    %p121 = scmp.eq.s32.totalorder %s17, 0
    %p122 = por %p120, %p121
    %p123 = scmp.ne.s32.totalorder %s111, %s112
    %p124 = scmp.eq.s32.totalorder %s18, 1
    %p125 = por %p123, %p124
    %p127 = scmp.ne.s32.totalorder %s112, %s126
    %p128 = scmp.eq.s32.totalorder %s18, 0
    %p129 = por %p127, %p128
    %s131 = sadd.s32 %s130, 1
    %p134 = scmp.eq.s32.totalorder %s12, 1
    %p135 = scmp.ne.s32.totalorder %s130, %s132
    %p136 = scmp.eq.s32.totalorder %s12, 0
    %p137 = por %p135, %p136
    %p138 = scmp.ne.s32.totalorder %s130, %s132
    %p139 = scmp.eq.s32.totalorder %s17, 1
    %p140 = por %p138, %p139
    %p141 = scmp.ne.s32.totalorder %s132, %s133
    %p142 = scmp.eq.s32.totalorder %s17, 0
    %p143 = por %p141, %p142
    %p144 = scmp.ne.s32.totalorder %s132, %s133
    %p145 = scmp.eq.s32.totalorder %s18, 1
    %p146 = por %p144, %p145
    %p148 = scmp.ne.s32.totalorder %s133, %s147
    %p149 = scmp.eq.s32.totalorder %s18, 0
    %p150 = por %p148, %p149
    %s151 = ssub.s32 %s12, %s19
    %p152 = scmp.eq.s32.totalorder %s151, 0
    %s154 = sadd.s32 %s153, 1
    %s155 = scalar_select %p152, %s153, %s154
    %p158 = pneg %p152
    %p159 = scmp.eq.s32.totalorder %s12, 1
    %p160 = por %p158, %p159
    %p161 = scmp.ne.s32.totalorder %s153, %s156
    %p162 = scmp.eq.s32.totalorder %s12, 0
    %p163 = por %p161, %p162
    %p164 = scmp.ne.s32.totalorder %s153, %s156
    %p165 = scmp.eq.s32.totalorder %s17, 1
    %p166 = por %p164, %p165
    %p167 = scmp.ne.s32.totalorder %s156, %s157
    %p168 = scmp.eq.s32.totalorder %s17, 0
    %p169 = por %p167, %p168
    %p170 = scmp.ne.s32.totalorder %s156, %s157
    %p171 = scmp.eq.s32.totalorder %s18, 1
    %p172 = por %p170, %p171
    %p174 = scmp.ne.s32.totalorder %s157, %s173
    %p175 = scmp.eq.s32.totalorder %s18, 0
    %p176 = por %p174, %p175
    %p177 = scmp.le.s32.totalorder 1, %s12
    %p178 = scmp.lt.s32.totalorder %s12, 3
    %p179 = pnand %p177, %p178
    %p180 = pneg %p179
    // Predicated region
    $region9: #{tpu_custom_call.1} parent=5 // pred_check
      _
    $region10: #{tpu_custom_call.1} parent=5 // pred_check_branch
      %182 = sbr.rel (%p179) target = $region12
    $region11: #{tpu_custom_call.1} parent=5 // pred_region
      %s183 = ssub.s32 %s12, 1
      // Predicated region
      $region13: #{tpu_custom_call.1} parent=11 // pred_check
        %p184 = pneg %p59
      $region14: #{tpu_custom_call.1} parent=11 // pred_check_branch
        %186 = sbr.rel (%p184) target = $region16
      $region15: #{tpu_custom_call.1} parent=11 // pred_region
        _
      $region16: #{tpu_custom_call.1} parent=11 // pred_fallthru
        _
      // Predicated region
      $region17: #{tpu_custom_call.1} parent=11 // pred_check
        %p187 = pneg %p80
      $region18: #{tpu_custom_call.1} parent=11 // pred_check_branch
        %189 = sbr.rel (%p187) target = $region20
      $region19: #{tpu_custom_call.1} parent=11 // pred_region
        _
      $region20: #{tpu_custom_call.1} parent=11 // pred_fallthru
        _
      // Predicated region
      $region21: #{tpu_custom_call.1} parent=11 // pred_check
        %p190 = pneg %p101
      $region22: #{tpu_custom_call.1} parent=11 // pred_check_branch
        %192 = sbr.rel (%p190) target = $region24
      $region23: #{tpu_custom_call.1} parent=11 // pred_region
        _
      $region24: #{tpu_custom_call.1} parent=11 // pred_fallthru
        _
      // Predicated region
      $region25: #{tpu_custom_call.1} parent=11 // pred_check
        %p193 = pneg %p122
      $region26: #{tpu_custom_call.1} parent=11 // pred_check_branch
        %195 = sbr.rel (%p193) target = $region28
      $region27: #{tpu_custom_call.1} parent=11 // pred_region
        _
      $region28: #{tpu_custom_call.1} parent=11 // pred_fallthru
        _
      // Predicated region
      $region29: #{tpu_custom_call.1} parent=11 // pred_check
        %p196 = pneg %p143
      $region30: #{tpu_custom_call.1} parent=11 // pred_check_branch
        %198 = sbr.rel (%p196) target = $region32
      $region31: #{tpu_custom_call.1} parent=11 // pred_region
        _
      $region32: #{tpu_custom_call.1} parent=11 // pred_fallthru
        _
    $region12: #{tpu_custom_call.1} parent=5 // pred_fallthru
      _
    %p199 = scmp.lt.s32.totalorder %s12, 2
    // Predicated region
    $region33: #{tpu_custom_call.1} parent=5 // pred_check
      %p200 = pneg %p199
    $region34: #{tpu_custom_call.1} parent=5 // pred_check_branch
      %202 = sbr.rel (%p200) target = $region36
    $region35: #{tpu_custom_call.1} parent=5 // pred_region
      // Predicated region
      $region37: #{tpu_custom_call.1} parent=35 // pred_check
        %p203 = pneg %p32
      $region38: #{tpu_custom_call.1} parent=35 // pred_check_branch
        %205 = sbr.rel (%p203) target = $region40
      $region39: #{tpu_custom_call.1} parent=35 // pred_region
        %p206 = scmp.lt.s32.totalorder %s12, 1
        %s207 = scalar_select %p206, %s12, 1
        %s208 = smul.addr %s207, 32
        %s209 = smul.addr %s208, 8
        %s210 = scalar_lea.vmem %s0, %s209
      $region40: #{tpu_custom_call.1} parent=35 // pred_fallthru
        _
    $region36: #{tpu_custom_call.1} parent=5 // pred_fallthru
      _
    %p211 = scmp.le.s32.totalorder 1, %s12
    %p212 = scmp.lt.s32.totalorder %s12, 3
    %p213 = pnand %p211, %p212
    %p214 = pneg %p213
    // Predicated region
    $region41: #{tpu_custom_call.1} parent=5 // pred_check
      _
    $region42: #{tpu_custom_call.1} parent=5 // pred_check_branch
      %216 = sbr.rel (%p213) target = $region44
    $region43: #{tpu_custom_call.1} parent=5 // pred_region
      %s217 = ssub.s32 %s12, 1
      %p218 = scmp.lt.s32.totalorder %s17, 1
      %s219 = scalar_select %p218, %s17, 1
      %s220 = smul.addr %s219, 32
      %s221 = smul.addr %s220, 8
      %s222 = scalar_lea.vmem %s0, %s221
      %p223 = pneg %p38
      %p224 = pneg %p35
      %p225 = pneg %p59
      %p226 = pneg %p56
      %p227 = pneg %p80
      %p228 = pneg %p77
      %p229 = pneg %p101
      %p230 = pneg %p98
      %p231 = pneg %p122
      %p232 = pneg %p119
      %p233 = pneg %p143
      %p234 = pneg %p140
      %p235 = pneg %p169
      %p236 = pneg %p166
      %p237 = scmp.lt.s32.totalorder %s17, 1
      %s238 = scalar_select %p237, %s17, 1
      %s239 = smul.addr %s238, 32
      %s240 = smul.addr %s239, 8
      %s241 = scalar_lea.vmem %s6, %s240
      %p242 = scmp.lt.s32.totalorder %s17, 1
      %s243 = scalar_select %p242, %s17, 1
      %s244 = smul.addr %s243, 32
      %s245 = smul.addr %s244, 8
      %s246 = scalar_lea.vmem %s0, %s245
      %p247 = scmp.lt.s32.totalorder %s17, 1
      %s248 = scalar_select %p247, %s17, 1
      %s249 = smul.addr %s248, 32
      %s250 = smul.addr %s249, 8
      %s251 = scalar_lea.vmem %s6, %s250
      %vm253 = vcmask 64512
      %254 = vst.msk [vmem:[#allocation2] sm:$0xff] %vm253, -1e+30
      %255 = vst.msk [vmem:[#allocation2 + $0x8] sm:$0xff] %vm253, -1e+30
      %256 = vst.msk [vmem:[#allocation2 + $0x10] sm:$0xff] %vm253, -1e+30
      %257 = vst.msk [vmem:[#allocation2 + $0x18] sm:$0xff] %vm253, -1e+30
      %258 = vst.msk [vmem:[#allocation2 + $0x120] sm:$0xff] %vm253, -1e+30
      %259 = vst.msk [vmem:[#allocation2 + $0x128] sm:$0xff] %vm253, -1e+30
      %260 = vst.msk [vmem:[#allocation2 + $0x130] sm:$0xff] %vm253, -1e+30
      %261 = vst.msk [vmem:[#allocation2 + $0x138] sm:$0xff] %vm253, -1e+30
      %v262 = vld [vmem:[%s1] sm:$0xff]
      %v263 = vld [vmem:[%s1 + $0x8] sm:$0xff]
      %v264 = vld [vmem:[%s1 + $0x10] sm:$0xff]
      %v265 = vld [vmem:[%s1 + $0x18] sm:$0xff]
      %v266 = vld [vmem:[%s1 + $0x20] sm:$0xff]
      %v267 = vld [vmem:[%s1 + $0x28] sm:$0xff]
      %v268 = vld [vmem:[%s1 + $0x30] sm:$0xff]
      %v269 = vld [vmem:[%s1 + $0x38] sm:$0xff]
      %v270 = vld [vmem:[%s1 + $0x40] sm:$0xff]
      %v271 = vld [vmem:[%s1 + $0x48] sm:$0xff]
      %v272 = vld [vmem:[%s1 + $0x50] sm:$0xff]
      %v273 = vld [vmem:[%s1 + $0x58] sm:$0xff]
      %v274 = vld [vmem:[%s1 + $0x60] sm:$0xff]
      %v275 = vld [vmem:[%s1 + $0x68] sm:$0xff]
      %v276 = vld [vmem:[%s1 + $0x70] sm:$0xff]
      %v277 = vld [vmem:[%s1 + $0x78] sm:$0xff]
      %v278 = vld [vmem:[%s1 + $0x80] sm:$0xff]
      %v279 = vld [vmem:[%s1 + $0x88] sm:$0xff]
      %v280 = vld [vmem:[%s1 + $0x90] sm:$0xff]
      %v281 = vld [vmem:[%s1 + $0x98] sm:$0xff]
      %v282 = vld [vmem:[%s1 + $0xa0] sm:$0xff]
      %v283 = vld [vmem:[%s1 + $0xa8] sm:$0xff]
      %v284 = vld [vmem:[%s1 + $0xb0] sm:$0xff]
      %v285 = vld [vmem:[%s1 + $0xb8] sm:$0xff]
      %v286 = vld [vmem:[%s1 + $0xc0] sm:$0xff]
      %v287 = vld [vmem:[%s1 + $0xc8] sm:$0xff]
      %v288 = vld [vmem:[%s1 + $0xd0] sm:$0xff]
      %v289 = vld [vmem:[%s1 + $0xd8] sm:$0xff]
      %v290 = vld [vmem:[%s1 + $0xe0] sm:$0xff]
      %v291 = vld [vmem:[%s1 + $0xe8] sm:$0xff]
      %v292 = vld [vmem:[%s1 + $0xf0] sm:$0xff]
      %v293 = vld [vmem:[%s1 + $0xf8] sm:$0xff]
      %vm294 = vcmp.ge.s32.totalorder %v262, 2
      %vm295 = vcmp.ge.s32.totalorder %v263, 2
      %vm296 = vcmp.ge.s32.totalorder %v264, 2
      %vm297 = vcmp.ge.s32.totalorder %v265, 2
      %vm298 = vcmp.ge.s32.totalorder %v266, 2
      %vm299 = vcmp.ge.s32.totalorder %v267, 2
      %vm300 = vcmp.ge.s32.totalorder %v268, 2
      %vm301 = vcmp.ge.s32.totalorder %v269, 2
      %vm302 = vcmp.ge.s32.totalorder %v270, 2
      %vm303 = vcmp.ge.s32.totalorder %v271, 2
      %vm304 = vcmp.ge.s32.totalorder %v272, 2
      %vm305 = vcmp.ge.s32.totalorder %v273, 2
      %vm306 = vcmp.ge.s32.totalorder %v274, 2
      %vm307 = vcmp.ge.s32.totalorder %v275, 2
      %vm308 = vcmp.ge.s32.totalorder %v276, 2
      %vm309 = vcmp.ge.s32.totalorder %v277, 2
      %vm310 = vcmp.ge.s32.totalorder %v278, 2
      %vm311 = vcmp.ge.s32.totalorder %v279, 2
      %vm312 = vcmp.ge.s32.totalorder %v280, 2
      %vm313 = vcmp.ge.s32.totalorder %v281, 2
      %vm314 = vcmp.ge.s32.totalorder %v282, 2
      %vm315 = vcmp.ge.s32.totalorder %v283, 2
      %vm316 = vcmp.ge.s32.totalorder %v284, 2
      %vm317 = vcmp.ge.s32.totalorder %v285, 2
      %vm318 = vcmp.ge.s32.totalorder %v286, 2
      %vm319 = vcmp.ge.s32.totalorder %v287, 2
      %vm320 = vcmp.ge.s32.totalorder %v288, 2
      %vm321 = vcmp.ge.s32.totalorder %v289, 2
      %vm322 = vcmp.ge.s32.totalorder %v290, 2
      %vm323 = vcmp.ge.s32.totalorder %v291, 2
      %vm324 = vcmp.ge.s32.totalorder %v292, 2
      %vm325 = vcmp.ge.s32.totalorder %v293, 2
      %vm326 = vcmp.ge.s32.totalorder %v262, 1
      %vm327 = vcmp.ge.s32.totalorder %v263, 1
      %vm328 = vcmp.ge.s32.totalorder %v264, 1
      %vm329 = vcmp.ge.s32.totalorder %v265, 1
      %vm330 = vcmp.ge.s32.totalorder %v266, 1
      %vm331 = vcmp.ge.s32.totalorder %v267, 1
      %vm332 = vcmp.ge.s32.totalorder %v268, 1
      %vm333 = vcmp.ge.s32.totalorder %v269, 1
      %vm334 = vcmp.ge.s32.totalorder %v270, 1
      %vm335 = vcmp.ge.s32.totalorder %v271, 1
      %vm336 = vcmp.ge.s32.totalorder %v272, 1
      %vm337 = vcmp.ge.s32.totalorder %v273, 1
      %vm338 = vcmp.ge.s32.totalorder %v274, 1
      %vm339 = vcmp.ge.s32.totalorder %v275, 1
      %vm340 = vcmp.ge.s32.totalorder %v276, 1
      %vm341 = vcmp.ge.s32.totalorder %v277, 1
      %vm342 = vcmp.ge.s32.totalorder %v278, 1
      %vm343 = vcmp.ge.s32.totalorder %v279, 1
      %vm344 = vcmp.ge.s32.totalorder %v280, 1
      %vm345 = vcmp.ge.s32.totalorder %v281, 1
      %vm346 = vcmp.ge.s32.totalorder %v282, 1
      %vm347 = vcmp.ge.s32.totalorder %v283, 1
      %vm348 = vcmp.ge.s32.totalorder %v284, 1
      %vm349 = vcmp.ge.s32.totalorder %v285, 1
      %vm350 = vcmp.ge.s32.totalorder %v286, 1
      %vm351 = vcmp.ge.s32.totalorder %v287, 1
      %vm352 = vcmp.ge.s32.totalorder %v288, 1
      %vm353 = vcmp.ge.s32.totalorder %v289, 1
      %vm354 = vcmp.ge.s32.totalorder %v290, 1
      %vm355 = vcmp.ge.s32.totalorder %v291, 1
      %vm356 = vcmp.ge.s32.totalorder %v292, 1
      %vm357 = vcmp.ge.s32.totalorder %v293, 1
      %vm358 = vcmp.lt.s32.totalorder %v262, 15
      %vm359 = vcmp.lt.s32.totalorder %v263, 15
      %vm360 = vcmp.lt.s32.totalorder %v264, 15
      %vm361 = vcmp.lt.s32.totalorder %v265, 15
      %vm362 = vcmp.lt.s32.totalorder %v266, 15
      %vm363 = vcmp.lt.s32.totalorder %v267, 15
      %vm364 = vcmp.lt.s32.totalorder %v268, 15
      %vm365 = vcmp.lt.s32.totalorder %v269, 15
      %vm366 = vcmp.lt.s32.totalorder %v270, 15
      %vm367 = vcmp.lt.s32.totalorder %v271, 15
      %vm368 = vcmp.lt.s32.totalorder %v272, 15
      %vm369 = vcmp.lt.s32.totalorder %v273, 15
      %vm370 = vcmp.lt.s32.totalorder %v274, 15
      %vm371 = vcmp.lt.s32.totalorder %v275, 15
      %vm372 = vcmp.lt.s32.totalorder %v276, 15
      %vm373 = vcmp.lt.s32.totalorder %v277, 15
      %vm374 = vcmp.lt.s32.totalorder %v278, 15
      %vm375 = vcmp.lt.s32.totalorder %v279, 15
      %vm376 = vcmp.lt.s32.totalorder %v280, 15
      %vm377 = vcmp.lt.s32.totalorder %v281, 15
      %vm378 = vcmp.lt.s32.totalorder %v282, 15
      %vm379 = vcmp.lt.s32.totalorder %v283, 15
      %vm380 = vcmp.lt.s32.totalorder %v284, 15
      %vm381 = vcmp.lt.s32.totalorder %v285, 15
      %vm382 = vcmp.lt.s32.totalorder %v286, 15
      %vm383 = vcmp.lt.s32.totalorder %v287, 15
      %vm384 = vcmp.lt.s32.totalorder %v288, 15
      %vm385 = vcmp.lt.s32.totalorder %v289, 15
      %vm386 = vcmp.lt.s32.totalorder %v290, 15
      %vm387 = vcmp.lt.s32.totalorder %v291, 15
      %vm388 = vcmp.lt.s32.totalorder %v292, 15
      %vm389 = vcmp.lt.s32.totalorder %v293, 15
      %vm390 = vcmp.lt.s32.totalorder %v262, 14
      %vm391 = vcmp.lt.s32.totalorder %v263, 14
      %vm392 = vcmp.lt.s32.totalorder %v264, 14
      %vm393 = vcmp.lt.s32.totalorder %v265, 14
      %vm394 = vcmp.lt.s32.totalorder %v266, 14
      %vm395 = vcmp.lt.s32.totalorder %v267, 14
      %vm396 = vcmp.lt.s32.totalorder %v268, 14
      %vm397 = vcmp.lt.s32.totalorder %v269, 14
      %vm398 = vcmp.lt.s32.totalorder %v270, 14
      %vm399 = vcmp.lt.s32.totalorder %v271, 14
      %vm400 = vcmp.lt.s32.totalorder %v272, 14
      %vm401 = vcmp.lt.s32.totalorder %v273, 14
      %vm402 = vcmp.lt.s32.totalorder %v274, 14
      %vm403 = vcmp.lt.s32.totalorder %v275, 14
      %vm404 = vcmp.lt.s32.totalorder %v276, 14
      %vm405 = vcmp.lt.s32.totalorder %v277, 14
      %vm406 = vcmp.lt.s32.totalorder %v278, 14
      %vm407 = vcmp.lt.s32.totalorder %v279, 14
      %vm408 = vcmp.lt.s32.totalorder %v280, 14
      %vm409 = vcmp.lt.s32.totalorder %v281, 14
      %vm410 = vcmp.lt.s32.totalorder %v282, 14
      %vm411 = vcmp.lt.s32.totalorder %v283, 14
      %vm412 = vcmp.lt.s32.totalorder %v284, 14
      %vm413 = vcmp.lt.s32.totalorder %v285, 14
      %vm414 = vcmp.lt.s32.totalorder %v286, 14
      %vm415 = vcmp.lt.s32.totalorder %v287, 14
      %vm416 = vcmp.lt.s32.totalorder %v288, 14
      %vm417 = vcmp.lt.s32.totalorder %v289, 14
      %vm418 = vcmp.lt.s32.totalorder %v290, 14
      %vm419 = vcmp.lt.s32.totalorder %v291, 14
      %vm420 = vcmp.lt.s32.totalorder %v292, 14
      %vm421 = vcmp.lt.s32.totalorder %v293, 14
      %v422 = vld [vmem:[%s246] sm:$0xff]
      %v423 = vld [vmem:[%s246 + $0x8] sm:$0xff]
      %v424 = vld [vmem:[%s246 + $0x10] sm:$0xff]
      %v425 = vld [vmem:[%s246 + $0x18] sm:$0xff]
      %v426 = vld [vmem:[%s246 + $0x20] sm:$0xff]
      %v427 = vld [vmem:[%s246 + $0x28] sm:$0xff]
      %v428 = vld [vmem:[%s246 + $0x30] sm:$0xff]
      %v429 = vld [vmem:[%s246 + $0x38] sm:$0xff]
      %v430 = vld [vmem:[%s246 + $0x40] sm:$0xff]
      %v431 = vld [vmem:[%s246 + $0x48] sm:$0xff]
      %v432 = vld [vmem:[%s246 + $0x50] sm:$0xff]
      %v433 = vld [vmem:[%s246 + $0x58] sm:$0xff]
      %v434 = vld [vmem:[%s246 + $0x60] sm:$0xff]
      %v435 = vld [vmem:[%s246 + $0x68] sm:$0xff]
      %v436 = vld [vmem:[%s246 + $0x70] sm:$0xff]
      %v437 = vld [vmem:[%s246 + $0x78] sm:$0xff]
      %v438 = vld [vmem:[%s246 + $0x80] sm:$0xff]
      %v439 = vld [vmem:[%s246 + $0x88] sm:$0xff]
      %v440 = vld [vmem:[%s246 + $0x90] sm:$0xff]
      %v441 = vld [vmem:[%s246 + $0x98] sm:$0xff]
      %v442 = vld [vmem:[%s246 + $0xa0] sm:$0xff]
      %v443 = vld [vmem:[%s246 + $0xa8] sm:$0xff]
      %v444 = vld [vmem:[%s246 + $0xb0] sm:$0xff]
      %v445 = vld [vmem:[%s246 + $0xb8] sm:$0xff]
      %v446 = vld [vmem:[%s246 + $0xc0] sm:$0xff]
      %v447 = vld [vmem:[%s246 + $0xc8] sm:$0xff]
      %v448 = vld [vmem:[%s246 + $0xd0] sm:$0xff]
      %v449 = vld [vmem:[%s246 + $0xd8] sm:$0xff]
      %v450 = vld [vmem:[%s246 + $0xe0] sm:$0xff]
      %v451 = vld [vmem:[%s246 + $0xe8] sm:$0xff]
      %v452 = vld [vmem:[%s246 + $0xf0] sm:$0xff]
      %v453 = vld [vmem:[%s246 + $0xf8] sm:$0xff]
      %v454 = vpack.c.bf16 %v423, %v422
      %v455 = vpack.c.bf16 %v425, %v424
      %v456 = vpack.c.bf16 %v427, %v426
      %v457 = vpack.c.bf16 %v429, %v428
      %v458 = vpack.c.bf16 %v431, %v430
      %v459 = vpack.c.bf16 %v433, %v432
      %v460 = vpack.c.bf16 %v435, %v434
      %v461 = vpack.c.bf16 %v437, %v436
      %v462 = vpack.c.bf16 %v439, %v438
      %v463 = vpack.c.bf16 %v441, %v440
      %v464 = vpack.c.bf16 %v443, %v442
      %v465 = vpack.c.bf16 %v445, %v444
      %v466 = vpack.c.bf16 %v447, %v446
      %v467 = vpack.c.bf16 %v449, %v448
      %v468 = vpack.c.bf16 %v451, %v450
      %v469 = vpack.c.bf16 %v453, %v452
      %v470 = vld [vmem:[%s2] sm:$0xf]
      %v471 = vld [vmem:[%s2 + $0x4] sm:$0xf]
      %v472 = vld [vmem:[%s3] sm:$0x1]
      %v474 = vperm.slane %v472, 0
      %v478 = vunpack.c.l.b16 %v470
      %v479 = vunpack.c.l.b16 %v471
      %v480 = vpack.c.b16 %v479, %v478
      %vm482 = vcmask 130048
      %v484 = vsel %vm482, %v454, 0
      %v487 = vsel %vm482, %v455, 0
      %v490 = vsel %vm482, %v456, 0
      %v493 = vsel %vm482, %v457, 0
      %v496 = vsel %vm482, %v458, 0
      %v499 = vsel %vm482, %v459, 0
      %v502 = vsel %vm482, %v460, 0
      %v505 = vsel %vm482, %v461, 0
      %v508 = vsel %vm482, %v462, 0
      %v511 = vsel %vm482, %v463, 0
      %v514 = vsel %vm482, %v464, 0
      %v517 = vsel %vm482, %v465, 0
      %v520 = vsel %vm482, %v466, 0
      %v523 = vsel %vm482, %v467, 0
      %v526 = vsel %vm482, %v468, 0
      %v529 = vsel %vm482, %v469, 0
      %531 = vmatpush.bf16.msra.mxu0 0
      %532 = vmatpush.bf16.msra.mxu0 0
      %533 = vmatpush.bf16.msra.mxu0 0
      %534 = vmatpush.bf16.msra.mxu0 0
      %535 = vmatpush.bf16.msra.mxu0 0
      %536 = vmatpush.bf16.msra.mxu0 0
      %537 = vmatpush.bf16.msra.mxu0 0
      %538 = vmatpush.bf16.msra.mxu0 %v480
      %539 = vmatmul.bf16.gmra.mxu0 %v484
      %v540 = vpop.f32.mrf.mxu0
      %v541 = vadd.f32 %v474, %v540
      %v542 = vpop.f32.mrf.mxu0
      %v543 = vadd.f32 %v474, %v542
      %544 = vmatmul.bf16.gmra.mxu0 %v487
      %v545 = vpop.f32.mrf.mxu0
      %v546 = vadd.f32 %v474, %v545
      %v547 = vpop.f32.mrf.mxu0
      %v548 = vadd.f32 %v474, %v547
      %549 = vmatmul.bf16.gmra.mxu0 %v490
      %v550 = vpop.f32.mrf.mxu0
      %v551 = vadd.f32 %v474, %v550
      %v552 = vpop.f32.mrf.mxu0
      %v553 = vadd.f32 %v474, %v552
      %554 = vmatmul.bf16.gmra.mxu0 %v493
      %v555 = vpop.f32.mrf.mxu0
      %v556 = vadd.f32 %v474, %v555
      %v557 = vpop.f32.mrf.mxu0
      %v558 = vadd.f32 %v474, %v557
      %559 = vmatmul.bf16.gmra.mxu0 %v496
      %v560 = vpop.f32.mrf.mxu0
      %v561 = vadd.f32 %v474, %v560
      %v562 = vpop.f32.mrf.mxu0
      %v563 = vadd.f32 %v474, %v562
      %564 = vmatmul.bf16.gmra.mxu0 %v499
      %v565 = vpop.f32.mrf.mxu0
      %v566 = vadd.f32 %v474, %v565
      %v567 = vpop.f32.mrf.mxu0
      %v568 = vadd.f32 %v474, %v567
      %569 = vmatmul.bf16.gmra.mxu0 %v502
      %v570 = vpop.f32.mrf.mxu0
      %v571 = vadd.f32 %v474, %v570
      %v572 = vpop.f32.mrf.mxu0
      %v573 = vadd.f32 %v474, %v572
      %574 = vmatmul.bf16.gmra.mxu0 %v505
      %v575 = vpop.f32.mrf.mxu0
      %v576 = vadd.f32 %v474, %v575
      %v577 = vpop.f32.mrf.mxu0
      %v578 = vadd.f32 %v474, %v577
      %579 = vmatmul.bf16.gmra.mxu0 %v508
      %v580 = vpop.f32.mrf.mxu0
      %v581 = vadd.f32 %v474, %v580
      %v582 = vpop.f32.mrf.mxu0
      %v583 = vadd.f32 %v474, %v582
      %584 = vmatmul.bf16.gmra.mxu0 %v511
      %v585 = vpop.f32.mrf.mxu0
      %v586 = vadd.f32 %v474, %v585
      %v587 = vpop.f32.mrf.mxu0
      %v588 = vadd.f32 %v474, %v587
      %589 = vmatmul.bf16.gmra.mxu0 %v514
      %v590 = vpop.f32.mrf.mxu0
      %v591 = vadd.f32 %v474, %v590
      %v592 = vpop.f32.mrf.mxu0
      %v593 = vadd.f32 %v474, %v592
      %594 = vmatmul.bf16.gmra.mxu0 %v517
      %v595 = vpop.f32.mrf.mxu0
      %v596 = vadd.f32 %v474, %v595
      %v597 = vpop.f32.mrf.mxu0
      %v598 = vadd.f32 %v474, %v597
      %599 = vmatmul.bf16.gmra.mxu0 %v520
      %v600 = vpop.f32.mrf.mxu0
      %v601 = vadd.f32 %v474, %v600
      %v602 = vpop.f32.mrf.mxu0
      %v603 = vadd.f32 %v474, %v602
      %604 = vmatmul.bf16.gmra.mxu0 %v523
      %v605 = vpop.f32.mrf.mxu0
      %v606 = vadd.f32 %v474, %v605
      %v607 = vpop.f32.mrf.mxu0
      %v608 = vadd.f32 %v474, %v607
      %609 = vmatmul.bf16.gmra.mxu0 %v526
      %v610 = vpop.f32.mrf.mxu0
      %v611 = vadd.f32 %v474, %v610
      %v612 = vpop.f32.mrf.mxu0
      %v613 = vadd.f32 %v474, %v612
      %614 = vmatmul.bf16.gmra.mxu0 %v529
      %v615 = vpop.f32.mrf.mxu0
      %v616 = vadd.f32 %v474, %v615
      %v617 = vpop.f32.mrf.mxu0
      %v618 = vadd.f32 %v474, %v617
      %619 = vdwg.mxu0
      %v620 = vxor.u32 %v541, 2147483648
      %v621 = vxor.u32 %v543, 2147483648
      %v622 = vxor.u32 %v546, 2147483648
      %v623 = vxor.u32 %v548, 2147483648
      %v624 = vxor.u32 %v551, 2147483648
      %v625 = vxor.u32 %v553, 2147483648
      %v626 = vxor.u32 %v556, 2147483648
      %v627 = vxor.u32 %v558, 2147483648
      %v628 = vxor.u32 %v561, 2147483648
      %v629 = vxor.u32 %v563, 2147483648
      %v630 = vxor.u32 %v566, 2147483648
      %v631 = vxor.u32 %v568, 2147483648
      %v632 = vxor.u32 %v571, 2147483648
      %v633 = vxor.u32 %v573, 2147483648
      %v634 = vxor.u32 %v576, 2147483648
      %v635 = vxor.u32 %v578, 2147483648
      %v636 = vxor.u32 %v581, 2147483648
      %v637 = vxor.u32 %v583, 2147483648
      %v638 = vxor.u32 %v586, 2147483648
      %v639 = vxor.u32 %v588, 2147483648
      %v640 = vxor.u32 %v591, 2147483648
      %v641 = vxor.u32 %v593, 2147483648
      %v642 = vxor.u32 %v596, 2147483648
      %v643 = vxor.u32 %v598, 2147483648
      %v644 = vxor.u32 %v601, 2147483648
      %v645 = vxor.u32 %v603, 2147483648
      %v646 = vxor.u32 %v606, 2147483648
      %v647 = vxor.u32 %v608, 2147483648
      %v648 = vxor.u32 %v611, 2147483648
      %v649 = vxor.u32 %v613, 2147483648
      %v650 = vxor.u32 %v616, 2147483648
      %v651 = vxor.u32 %v618, 2147483648
      %v652 = vmul.f32 %v620, 1.442695
      %v653 = vpow.pop %v652
      %v654 = vmul.f32 %v621, 1.442695
      %v655 = vpow.pop %v654
      %v656 = vmul.f32 %v622, 1.442695
      %v657 = vpow.pop %v656
      %v658 = vmul.f32 %v623, 1.442695
      %v659 = vpow.pop %v658
      %v660 = vmul.f32 %v624, 1.442695
      %v661 = vpow.pop %v660
      %v662 = vmul.f32 %v625, 1.442695
      %v663 = vpow.pop %v662
      %v664 = vmul.f32 %v626, 1.442695
      %v665 = vpow.pop %v664
      %v666 = vmul.f32 %v627, 1.442695
      %v667 = vpow.pop %v666
      %v668 = vmul.f32 %v628, 1.442695
      %v669 = vpow.pop %v668
      %v670 = vmul.f32 %v629, 1.442695
      %v671 = vpow.pop %v670
      %v672 = vmul.f32 %v630, 1.442695
      %v673 = vpow.pop %v672
      %v674 = vmul.f32 %v631, 1.442695
      %v675 = vpow.pop %v674
      %v676 = vmul.f32 %v632, 1.442695
      %v677 = vpow.pop %v676
      %v678 = vmul.f32 %v633, 1.442695
      %v679 = vpow.pop %v678
      %v680 = vmul.f32 %v634, 1.442695
      %v681 = vpow.pop %v680
      %v682 = vmul.f32 %v635, 1.442695
      %v683 = vpow.pop %v682
      %v684 = vmul.f32 %v636, 1.442695
      %v685 = vpow.pop %v684
      %v686 = vmul.f32 %v637, 1.442695
      %v687 = vpow.pop %v686
      %v688 = vmul.f32 %v638, 1.442695
      %v689 = vpow.pop %v688
      %v690 = vmul.f32 %v639, 1.442695
      %v691 = vpow.pop %v690
      %v692 = vmul.f32 %v640, 1.442695
      %v693 = vpow.pop %v692
      %v694 = vmul.f32 %v641, 1.442695
      %v695 = vpow.pop %v694
      %v696 = vmul.f32 %v642, 1.442695
      %v697 = vpow.pop %v696
      %v698 = vmul.f32 %v643, 1.442695
      %v699 = vpow.pop %v698
      %v700 = vmul.f32 %v644, 1.442695
      %v701 = vpow.pop %v700
      %v702 = vmul.f32 %v645, 1.442695
      %v703 = vpow.pop %v702
      %v704 = vmul.f32 %v646, 1.442695
      %v705 = vpow.pop %v704
      %v706 = vmul.f32 %v647, 1.442695
      %v707 = vpow.pop %v706
      %v708 = vmul.f32 %v648, 1.442695
      %v709 = vpow.pop %v708
      %v710 = vmul.f32 %v649, 1.442695
      %v711 = vpow.pop %v710
      %v712 = vmul.f32 %v650, 1.442695
      %v713 = vpow.pop %v712
      %v714 = vmul.f32 %v651, 1.442695
      %v715 = vpow.pop %v714
      %v716 = vadd.f32 %v653, 1.0
      %v717 = vadd.f32 %v655, 1.0
      %v718 = vadd.f32 %v657, 1.0
      %v719 = vadd.f32 %v659, 1.0
      %v720 = vadd.f32 %v661, 1.0
      %v721 = vadd.f32 %v663, 1.0
      %v722 = vadd.f32 %v665, 1.0
      %v723 = vadd.f32 %v667, 1.0
      %v724 = vadd.f32 %v669, 1.0
      %v725 = vadd.f32 %v671, 1.0
      %v726 = vadd.f32 %v673, 1.0
      %v727 = vadd.f32 %v675, 1.0
      %v728 = vadd.f32 %v677, 1.0
      %v729 = vadd.f32 %v679, 1.0
      %v730 = vadd.f32 %v681, 1.0
      %v731 = vadd.f32 %v683, 1.0
      %v732 = vadd.f32 %v685, 1.0
      %v733 = vadd.f32 %v687, 1.0
      %v734 = vadd.f32 %v689, 1.0
      %v735 = vadd.f32 %v691, 1.0
      %v736 = vadd.f32 %v693, 1.0
      %v737 = vadd.f32 %v695, 1.0
      %v738 = vadd.f32 %v697, 1.0
      %v739 = vadd.f32 %v699, 1.0
      %v740 = vadd.f32 %v701, 1.0
      %v741 = vadd.f32 %v703, 1.0
      %v742 = vadd.f32 %v705, 1.0
      %v743 = vadd.f32 %v707, 1.0
      %v744 = vadd.f32 %v709, 1.0
      %v745 = vadd.f32 %v711, 1.0
      %v746 = vadd.f32 %v713, 1.0
      %v747 = vadd.f32 %v715, 1.0
      %v748 = vrcp.pop %v716
      %v749 = vmul.f32 %v716, %v748
      %v750 = vsub.f32 1.0, %v749
      %v751 = vmul.f32 %v748, %v750
      %v752 = vadd.f32 %v748, %v751
      %vm753 = vweird.f32 %v716
      %vm754 = vweird.f32 %v748
      %vm755 = vmor %vm753, %vm754
      %v756 = vsel %vm755, %v748, %v752
      %v757 = vand.u32 2147483647, %v716
      %vm758 = vcmp.eq.f32.partialorder %v757, 8.507059e+37
      %v759 = vand.u32 %v716, 2147483648
      %v760 = vor.u32 1.1754944e-38, %v759
      %v761 = vsel %vm758, %v760, %v756
      %v762 = vmul.f32 1.0, %v761
      %v763 = vrcp.pop %v717
      %v764 = vmul.f32 %v717, %v763
      %v765 = vsub.f32 1.0, %v764
      %v766 = vmul.f32 %v763, %v765
      %v767 = vadd.f32 %v763, %v766
      %vm768 = vweird.f32 %v717
      %vm769 = vweird.f32 %v763
      %vm770 = vmor %vm768, %vm769
      %v771 = vsel %vm770, %v763, %v767
      %v772 = vand.u32 2147483647, %v717
      %vm773 = vcmp.eq.f32.partialorder %v772, 8.507059e+37
      %v774 = vand.u32 %v717, 2147483648
      %v775 = vor.u32 1.1754944e-38, %v774
      %v776 = vsel %vm773, %v775, %v771
      %v777 = vmul.f32 1.0, %v776
      %v778 = vrcp.pop %v718
      %v779 = vmul.f32 %v718, %v778
      %v780 = vsub.f32 1.0, %v779
      %v781 = vmul.f32 %v778, %v780
      %v782 = vadd.f32 %v778, %v781
      %vm783 = vweird.f32 %v718
      %vm784 = vweird.f32 %v778
      %vm785 = vmor %vm783, %vm784
      %v786 = vsel %vm785, %v778, %v782
      %v787 = vand.u32 2147483647, %v718
      %vm788 = vcmp.eq.f32.partialorder %v787, 8.507059e+37
      %v789 = vand.u32 %v718, 2147483648
      %v790 = vor.u32 1.1754944e-38, %v789
      %v791 = vsel %vm788, %v790, %v786
      %v792 = vmul.f32 1.0, %v791
      %v793 = vrcp.pop %v719
      %v794 = vmul.f32 %v719, %v793
      %v795 = vsub.f32 1.0, %v794
      %v796 = vmul.f32 %v793, %v795
      %v797 = vadd.f32 %v793, %v796
      %vm798 = vweird.f32 %v719
      %vm799 = vweird.f32 %v793
      %vm800 = vmor %vm798, %vm799
      %v801 = vsel %vm800, %v793, %v797
      %v802 = vand.u32 2147483647, %v719
      %vm803 = vcmp.eq.f32.partialorder %v802, 8.507059e+37
      %v804 = vand.u32 %v719, 2147483648
      %v805 = vor.u32 1.1754944e-38, %v804
      %v806 = vsel %vm803, %v805, %v801
      %v807 = vmul.f32 1.0, %v806
      %v808 = vrcp.pop %v720
      %v809 = vmul.f32 %v720, %v808
      %v810 = vsub.f32 1.0, %v809
      %v811 = vmul.f32 %v808, %v810
      %v812 = vadd.f32 %v808, %v811
      %vm813 = vweird.f32 %v720
      %vm814 = vweird.f32 %v808
      %vm815 = vmor %vm813, %vm814
      %v816 = vsel %vm815, %v808, %v812
      %v817 = vand.u32 2147483647, %v720
      %vm818 = vcmp.eq.f32.partialorder %v817, 8.507059e+37
      %v819 = vand.u32 %v720, 2147483648
      %v820 = vor.u32 1.1754944e-38, %v819
      %v821 = vsel %vm818, %v820, %v816
      %v822 = vmul.f32 1.0, %v821
      %v823 = vrcp.pop %v721
      %v824 = vmul.f32 %v721, %v823
      %v825 = vsub.f32 1.0, %v824
      %v826 = vmul.f32 %v823, %v825
      %v827 = vadd.f32 %v823, %v826
      %vm828 = vweird.f32 %v721
      %vm829 = vweird.f32 %v823
      %vm830 = vmor %vm828, %vm829
      %v831 = vsel %vm830, %v823, %v827
      %v832 = vand.u32 2147483647, %v721
      %vm833 = vcmp.eq.f32.partialorder %v832, 8.507059e+37
      %v834 = vand.u32 %v721, 2147483648
      %v835 = vor.u32 1.1754944e-38, %v834
      %v836 = vsel %vm833, %v835, %v831
      %v837 = vmul.f32 1.0, %v836
      %v838 = vrcp.pop %v722
      %v839 = vmul.f32 %v722, %v838
      %v840 = vsub.f32 1.0, %v839
      %v841 = vmul.f32 %v838, %v840
      %v842 = vadd.f32 %v838, %v841
      %vm843 = vweird.f32 %v722
      %vm844 = vweird.f32 %v838
      %vm845 = vmor %vm843, %vm844
      %v846 = vsel %vm845, %v838, %v842
      %v847 = vand.u32 2147483647, %v722
      %vm848 = vcmp.eq.f32.partialorder %v847, 8.507059e+37
      %v849 = vand.u32 %v722, 2147483648
      %v850 = vor.u32 1.1754944e-38, %v849
      %v851 = vsel %vm848, %v850, %v846
      %v852 = vmul.f32 1.0, %v851
      %v853 = vrcp.pop %v723
      %v854 = vmul.f32 %v723, %v853
      %v855 = vsub.f32 1.0, %v854
      %v856 = vmul.f32 %v853, %v855
      %v857 = vadd.f32 %v853, %v856
      %vm858 = vweird.f32 %v723
      %vm859 = vweird.f32 %v853
      %vm860 = vmor %vm858, %vm859
      %v861 = vsel %vm860, %v853, %v857
      %v862 = vand.u32 2147483647, %v723
      %vm863 = vcmp.eq.f32.partialorder %v862, 8.507059e+37
      %v864 = vand.u32 %v723, 2147483648
      %v865 = vor.u32 1.1754944e-38, %v864
      %v866 = vsel %vm863, %v865, %v861
      %v867 = vmul.f32 1.0, %v866
      %v868 = vrcp.pop %v724
      %v869 = vmul.f32 %v724, %v868
      %v870 = vsub.f32 1.0, %v869
      %v871 = vmul.f32 %v868, %v870
      %v872 = vadd.f32 %v868, %v871
      %vm873 = vweird.f32 %v724
      %vm874 = vweird.f32 %v868
      %vm875 = vmor %vm873, %vm874
      %v876 = vsel %vm875, %v868, %v872
      %v877 = vand.u32 2147483647, %v724
      %vm878 = vcmp.eq.f32.partialorder %v877, 8.507059e+37
      %v879 = vand.u32 %v724, 2147483648
      %v880 = vor.u32 1.1754944e-38, %v879
      %v881 = vsel %vm878, %v880, %v876
      %v882 = vmul.f32 1.0, %v881
      %v883 = vrcp.pop %v725
      %v884 = vmul.f32 %v725, %v883
      %v885 = vsub.f32 1.0, %v884
      %v886 = vmul.f32 %v883, %v885
      %v887 = vadd.f32 %v883, %v886
      %vm888 = vweird.f32 %v725
      %vm889 = vweird.f32 %v883
      %vm890 = vmor %vm888, %vm889
      %v891 = vsel %vm890, %v883, %v887
      %v892 = vand.u32 2147483647, %v725
      %vm893 = vcmp.eq.f32.partialorder %v892, 8.507059e+37
      %v894 = vand.u32 %v725, 2147483648
      %v895 = vor.u32 1.1754944e-38, %v894
      %v896 = vsel %vm893, %v895, %v891
      %v897 = vmul.f32 1.0, %v896
      %v898 = vrcp.pop %v726
      %v899 = vmul.f32 %v726, %v898
      %v900 = vsub.f32 1.0, %v899
      %v901 = vmul.f32 %v898, %v900
      %v902 = vadd.f32 %v898, %v901
      %vm903 = vweird.f32 %v726
      %vm904 = vweird.f32 %v898
      %vm905 = vmor %vm903, %vm904
      %v906 = vsel %vm905, %v898, %v902
      %v907 = vand.u32 2147483647, %v726
      %vm908 = vcmp.eq.f32.partialorder %v907, 8.507059e+37
      %v909 = vand.u32 %v726, 2147483648
      %v910 = vor.u32 1.1754944e-38, %v909
      %v911 = vsel %vm908, %v910, %v906
      %v912 = vmul.f32 1.0, %v911
      %v913 = vrcp.pop %v727
      %v914 = vmul.f32 %v727, %v913
      %v915 = vsub.f32 1.0, %v914
      %v916 = vmul.f32 %v913, %v915
      %v917 = vadd.f32 %v913, %v916
      %vm918 = vweird.f32 %v727
      %vm919 = vweird.f32 %v913
      %vm920 = vmor %vm918, %vm919
      %v921 = vsel %vm920, %v913, %v917
      %v922 = vand.u32 2147483647, %v727
      %vm923 = vcmp.eq.f32.partialorder %v922, 8.507059e+37
      %v924 = vand.u32 %v727, 2147483648
      %v925 = vor.u32 1.1754944e-38, %v924
      %v926 = vsel %vm923, %v925, %v921
      %v927 = vmul.f32 1.0, %v926
      %v928 = vrcp.pop %v728
      %v929 = vmul.f32 %v728, %v928
      %v930 = vsub.f32 1.0, %v929
      %v931 = vmul.f32 %v928, %v930
      %v932 = vadd.f32 %v928, %v931
      %vm933 = vweird.f32 %v728
      %vm934 = vweird.f32 %v928
      %vm935 = vmor %vm933, %vm934
      %v936 = vsel %vm935, %v928, %v932
      %v937 = vand.u32 2147483647, %v728
      %vm938 = vcmp.eq.f32.partialorder %v937, 8.507059e+37
      %v939 = vand.u32 %v728, 2147483648
      %v940 = vor.u32 1.1754944e-38, %v939
      %v941 = vsel %vm938, %v940, %v936
      %v942 = vmul.f32 1.0, %v941
      %v943 = vrcp.pop %v729
      %v944 = vmul.f32 %v729, %v943
      %v945 = vsub.f32 1.0, %v944
      %v946 = vmul.f32 %v943, %v945
      %v947 = vadd.f32 %v943, %v946
      %vm948 = vweird.f32 %v729
      %vm949 = vweird.f32 %v943
      %vm950 = vmor %vm948, %vm949
      %v951 = vsel %vm950, %v943, %v947
      %v952 = vand.u32 2147483647, %v729
      %vm953 = vcmp.eq.f32.partialorder %v952, 8.507059e+37
      %v954 = vand.u32 %v729, 2147483648
      %v955 = vor.u32 1.1754944e-38, %v954
      %v956 = vsel %vm953, %v955, %v951
      %v957 = vmul.f32 1.0, %v956
      %v958 = vrcp.pop %v730
      %v959 = vmul.f32 %v730, %v958
      %v960 = vsub.f32 1.0, %v959
      %v961 = vmul.f32 %v958, %v960
      %v962 = vadd.f32 %v958, %v961
      %vm963 = vweird.f32 %v730
      %vm964 = vweird.f32 %v958
      %vm965 = vmor %vm963, %vm964
      %v966 = vsel %vm965, %v958, %v962
      %v967 = vand.u32 2147483647, %v730
      %vm968 = vcmp.eq.f32.partialorder %v967, 8.507059e+37
      %v969 = vand.u32 %v730, 2147483648
      %v970 = vor.u32 1.1754944e-38, %v969
      %v971 = vsel %vm968, %v970, %v966
      %v972 = vmul.f32 1.0, %v971
      %v973 = vrcp.pop %v731
      %v974 = vmul.f32 %v731, %v973
      %v975 = vsub.f32 1.0, %v974
      %v976 = vmul.f32 %v973, %v975
      %v977 = vadd.f32 %v973, %v976
      %vm978 = vweird.f32 %v731
      %vm979 = vweird.f32 %v973
      %vm980 = vmor %vm978, %vm979
      %v981 = vsel %vm980, %v973, %v977
      %v982 = vand.u32 2147483647, %v731
      %vm983 = vcmp.eq.f32.partialorder %v982, 8.507059e+37
      %v984 = vand.u32 %v731, 2147483648
      %v985 = vor.u32 1.1754944e-38, %v984
      %v986 = vsel %vm983, %v985, %v981
      %v987 = vmul.f32 1.0, %v986
      %v988 = vrcp.pop %v732
      %v989 = vmul.f32 %v732, %v988
      %v990 = vsub.f32 1.0, %v989
      %v991 = vmul.f32 %v988, %v990
      %v992 = vadd.f32 %v988, %v991
      %vm993 = vweird.f32 %v732
      %vm994 = vweird.f32 %v988
      %vm995 = vmor %vm993, %vm994
      %v996 = vsel %vm995, %v988, %v992
      %v997 = vand.u32 2147483647, %v732
      %vm998 = vcmp.eq.f32.partialorder %v997, 8.507059e+37
      %v999 = vand.u32 %v732, 2147483648
      %v1000 = vor.u32 1.1754944e-38, %v999
      %v1001 = vsel %vm998, %v1000, %v996
      %v1002 = vmul.f32 1.0, %v1001
      %v1003 = vrcp.pop %v733
      %v1004 = vmul.f32 %v733, %v1003
      %v1005 = vsub.f32 1.0, %v1004
      %v1006 = vmul.f32 %v1003, %v1005
      %v1007 = vadd.f32 %v1003, %v1006
      %vm1008 = vweird.f32 %v733
      %vm1009 = vweird.f32 %v1003
      %vm1010 = vmor %vm1008, %vm1009
      %v1011 = vsel %vm1010, %v1003, %v1007
      %v1012 = vand.u32 2147483647, %v733
      %vm1013 = vcmp.eq.f32.partialorder %v1012, 8.507059e+37
      %v1014 = vand.u32 %v733, 2147483648
      %v1015 = vor.u32 1.1754944e-38, %v1014
      %v1016 = vsel %vm1013, %v1015, %v1011
      %v1017 = vmul.f32 1.0, %v1016
      %v1018 = vrcp.pop %v734
      %v1019 = vmul.f32 %v734, %v1018
      %v1020 = vsub.f32 1.0, %v1019
      %v1021 = vmul.f32 %v1018, %v1020
      %v1022 = vadd.f32 %v1018, %v1021
      %vm1023 = vweird.f32 %v734
      %vm1024 = vweird.f32 %v1018
      %vm1025 = vmor %vm1023, %vm1024
      %v1026 = vsel %vm1025, %v1018, %v1022
      %v1027 = vand.u32 2147483647, %v734
      %vm1028 = vcmp.eq.f32.partialorder %v1027, 8.507059e+37
      %v1029 = vand.u32 %v734, 2147483648
      %v1030 = vor.u32 1.1754944e-38, %v1029
      %v1031 = vsel %vm1028, %v1030, %v1026
      %v1032 = vmul.f32 1.0, %v1031
      %v1033 = vrcp.pop %v735
      %v1034 = vmul.f32 %v735, %v1033
      %v1035 = vsub.f32 1.0, %v1034
      %v1036 = vmul.f32 %v1033, %v1035
      %v1037 = vadd.f32 %v1033, %v1036
      %vm1038 = vweird.f32 %v735
      %vm1039 = vweird.f32 %v1033
      %vm1040 = vmor %vm1038, %vm1039
      %v1041 = vsel %vm1040, %v1033, %v1037
      %v1042 = vand.u32 2147483647, %v735
      %vm1043 = vcmp.eq.f32.partialorder %v1042, 8.507059e+37
      %v1044 = vand.u32 %v735, 2147483648
      %v1045 = vor.u32 1.1754944e-38, %v1044
      %v1046 = vsel %vm1043, %v1045, %v1041
      %v1047 = vmul.f32 1.0, %v1046
      %v1048 = vrcp.pop %v736
      %v1049 = vmul.f32 %v736, %v1048
      %v1050 = vsub.f32 1.0, %v1049
      %v1051 = vmul.f32 %v1048, %v1050
      %v1052 = vadd.f32 %v1048, %v1051
      %vm1053 = vweird.f32 %v736
      %vm1054 = vweird.f32 %v1048
      %vm1055 = vmor %vm1053, %vm1054
      %v1056 = vsel %vm1055, %v1048, %v1052
      %v1057 = vand.u32 2147483647, %v736
      %vm1058 = vcmp.eq.f32.partialorder %v1057, 8.507059e+37
      %v1059 = vand.u32 %v736, 2147483648
      %v1060 = vor.u32 1.1754944e-38, %v1059
      %v1061 = vsel %vm1058, %v1060, %v1056
      %v1062 = vmul.f32 1.0, %v1061
      %v1063 = vrcp.pop %v737
      %v1064 = vmul.f32 %v737, %v1063
      %v1065 = vsub.f32 1.0, %v1064
      %v1066 = vmul.f32 %v1063, %v1065
      %v1067 = vadd.f32 %v1063, %v1066
      %vm1068 = vweird.f32 %v737
      %vm1069 = vweird.f32 %v1063
      %vm1070 = vmor %vm1068, %vm1069
      %v1071 = vsel %vm1070, %v1063, %v1067
      %v1072 = vand.u32 2147483647, %v737
      %vm1073 = vcmp.eq.f32.partialorder %v1072, 8.507059e+37
      %v1074 = vand.u32 %v737, 2147483648
      %v1075 = vor.u32 1.1754944e-38, %v1074
      %v1076 = vsel %vm1073, %v1075, %v1071
      %v1077 = vmul.f32 1.0, %v1076
      %v1078 = vrcp.pop %v738
      %v1079 = vmul.f32 %v738, %v1078
      %v1080 = vsub.f32 1.0, %v1079
      %v1081 = vmul.f32 %v1078, %v1080
      %v1082 = vadd.f32 %v1078, %v1081
      %vm1083 = vweird.f32 %v738
      %vm1084 = vweird.f32 %v1078
      %vm1085 = vmor %vm1083, %vm1084
      %v1086 = vsel %vm1085, %v1078, %v1082
      %v1087 = vand.u32 2147483647, %v738
      %vm1088 = vcmp.eq.f32.partialorder %v1087, 8.507059e+37
      %v1089 = vand.u32 %v738, 2147483648
      %v1090 = vor.u32 1.1754944e-38, %v1089
      %v1091 = vsel %vm1088, %v1090, %v1086
      %v1092 = vmul.f32 1.0, %v1091
      %v1093 = vrcp.pop %v739
      %v1094 = vmul.f32 %v739, %v1093
      %v1095 = vsub.f32 1.0, %v1094
      %v1096 = vmul.f32 %v1093, %v1095
      %v1097 = vadd.f32 %v1093, %v1096
      %vm1098 = vweird.f32 %v739
      %vm1099 = vweird.f32 %v1093
      %vm1100 = vmor %vm1098, %vm1099
      %v1101 = vsel %vm1100, %v1093, %v1097
      %v1102 = vand.u32 2147483647, %v739
      %vm1103 = vcmp.eq.f32.partialorder %v1102, 8.507059e+37
      %v1104 = vand.u32 %v739, 2147483648
      %v1105 = vor.u32 1.1754944e-38, %v1104
      %v1106 = vsel %vm1103, %v1105, %v1101
      %v1107 = vmul.f32 1.0, %v1106
      %v1108 = vrcp.pop %v740
      %v1109 = vmul.f32 %v740, %v1108
      %v1110 = vsub.f32 1.0, %v1109
      %v1111 = vmul.f32 %v1108, %v1110
      %v1112 = vadd.f32 %v1108, %v1111
      %vm1113 = vweird.f32 %v740
      %vm1114 = vweird.f32 %v1108
      %vm1115 = vmor %vm1113, %vm1114
      %v1116 = vsel %vm1115, %v1108, %v1112
      %v1117 = vand.u32 2147483647, %v740
      %vm1118 = vcmp.eq.f32.partialorder %v1117, 8.507059e+37
      %v1119 = vand.u32 %v740, 2147483648
      %v1120 = vor.u32 1.1754944e-38, %v1119
      %v1121 = vsel %vm1118, %v1120, %v1116
      %v1122 = vmul.f32 1.0, %v1121
      %v1123 = vrcp.pop %v741
      %v1124 = vmul.f32 %v741, %v1123
      %v1125 = vsub.f32 1.0, %v1124
      %v1126 = vmul.f32 %v1123, %v1125
      %v1127 = vadd.f32 %v1123, %v1126
      %vm1128 = vweird.f32 %v741
      %vm1129 = vweird.f32 %v1123
      %vm1130 = vmor %vm1128, %vm1129
      %v1131 = vsel %vm1130, %v1123, %v1127
      %v1132 = vand.u32 2147483647, %v741
      %vm1133 = vcmp.eq.f32.partialorder %v1132, 8.507059e+37
      %v1134 = vand.u32 %v741, 2147483648
      %v1135 = vor.u32 1.1754944e-38, %v1134
      %v1136 = vsel %vm1133, %v1135, %v1131
      %v1137 = vmul.f32 1.0, %v1136
      %v1138 = vrcp.pop %v742
      %v1139 = vmul.f32 %v742, %v1138
      %v1140 = vsub.f32 1.0, %v1139
      %v1141 = vmul.f32 %v1138, %v1140
      %v1142 = vadd.f32 %v1138, %v1141
      %vm1143 = vweird.f32 %v742
      %vm1144 = vweird.f32 %v1138
      %vm1145 = vmor %vm1143, %vm1144
      %v1146 = vsel %vm1145, %v1138, %v1142
      %v1147 = vand.u32 2147483647, %v742
      %vm1148 = vcmp.eq.f32.partialorder %v1147, 8.507059e+37
      %v1149 = vand.u32 %v742, 2147483648
      %v1150 = vor.u32 1.1754944e-38, %v1149
      %v1151 = vsel %vm1148, %v1150, %v1146
      %v1152 = vmul.f32 1.0, %v1151
      %v1153 = vrcp.pop %v743
      %v1154 = vmul.f32 %v743, %v1153
      %v1155 = vsub.f32 1.0, %v1154
      %v1156 = vmul.f32 %v1153, %v1155
      %v1157 = vadd.f32 %v1153, %v1156
      %vm1158 = vweird.f32 %v743
      %vm1159 = vweird.f32 %v1153
      %vm1160 = vmor %vm1158, %vm1159
      %v1161 = vsel %vm1160, %v1153, %v1157
      %v1162 = vand.u32 2147483647, %v743
      %vm1163 = vcmp.eq.f32.partialorder %v1162, 8.507059e+37
      %v1164 = vand.u32 %v743, 2147483648
      %v1165 = vor.u32 1.1754944e-38, %v1164
      %v1166 = vsel %vm1163, %v1165, %v1161
      %v1167 = vmul.f32 1.0, %v1166
      %v1168 = vrcp.pop %v744
      %v1169 = vmul.f32 %v744, %v1168
      %v1170 = vsub.f32 1.0, %v1169
      %v1171 = vmul.f32 %v1168, %v1170
      %v1172 = vadd.f32 %v1168, %v1171
      %vm1173 = vweird.f32 %v744
      %vm1174 = vweird.f32 %v1168
      %vm1175 = vmor %vm1173, %vm1174
      %v1176 = vsel %vm1175, %v1168, %v1172
      %v1177 = vand.u32 2147483647, %v744
      %vm1178 = vcmp.eq.f32.partialorder %v1177, 8.507059e+37
      %v1179 = vand.u32 %v744, 2147483648
      %v1180 = vor.u32 1.1754944e-38, %v1179
      %v1181 = vsel %vm1178, %v1180, %v1176
      %v1182 = vmul.f32 1.0, %v1181
      %v1183 = vrcp.pop %v745
      %v1184 = vmul.f32 %v745, %v1183
      %v1185 = vsub.f32 1.0, %v1184
      %v1186 = vmul.f32 %v1183, %v1185
      %v1187 = vadd.f32 %v1183, %v1186
      %vm1188 = vweird.f32 %v745
      %vm1189 = vweird.f32 %v1183
      %vm1190 = vmor %vm1188, %vm1189
      %v1191 = vsel %vm1190, %v1183, %v1187
      %v1192 = vand.u32 2147483647, %v745
      %vm1193 = vcmp.eq.f32.partialorder %v1192, 8.507059e+37
      %v1194 = vand.u32 %v745, 2147483648
      %v1195 = vor.u32 1.1754944e-38, %v1194
      %v1196 = vsel %vm1193, %v1195, %v1191
      %v1197 = vmul.f32 1.0, %v1196
      %v1198 = vrcp.pop %v746
      %v1199 = vmul.f32 %v746, %v1198
      %v1200 = vsub.f32 1.0, %v1199
      %v1201 = vmul.f32 %v1198, %v1200
      %v1202 = vadd.f32 %v1198, %v1201
      %vm1203 = vweird.f32 %v746
      %vm1204 = vweird.f32 %v1198
      %vm1205 = vmor %vm1203, %vm1204
      %v1206 = vsel %vm1205, %v1198, %v1202
      %v1207 = vand.u32 2147483647, %v746
      %vm1208 = vcmp.eq.f32.partialorder %v1207, 8.507059e+37
      %v1209 = vand.u32 %v746, 2147483648
      %v1210 = vor.u32 1.1754944e-38, %v1209
      %v1211 = vsel %vm1208, %v1210, %v1206
      %v1212 = vmul.f32 1.0, %v1211
      %v1213 = vrcp.pop %v747
      %v1214 = vmul.f32 %v747, %v1213
      %v1215 = vsub.f32 1.0, %v1214
      %v1216 = vmul.f32 %v1213, %v1215
      %v1217 = vadd.f32 %v1213, %v1216
      %vm1218 = vweird.f32 %v747
      %vm1219 = vweird.f32 %v1213
      %vm1220 = vmor %vm1218, %vm1219
      %v1221 = vsel %vm1220, %v1213, %v1217
      %v1222 = vand.u32 2147483647, %v747
      %vm1223 = vcmp.eq.f32.partialorder %v1222, 8.507059e+37
      %v1224 = vand.u32 %v747, 2147483648
      %v1225 = vor.u32 1.1754944e-38, %v1224
      %v1226 = vsel %vm1223, %v1225, %v1221
      %v1227 = vmul.f32 1.0, %v1226
      %v1228 = vmul.f32 %v541, %v762
      %v1229 = vmul.f32 %v543, %v777
      %v1230 = vmul.f32 %v546, %v792
      %v1231 = vmul.f32 %v548, %v807
      %v1232 = vmul.f32 %v551, %v822
      %v1233 = vmul.f32 %v553, %v837
      %v1234 = vmul.f32 %v556, %v852
      %v1235 = vmul.f32 %v558, %v867
      %v1236 = vmul.f32 %v561, %v882
      %v1237 = vmul.f32 %v563, %v897
      %v1238 = vmul.f32 %v566, %v912
      %v1239 = vmul.f32 %v568, %v927
      %v1240 = vmul.f32 %v571, %v942
      %v1241 = vmul.f32 %v573, %v957
      %v1242 = vmul.f32 %v576, %v972
      %v1243 = vmul.f32 %v578, %v987
      %v1244 = vmul.f32 %v581, %v1002
      %v1245 = vmul.f32 %v583, %v1017
      %v1246 = vmul.f32 %v586, %v1032
      %v1247 = vmul.f32 %v588, %v1047
      %v1248 = vmul.f32 %v591, %v1062
      %v1249 = vmul.f32 %v593, %v1077
      %v1250 = vmul.f32 %v596, %v1092
      %v1251 = vmul.f32 %v598, %v1107
      %v1252 = vmul.f32 %v601, %v1122
      %v1253 = vmul.f32 %v603, %v1137
      %v1254 = vmul.f32 %v606, %v1152
      %v1255 = vmul.f32 %v608, %v1167
      %v1256 = vmul.f32 %v611, %v1182
      %v1257 = vmul.f32 %v613, %v1197
      %v1258 = vmul.f32 %v616, %v1212
      %v1259 = vmul.f32 %v618, %v1227
      %1260 = vst.msk [vmem:[#allocation2 + $0x20] sm:$0xff] %vm253, %v1228
      %1261 = vst.msk [vmem:[#allocation2 + $0x28] sm:$0xff] %vm253, %v1229
      %1262 = vst.msk [vmem:[#allocation2 + $0x30] sm:$0xff] %vm253, %v1230
      %1263 = vst.msk [vmem:[#allocation2 + $0x38] sm:$0xff] %vm253, %v1231
      %1264 = vst.msk [vmem:[#allocation2 + $0x40] sm:$0xff] %vm253, %v1232
      %1265 = vst.msk [vmem:[#allocation2 + $0x48] sm:$0xff] %vm253, %v1233
      %1266 = vst.msk [vmem:[#allocation2 + $0x50] sm:$0xff] %vm253, %v1234
      %1267 = vst.msk [vmem:[#allocation2 + $0x58] sm:$0xff] %vm253, %v1235
      %1268 = vst.msk [vmem:[#allocation2 + $0x60] sm:$0xff] %vm253, %v1236
      %1269 = vst.msk [vmem:[#allocation2 + $0x68] sm:$0xff] %vm253, %v1237
      %1270 = vst.msk [vmem:[#allocation2 + $0x70] sm:$0xff] %vm253, %v1238
      %1271 = vst.msk [vmem:[#allocation2 + $0x78] sm:$0xff] %vm253, %v1239
      %1272 = vst.msk [vmem:[#allocation2 + $0x80] sm:$0xff] %vm253, %v1240
      %1273 = vst.msk [vmem:[#allocation2 + $0x88] sm:$0xff] %vm253, %v1241
      %1274 = vst.msk [vmem:[#allocation2 + $0x90] sm:$0xff] %vm253, %v1242
      %1275 = vst.msk [vmem:[#allocation2 + $0x98] sm:$0xff] %vm253, %v1243
      %1276 = vst.msk [vmem:[#allocation2 + $0xa0] sm:$0xff] %vm253, %v1244
      %1277 = vst.msk [vmem:[#allocation2 + $0xa8] sm:$0xff] %vm253, %v1245
      %1278 = vst.msk [vmem:[#allocation2 + $0xb0] sm:$0xff] %vm253, %v1246
      %1279 = vst.msk [vmem:[#allocation2 + $0xb8] sm:$0xff] %vm253, %v1247
      %1280 = vst.msk [vmem:[#allocation2 + $0xc0] sm:$0xff] %vm253, %v1248
      %1281 = vst.msk [vmem:[#allocation2 + $0xc8] sm:$0xff] %vm253, %v1249
      %1282 = vst.msk [vmem:[#allocation2 + $0xd0] sm:$0xff] %vm253, %v1250
      %1283 = vst.msk [vmem:[#allocation2 + $0xd8] sm:$0xff] %vm253, %v1251
      %1284 = vst.msk [vmem:[#allocation2 + $0xe0] sm:$0xff] %vm253, %v1252
      %1285 = vst.msk [vmem:[#allocation2 + $0xe8] sm:$0xff] %vm253, %v1253
      %1286 = vst.msk [vmem:[#allocation2 + $0xf0] sm:$0xff] %vm253, %v1254
      %1287 = vst.msk [vmem:[#allocation2 + $0xf8] sm:$0xff] %vm253, %v1255
      %1288 = vst.msk [vmem:[#allocation2 + $0x100] sm:$0xff] %vm253, %v1256
      %1289 = vst.msk [vmem:[#allocation2 + $0x108] sm:$0xff] %vm253, %v1257
      %1290 = vst.msk [vmem:[#allocation2 + $0x110] sm:$0xff] %vm253, %v1258
      %1291 = vst.msk [vmem:[#allocation2 + $0x118] sm:$0xff] %vm253, %v1259
      %v1292 = vld [vmem:[#allocation2] sm:$0xff]
      %v1293 = vld [vmem:[#allocation2 + $0x8] sm:$0xff]
      %v1294 = vld [vmem:[#allocation2 + $0x10] sm:$0xff]
      %v1295 = vld [vmem:[#allocation2 + $0x18] sm:$0xff]
      %v1296 = vld [vmem:[#allocation2 + $0x20] sm:$0xff]
      %v1297 = vld [vmem:[#allocation2 + $0x28] sm:$0xff]
      %v1298 = vld [vmem:[#allocation2 + $0x30] sm:$0xff]
      %v1299 = vld [vmem:[#allocation2 + $0x38] sm:$0xff]
      %v1300 = vld [vmem:[#allocation2 + $0x40] sm:$0xff]
      %v1301 = vld [vmem:[#allocation2 + $0x48] sm:$0xff]
      %v1302 = vld [vmem:[#allocation2 + $0x50] sm:$0xff]
      %v1303 = vld [vmem:[#allocation2 + $0x58] sm:$0xff]
      %v1304 = vld [vmem:[#allocation2 + $0x60] sm:$0xff]
      %v1305 = vld [vmem:[#allocation2 + $0x68] sm:$0xff]
      %v1306 = vld [vmem:[#allocation2 + $0x70] sm:$0xff]
      %v1307 = vld [vmem:[#allocation2 + $0x78] sm:$0xff]
      %v1308 = vld [vmem:[#allocation2 + $0x80] sm:$0xff]
      %v1309 = vld [vmem:[#allocation2 + $0x88] sm:$0xff]
      %v1310 = vld [vmem:[#allocation2 + $0x90] sm:$0xff]
      %v1311 = vld [vmem:[#allocation2 + $0x98] sm:$0xff]
      %v1312 = vld [vmem:[#allocation2 + $0xa0] sm:$0xff]
      %v1313 = vld [vmem:[#allocation2 + $0xa8] sm:$0xff]
      %v1314 = vld [vmem:[#allocation2 + $0xb0] sm:$0xff]
      %v1315 = vld [vmem:[#allocation2 + $0xb8] sm:$0xff]
      %v1316 = vld [vmem:[#allocation2 + $0xc0] sm:$0xff]
      %v1317 = vld [vmem:[#allocation2 + $0xc8] sm:$0xff]
      %v1318 = vld [vmem:[#allocation2 + $0xd0] sm:$0xff]
      %v1319 = vld [vmem:[#allocation2 + $0xd8] sm:$0xff]
      %v1320 = vld [vmem:[#allocation2 + $0xe0] sm:$0xff]
      %v1321 = vld [vmem:[#allocation2 + $0xe8] sm:$0xff]
      %v1322 = vld [vmem:[#allocation2 + $0xf0] sm:$0xff]
      %v1323 = vld [vmem:[#allocation2 + $0xf8] sm:$0xff]
      %v1324 = vmax.f32 %v1228, %v1292
      %v1325 = vmax.f32 %v1229, %v1293
      %v1326 = vmax.f32 %v1230, %v1294
      %v1327 = vmax.f32 %v1231, %v1295
      %v1328 = vmax.f32 %v1232, %v1296
      %v1329 = vmax.f32 %v1233, %v1297
      %v1330 = vmax.f32 %v1234, %v1298
      %v1331 = vmax.f32 %v1235, %v1299
      %v1332 = vmax.f32 %v1236, %v1300
      %v1333 = vmax.f32 %v1237, %v1301
      %v1334 = vmax.f32 %v1238, %v1302
      %v1335 = vmax.f32 %v1239, %v1303
      %v1336 = vmax.f32 %v1240, %v1304
      %v1337 = vmax.f32 %v1241, %v1305
      %v1338 = vmax.f32 %v1242, %v1306
      %v1339 = vmax.f32 %v1243, %v1307
      %v1340 = vmax.f32 %v1244, %v1308
      %v1341 = vmax.f32 %v1245, %v1309
      %v1342 = vmax.f32 %v1246, %v1310
      %v1343 = vmax.f32 %v1247, %v1311
      %v1344 = vmax.f32 %v1248, %v1312
      %v1345 = vmax.f32 %v1249, %v1313
      %v1346 = vmax.f32 %v1250, %v1314
      %v1347 = vmax.f32 %v1251, %v1315
      %v1348 = vmax.f32 %v1252, %v1316
      %v1349 = vmax.f32 %v1253, %v1317
      %v1350 = vmax.f32 %v1254, %v1318
      %v1351 = vmax.f32 %v1255, %v1319
      %v1352 = vmax.f32 %v1256, %v1320
      %v1353 = vmax.f32 %v1257, %v1321
      %v1354 = vmax.f32 %v1258, %v1322
      %v1355 = vmax.f32 %v1259, %v1323
      %v1356 = vld [vmem:[#allocation2 + $0x100] sm:$0xff]
      %v1357 = vld [vmem:[#allocation2 + $0x108] sm:$0xff]
      %v1358 = vmax.f32 %v1324, %v1294
      %v1359 = vmax.f32 %v1325, %v1295
      %v1360 = vmax.f32 %v1326, %v1296
      %v1361 = vmax.f32 %v1327, %v1297
      %v1362 = vmax.f32 %v1328, %v1298
      %v1363 = vmax.f32 %v1329, %v1299
      %v1364 = vmax.f32 %v1330, %v1300
      %v1365 = vmax.f32 %v1331, %v1301
      %v1366 = vmax.f32 %v1332, %v1302
      %v1367 = vmax.f32 %v1333, %v1303
      %v1368 = vmax.f32 %v1334, %v1304
      %v1369 = vmax.f32 %v1335, %v1305
      %v1370 = vmax.f32 %v1336, %v1306
      %v1371 = vmax.f32 %v1337, %v1307
      %v1372 = vmax.f32 %v1338, %v1308
      %v1373 = vmax.f32 %v1339, %v1309
      %v1374 = vmax.f32 %v1340, %v1310
      %v1375 = vmax.f32 %v1341, %v1311
      %v1376 = vmax.f32 %v1342, %v1312
      %v1377 = vmax.f32 %v1343, %v1313
      %v1378 = vmax.f32 %v1344, %v1314
      %v1379 = vmax.f32 %v1345, %v1315
      %v1380 = vmax.f32 %v1346, %v1316
      %v1381 = vmax.f32 %v1347, %v1317
      %v1382 = vmax.f32 %v1348, %v1318
      %v1383 = vmax.f32 %v1349, %v1319
      %v1384 = vmax.f32 %v1350, %v1320
      %v1385 = vmax.f32 %v1351, %v1321
      %v1386 = vmax.f32 %v1352, %v1322
      %v1387 = vmax.f32 %v1353, %v1323
      %v1388 = vmax.f32 %v1354, %v1356
      %v1389 = vmax.f32 %v1355, %v1357
      %v1390 = vld [vmem:[#allocation2 + $0x110] sm:$0xff]
      %v1391 = vld [vmem:[#allocation2 + $0x118] sm:$0xff]
      %v1392 = vld [vmem:[#allocation2 + $0x120] sm:$0xff]
      %v1393 = vld [vmem:[#allocation2 + $0x128] sm:$0xff]
      %v1394 = vmax.f32 %v1358, %v1298
      %v1395 = vmax.f32 %v1359, %v1299
      %v1396 = vmax.f32 %v1360, %v1300
      %v1397 = vmax.f32 %v1361, %v1301
      %v1398 = vmax.f32 %v1362, %v1302
      %v1399 = vmax.f32 %v1363, %v1303
      %v1400 = vmax.f32 %v1364, %v1304
      %v1401 = vmax.f32 %v1365, %v1305
      %v1402 = vmax.f32 %v1366, %v1306
      %v1403 = vmax.f32 %v1367, %v1307
      %v1404 = vmax.f32 %v1368, %v1308
      %v1405 = vmax.f32 %v1369, %v1309
      %v1406 = vmax.f32 %v1370, %v1310
      %v1407 = vmax.f32 %v1371, %v1311
      %v1408 = vmax.f32 %v1372, %v1312
      %v1409 = vmax.f32 %v1373, %v1313
      %v1410 = vmax.f32 %v1374, %v1314
      %v1411 = vmax.f32 %v1375, %v1315
      %v1412 = vmax.f32 %v1376, %v1316
      %v1413 = vmax.f32 %v1377, %v1317
      %v1414 = vmax.f32 %v1378, %v1318
      %v1415 = vmax.f32 %v1379, %v1319
      %v1416 = vmax.f32 %v1380, %v1320
      %v1417 = vmax.f32 %v1381, %v1321
      %v1418 = vmax.f32 %v1382, %v1322
      %v1419 = vmax.f32 %v1383, %v1323
      %v1420 = vmax.f32 %v1384, %v1356
      %v1421 = vmax.f32 %v1385, %v1357
      %v1422 = vmax.f32 %v1386, %v1390
      %v1423 = vmax.f32 %v1387, %v1391
      %v1424 = vmax.f32 %v1388, %v1392
      %v1425 = vmax.f32 %v1389, %v1393
      %v1426 = vld [vmem:[#allocation2 + $0x130] sm:$0xff]
      %v1427 = vld [vmem:[#allocation2 + $0x138] sm:$0xff]
      %v1428 = vmax.f32 %v1394, %v1300
      %v1429 = vmax.f32 %v1395, %v1301
      %v1430 = vmax.f32 %v1396, %v1302
      %v1431 = vmax.f32 %v1397, %v1303
      %v1432 = vmax.f32 %v1398, %v1304
      %v1433 = vmax.f32 %v1399, %v1305
      %v1434 = vmax.f32 %v1400, %v1306
      %v1435 = vmax.f32 %v1401, %v1307
      %v1436 = vmax.f32 %v1402, %v1308
      %v1437 = vmax.f32 %v1403, %v1309
      %v1438 = vmax.f32 %v1404, %v1310
      %v1439 = vmax.f32 %v1405, %v1311
      %v1440 = vmax.f32 %v1406, %v1312
      %v1441 = vmax.f32 %v1407, %v1313
      %v1442 = vmax.f32 %v1408, %v1314
      %v1443 = vmax.f32 %v1409, %v1315
      %v1444 = vmax.f32 %v1410, %v1316
      %v1445 = vmax.f32 %v1411, %v1317
      %v1446 = vmax.f32 %v1412, %v1318
      %v1447 = vmax.f32 %v1413, %v1319
      %v1448 = vmax.f32 %v1414, %v1320
      %v1449 = vmax.f32 %v1415, %v1321
      %v1450 = vmax.f32 %v1416, %v1322
      %v1451 = vmax.f32 %v1417, %v1323
      %v1452 = vmax.f32 %v1418, %v1356
      %v1453 = vmax.f32 %v1419, %v1357
      %v1454 = vmax.f32 %v1420, %v1390
      %v1455 = vmax.f32 %v1421, %v1391
      %v1456 = vmax.f32 %v1422, %v1392
      %v1457 = vmax.f32 %v1423, %v1393
      %v1458 = vmax.f32 %v1424, %v1426
      %v1459 = vmax.f32 %v1425, %v1427
      %1460 = vst.msk [vmem:[#allocation2 + $0x20] sm:$0xff] %vm253, %v1428
      %1461 = vst.msk [vmem:[#allocation2 + $0x28] sm:$0xff] %vm253, %v1429
      %1462 = vst.msk [vmem:[#allocation2 + $0x30] sm:$0xff] %vm253, %v1430
      %1463 = vst.msk [vmem:[#allocation2 + $0x38] sm:$0xff] %vm253, %v1431
      %1464 = vst.msk [vmem:[#allocation2 + $0x40] sm:$0xff] %vm253, %v1432
      %1465 = vst.msk [vmem:[#allocation2 + $0x48] sm:$0xff] %vm253, %v1433
      %1466 = vst.msk [vmem:[#allocation2 + $0x50] sm:$0xff] %vm253, %v1434
      %1467 = vst.msk [vmem:[#allocation2 + $0x58] sm:$0xff] %vm253, %v1435
      %1468 = vst.msk [vmem:[#allocation2 + $0x60] sm:$0xff] %vm253, %v1436
      %1469 = vst.msk [vmem:[#allocation2 + $0x68] sm:$0xff] %vm253, %v1437
      %1470 = vst.msk [vmem:[#allocation2 + $0x70] sm:$0xff] %vm253, %v1438
      %1471 = vst.msk [vmem:[#allocation2 + $0x78] sm:$0xff] %vm253, %v1439
      %1472 = vst.msk [vmem:[#allocation2 + $0x80] sm:$0xff] %vm253, %v1440
      %1473 = vst.msk [vmem:[#allocation2 + $0x88] sm:$0xff] %vm253, %v1441
      %1474 = vst.msk [vmem:[#allocation2 + $0x90] sm:$0xff] %vm253, %v1442
      %1475 = vst.msk [vmem:[#allocation2 + $0x98] sm:$0xff] %vm253, %v1443
      %1476 = vst.msk [vmem:[#allocation2 + $0xa0] sm:$0xff] %vm253, %v1444
      %1477 = vst.msk [vmem:[#allocation2 + $0xa8] sm:$0xff] %vm253, %v1445
      %1478 = vst.msk [vmem:[#allocation2 + $0xb0] sm:$0xff] %vm253, %v1446
      %1479 = vst.msk [vmem:[#allocation2 + $0xb8] sm:$0xff] %vm253, %v1447
      %1480 = vst.msk [vmem:[#allocation2 + $0xc0] sm:$0xff] %vm253, %v1448
      %1481 = vst.msk [vmem:[#allocation2 + $0xc8] sm:$0xff] %vm253, %v1449
      %1482 = vst.msk [vmem:[#allocation2 + $0xd0] sm:$0xff] %vm253, %v1450
      %1483 = vst.msk [vmem:[#allocation2 + $0xd8] sm:$0xff] %vm253, %v1451
      %1484 = vst.msk [vmem:[#allocation2 + $0xe0] sm:$0xff] %vm253, %v1452
      %1485 = vst.msk [vmem:[#allocation2 + $0xe8] sm:$0xff] %vm253, %v1453
      %1486 = vst.msk [vmem:[#allocation2 + $0xf0] sm:$0xff] %vm253, %v1454
      %1487 = vst.msk [vmem:[#allocation2 + $0xf8] sm:$0xff] %vm253, %v1455
      %1488 = vst.msk [vmem:[#allocation2 + $0x100] sm:$0xff] %vm253, %v1456
      %1489 = vst.msk [vmem:[#allocation2 + $0x108] sm:$0xff] %vm253, %v1457
      %1490 = vst.msk [vmem:[#allocation2 + $0x110] sm:$0xff] %vm253, %v1458
      %1491 = vst.msk [vmem:[#allocation2 + $0x118] sm:$0xff] %vm253, %v1459
      %v1492 = vld [vmem:[#allocation2 + $0x1e] sm:$0xff]
      %v1493 = vld [vmem:[#allocation2 + $0x26] sm:$0xff]
      %v1494 = vld [vmem:[#allocation2 + $0x2e] sm:$0xff]
      %v1495 = vld [vmem:[#allocation2 + $0x36] sm:$0xff]
      %v1496 = vld [vmem:[#allocation2 + $0x3e] sm:$0xff]
      %v1497 = vld [vmem:[#allocation2 + $0x46] sm:$0xff]
      %v1498 = vld [vmem:[#allocation2 + $0x4e] sm:$0xff]
      %v1499 = vld [vmem:[#allocation2 + $0x56] sm:$0xff]
      %v1500 = vld [vmem:[#allocation2 + $0x5e] sm:$0xff]
      %v1501 = vld [vmem:[#allocation2 + $0x66] sm:$0xff]
      %v1502 = vld [vmem:[#allocation2 + $0x6e] sm:$0xff]
      %v1503 = vld [vmem:[#allocation2 + $0x76] sm:$0xff]
      %v1504 = vld [vmem:[#allocation2 + $0x7e] sm:$0xff]
      %v1505 = vld [vmem:[#allocation2 + $0x86] sm:$0xff]
      %v1506 = vld [vmem:[#allocation2 + $0x8e] sm:$0xff]
      %v1507 = vld [vmem:[#allocation2 + $0x96] sm:$0xff]
      %v1508 = vld [vmem:[#allocation2 + $0x9e] sm:$0xff]
      %v1509 = vld [vmem:[#allocation2 + $0xa6] sm:$0xff]
      %v1510 = vld [vmem:[#allocation2 + $0xae] sm:$0xff]
      %v1511 = vld [vmem:[#allocation2 + $0xb6] sm:$0xff]
      %v1512 = vld [vmem:[#allocation2 + $0xbe] sm:$0xff]
      %v1513 = vld [vmem:[#allocation2 + $0xc6] sm:$0xff]
      %v1514 = vld [vmem:[#allocation2 + $0xce] sm:$0xff]
      %v1515 = vld [vmem:[#allocation2 + $0xd6] sm:$0xff]
      %v1516 = vld [vmem:[#allocation2 + $0xde] sm:$0xff]
      %v1517 = vld [vmem:[#allocation2 + $0xe6] sm:$0xff]
      %v1518 = vld [vmem:[#allocation2 + $0xee] sm:$0xff]
      %v1519 = vld [vmem:[#allocation2 + $0xf6] sm:$0xff]
      %v1520 = vld [vmem:[#allocation2 + $0xfe] sm:$0xff]
      %v1521 = vld [vmem:[#allocation2 + $0x106] sm:$0xff]
      %v1522 = vld [vmem:[#allocation2 + $0x10e] sm:$0xff]
      %v1523 = vld [vmem:[#allocation2 + $0x116] sm:$0xff]
      %v1524 = vsel %vm294, 1, 0
      %v1525 = vsel %vm295, 1, 0
      %v1526 = vsel %vm296, 1, 0
      %v1527 = vsel %vm297, 1, 0
      %v1528 = vsel %vm298, 1, 0
      %v1529 = vsel %vm299, 1, 0
      %v1530 = vsel %vm300, 1, 0
      %v1531 = vsel %vm301, 1, 0
      %v1532 = vsel %vm302, 1, 0
      %v1533 = vsel %vm303, 1, 0
      %v1534 = vsel %vm304, 1, 0
      %v1535 = vsel %vm305, 1, 0
      %v1536 = vsel %vm306, 1, 0
      %v1537 = vsel %vm307, 1, 0
      %v1538 = vsel %vm308, 1, 0
      %v1539 = vsel %vm309, 1, 0
      %v1540 = vsel %vm310, 1, 0
      %v1541 = vsel %vm311, 1, 0
      %v1542 = vsel %vm312, 1, 0
      %v1543 = vsel %vm313, 1, 0
      %v1544 = vsel %vm314, 1, 0
      %v1545 = vsel %vm315, 1, 0
      %v1546 = vsel %vm316, 1, 0
      %v1547 = vsel %vm317, 1, 0
      %v1548 = vsel %vm318, 1, 0
      %v1549 = vsel %vm319, 1, 0
      %v1550 = vsel %vm320, 1, 0
      %v1551 = vsel %vm321, 1, 0
      %v1552 = vsel %vm322, 1, 0
      %v1553 = vsel %vm323, 1, 0
      %v1554 = vsel %vm324, 1, 0
      %v1555 = vsel %vm325, 1, 0
      %1556 = vset.pattern.permute.xlu0 0
      %1557 = vperm.xlu0 %1556, %v1524
      %v1558 = vpop.permute.xlu0 %1557
      %1559 = vset.pattern.permute.xlu0 0
      %1560 = vperm.xlu0 %1559, %v1525
      %v1561 = vpop.permute.xlu0 %1560
      %1562 = vset.pattern.permute.xlu0 0
      %1563 = vperm.xlu0 %1562, %v1526
      %v1564 = vpop.permute.xlu0 %1563
      %1565 = vset.pattern.permute.xlu0 0
      %1566 = vperm.xlu0 %1565, %v1527
      %v1567 = vpop.permute.xlu0 %1566
      %1568 = vset.pattern.permute.xlu0 0
      %1569 = vperm.xlu0 %1568, %v1528
      %v1570 = vpop.permute.xlu0 %1569
      %1571 = vset.pattern.permute.xlu0 0
      %1572 = vperm.xlu0 %1571, %v1529
      %v1573 = vpop.permute.xlu0 %1572
      %1574 = vset.pattern.permute.xlu0 0
      %1575 = vperm.xlu0 %1574, %v1530
      %v1576 = vpop.permute.xlu0 %1575
      %1577 = vset.pattern.permute.xlu0 0
      %1578 = vperm.xlu0 %1577, %v1531
      %v1579 = vpop.permute.xlu0 %1578
      %1580 = vset.pattern.permute.xlu0 0
      %1581 = vperm.xlu0 %1580, %v1532
      %v1582 = vpop.permute.xlu0 %1581
      %1583 = vset.pattern.permute.xlu0 0
      %1584 = vperm.xlu0 %1583, %v1533
      %v1585 = vpop.permute.xlu0 %1584
      %1586 = vset.pattern.permute.xlu0 0
      %1587 = vperm.xlu0 %1586, %v1534
      %v1588 = vpop.permute.xlu0 %1587
      %1589 = vset.pattern.permute.xlu0 0
      %1590 = vperm.xlu0 %1589, %v1535
      %v1591 = vpop.permute.xlu0 %1590
      %1592 = vset.pattern.permute.xlu0 0
      %1593 = vperm.xlu0 %1592, %v1536
      %v1594 = vpop.permute.xlu0 %1593
      %1595 = vset.pattern.permute.xlu0 0
      %1596 = vperm.xlu0 %1595, %v1537
      %v1597 = vpop.permute.xlu0 %1596
      %1598 = vset.pattern.permute.xlu0 0
      %1599 = vperm.xlu0 %1598, %v1538
      %v1600 = vpop.permute.xlu0 %1599
      %1601 = vset.pattern.permute.xlu0 0
      %1602 = vperm.xlu0 %1601, %v1539
      %v1603 = vpop.permute.xlu0 %1602
      %1604 = vset.pattern.permute.xlu0 0
      %1605 = vperm.xlu0 %1604, %v1540
      %v1606 = vpop.permute.xlu0 %1605
      %1607 = vset.pattern.permute.xlu0 0
      %1608 = vperm.xlu0 %1607, %v1541
      %v1609 = vpop.permute.xlu0 %1608
      %1610 = vset.pattern.permute.xlu0 0
      %1611 = vperm.xlu0 %1610, %v1542
      %v1612 = vpop.permute.xlu0 %1611
      %1613 = vset.pattern.permute.xlu0 0
      %1614 = vperm.xlu0 %1613, %v1543
      %v1615 = vpop.permute.xlu0 %1614
      %1616 = vset.pattern.permute.xlu0 0
      %1617 = vperm.xlu0 %1616, %v1544
      %v1618 = vpop.permute.xlu0 %1617
      %1619 = vset.pattern.permute.xlu0 0
      %1620 = vperm.xlu0 %1619, %v1545
      %v1621 = vpop.permute.xlu0 %1620
      %1622 = vset.pattern.permute.xlu0 0
      %1623 = vperm.xlu0 %1622, %v1546
      %v1624 = vpop.permute.xlu0 %1623
      %1625 = vset.pattern.permute.xlu0 0
      %1626 = vperm.xlu0 %1625, %v1547
      %v1627 = vpop.permute.xlu0 %1626
      %1628 = vset.pattern.permute.xlu0 0
      %1629 = vperm.xlu0 %1628, %v1548
      %v1630 = vpop.permute.xlu0 %1629
      %1631 = vset.pattern.permute.xlu0 0
      %1632 = vperm.xlu0 %1631, %v1549
      %v1633 = vpop.permute.xlu0 %1632
      %1634 = vset.pattern.permute.xlu0 0
      %1635 = vperm.xlu0 %1634, %v1550
      %v1636 = vpop.permute.xlu0 %1635
      %1637 = vset.pattern.permute.xlu0 0
      %1638 = vperm.xlu0 %1637, %v1551
      %v1639 = vpop.permute.xlu0 %1638
      %1640 = vset.pattern.permute.xlu0 0
      %1641 = vperm.xlu0 %1640, %v1552
      %v1642 = vpop.permute.xlu0 %1641
      %1643 = vset.pattern.permute.xlu0 0
      %1644 = vperm.xlu0 %1643, %v1553
      %v1645 = vpop.permute.xlu0 %1644
      %1646 = vset.pattern.permute.xlu0 0
      %1647 = vperm.xlu0 %1646, %v1554
      %v1648 = vpop.permute.xlu0 %1647
      %1649 = vset.pattern.permute.xlu0 0
      %1650 = vperm.xlu0 %1649, %v1555
      %v1651 = vpop.permute.xlu0 %1650
      %vm1652 = vcmp.eq.s32.totalorder %v1558, 1
      %vm1653 = vcmp.eq.s32.totalorder %v1561, 1
      %vm1654 = vcmp.eq.s32.totalorder %v1564, 1
      %vm1655 = vcmp.eq.s32.totalorder %v1567, 1
      %vm1656 = vcmp.eq.s32.totalorder %v1570, 1
      %vm1657 = vcmp.eq.s32.totalorder %v1573, 1
      %vm1658 = vcmp.eq.s32.totalorder %v1576, 1
      %vm1659 = vcmp.eq.s32.totalorder %v1579, 1
      %vm1660 = vcmp.eq.s32.totalorder %v1582, 1
      %vm1661 = vcmp.eq.s32.totalorder %v1585, 1
      %vm1662 = vcmp.eq.s32.totalorder %v1588, 1
      %vm1663 = vcmp.eq.s32.totalorder %v1591, 1
      %vm1664 = vcmp.eq.s32.totalorder %v1594, 1
      %vm1665 = vcmp.eq.s32.totalorder %v1597, 1
      %vm1666 = vcmp.eq.s32.totalorder %v1600, 1
      %vm1667 = vcmp.eq.s32.totalorder %v1603, 1
      %vm1668 = vcmp.eq.s32.totalorder %v1606, 1
      %vm1669 = vcmp.eq.s32.totalorder %v1609, 1
      %vm1670 = vcmp.eq.s32.totalorder %v1612, 1
      %vm1671 = vcmp.eq.s32.totalorder %v1615, 1
      %vm1672 = vcmp.eq.s32.totalorder %v1618, 1
      %vm1673 = vcmp.eq.s32.totalorder %v1621, 1
      %vm1674 = vcmp.eq.s32.totalorder %v1624, 1
      %vm1675 = vcmp.eq.s32.totalorder %v1627, 1
      %vm1676 = vcmp.eq.s32.totalorder %v1630, 1
      %vm1677 = vcmp.eq.s32.totalorder %v1633, 1
      %vm1678 = vcmp.eq.s32.totalorder %v1636, 1
      %vm1679 = vcmp.eq.s32.totalorder %v1639, 1
      %vm1680 = vcmp.eq.s32.totalorder %v1642, 1
      %vm1681 = vcmp.eq.s32.totalorder %v1645, 1
      %vm1682 = vcmp.eq.s32.totalorder %v1648, 1
      %vm1683 = vcmp.eq.s32.totalorder %v1651, 1
      %v1684 = vsel %vm1652, %v1492, -1e+30
      %v1685 = vsel %vm1653, %v1493, -1e+30
      %v1686 = vsel %vm1654, %v1494, -1e+30
      %v1687 = vsel %vm1655, %v1495, -1e+30
      %v1688 = vsel %vm1656, %v1496, -1e+30
      %v1689 = vsel %vm1657, %v1497, -1e+30
      %v1690 = vsel %vm1658, %v1498, -1e+30
      %v1691 = vsel %vm1659, %v1499, -1e+30
      %v1692 = vsel %vm1660, %v1500, -1e+30
      %v1693 = vsel %vm1661, %v1501, -1e+30
      %v1694 = vsel %vm1662, %v1502, -1e+30
      %v1695 = vsel %vm1663, %v1503, -1e+30
      %v1696 = vsel %vm1664, %v1504, -1e+30
      %v1697 = vsel %vm1665, %v1505, -1e+30
      %v1698 = vsel %vm1666, %v1506, -1e+30
      %v1699 = vsel %vm1667, %v1507, -1e+30
      %v1700 = vsel %vm1668, %v1508, -1e+30
      %v1701 = vsel %vm1669, %v1509, -1e+30
      %v1702 = vsel %vm1670, %v1510, -1e+30
      %v1703 = vsel %vm1671, %v1511, -1e+30
      %v1704 = vsel %vm1672, %v1512, -1e+30
      %v1705 = vsel %vm1673, %v1513, -1e+30
      %v1706 = vsel %vm1674, %v1514, -1e+30
      %v1707 = vsel %vm1675, %v1515, -1e+30
      %v1708 = vsel %vm1676, %v1516, -1e+30
      %v1709 = vsel %vm1677, %v1517, -1e+30
      %v1710 = vsel %vm1678, %v1518, -1e+30
      %v1711 = vsel %vm1679, %v1519, -1e+30
      %v1712 = vsel %vm1680, %v1520, -1e+30
      %v1713 = vsel %vm1681, %v1521, -1e+30
      %v1714 = vsel %vm1682, %v1522, -1e+30
      %v1715 = vsel %vm1683, %v1523, -1e+30
      %v1716 = vmax.f32 %v1428, %v1684
      %v1717 = vmax.f32 %v1429, %v1685
      %v1718 = vmax.f32 %v1430, %v1686
      %v1719 = vmax.f32 %v1431, %v1687
      %v1720 = vmax.f32 %v1432, %v1688
      %v1721 = vmax.f32 %v1433, %v1689
      %v1722 = vmax.f32 %v1434, %v1690
      %v1723 = vmax.f32 %v1435, %v1691
      %v1724 = vmax.f32 %v1436, %v1692
      %v1725 = vmax.f32 %v1437, %v1693
      %v1726 = vmax.f32 %v1438, %v1694
      %v1727 = vmax.f32 %v1439, %v1695
      %v1728 = vmax.f32 %v1440, %v1696
      %v1729 = vmax.f32 %v1441, %v1697
      %v1730 = vmax.f32 %v1442, %v1698
      %v1731 = vmax.f32 %v1443, %v1699
      %v1732 = vmax.f32 %v1444, %v1700
      %v1733 = vmax.f32 %v1445, %v1701
      %v1734 = vmax.f32 %v1446, %v1702
      %v1735 = vmax.f32 %v1447, %v1703
      %v1736 = vmax.f32 %v1448, %v1704
      %v1737 = vmax.f32 %v1449, %v1705
      %v1738 = vmax.f32 %v1450, %v1706
      %v1739 = vmax.f32 %v1451, %v1707
      %v1740 = vmax.f32 %v1452, %v1708
      %v1741 = vmax.f32 %v1453, %v1709
      %v1742 = vmax.f32 %v1454, %v1710
      %v1743 = vmax.f32 %v1455, %v1711
      %v1744 = vmax.f32 %v1456, %v1712
      %v1745 = vmax.f32 %v1457, %v1713
      %v1746 = vmax.f32 %v1458, %v1714
      %v1747 = vmax.f32 %v1459, %v1715
      %v1748 = vld [vmem:[#allocation2 + $0x1f] sm:$0xff]
      %v1749 = vld [vmem:[#allocation2 + $0x27] sm:$0xff]
      %v1750 = vld [vmem:[#allocation2 + $0x2f] sm:$0xff]
      %v1751 = vld [vmem:[#allocation2 + $0x37] sm:$0xff]
      %v1752 = vld [vmem:[#allocation2 + $0x3f] sm:$0xff]
      %v1753 = vld [vmem:[#allocation2 + $0x47] sm:$0xff]
      %v1754 = vld [vmem:[#allocation2 + $0x4f] sm:$0xff]
      %v1755 = vld [vmem:[#allocation2 + $0x57] sm:$0xff]
      %v1756 = vld [vmem:[#allocation2 + $0x5f] sm:$0xff]
      %v1757 = vld [vmem:[#allocation2 + $0x67] sm:$0xff]
      %v1758 = vld [vmem:[#allocation2 + $0x6f] sm:$0xff]
      %v1759 = vld [vmem:[#allocation2 + $0x77] sm:$0xff]
      %v1760 = vld [vmem:[#allocation2 + $0x7f] sm:$0xff]
      %v1761 = vld [vmem:[#allocation2 + $0x87] sm:$0xff]
      %v1762 = vld [vmem:[#allocation2 + $0x8f] sm:$0xff]
      %v1763 = vld [vmem:[#allocation2 + $0x97] sm:$0xff]
      %v1764 = vld [vmem:[#allocation2 + $0x9f] sm:$0xff]
      %v1765 = vld [vmem:[#allocation2 + $0xa7] sm:$0xff]
      %v1766 = vld [vmem:[#allocation2 + $0xaf] sm:$0xff]
      %v1767 = vld [vmem:[#allocation2 + $0xb7] sm:$0xff]
      %v1768 = vld [vmem:[#allocation2 + $0xbf] sm:$0xff]
      %v1769 = vld [vmem:[#allocation2 + $0xc7] sm:$0xff]
      %v1770 = vld [vmem:[#allocation2 + $0xcf] sm:$0xff]
      %v1771 = vld [vmem:[#allocation2 + $0xd7] sm:$0xff]
      %v1772 = vld [vmem:[#allocation2 + $0xdf] sm:$0xff]
      %v1773 = vld [vmem:[#allocation2 + $0xe7] sm:$0xff]
      %v1774 = vld [vmem:[#allocation2 + $0xef] sm:$0xff]
      %v1775 = vld [vmem:[#allocation2 + $0xf7] sm:$0xff]
      %v1776 = vld [vmem:[#allocation2 + $0xff] sm:$0xff]
      %v1777 = vld [vmem:[#allocation2 + $0x107] sm:$0xff]
      %v1778 = vld [vmem:[#allocation2 + $0x10f] sm:$0xff]
      %v1779 = vld [vmem:[#allocation2 + $0x117] sm:$0xff]
      %v1780 = vsel %vm326, 1, 0
      %v1781 = vsel %vm327, 1, 0
      %v1782 = vsel %vm328, 1, 0
      %v1783 = vsel %vm329, 1, 0
      %v1784 = vsel %vm330, 1, 0
      %v1785 = vsel %vm331, 1, 0
      %v1786 = vsel %vm332, 1, 0
      %v1787 = vsel %vm333, 1, 0
      %v1788 = vsel %vm334, 1, 0
      %v1789 = vsel %vm335, 1, 0
      %v1790 = vsel %vm336, 1, 0
      %v1791 = vsel %vm337, 1, 0
      %v1792 = vsel %vm338, 1, 0
      %v1793 = vsel %vm339, 1, 0
      %v1794 = vsel %vm340, 1, 0
      %v1795 = vsel %vm341, 1, 0
      %v1796 = vsel %vm342, 1, 0
      %v1797 = vsel %vm343, 1, 0
      %v1798 = vsel %vm344, 1, 0
      %v1799 = vsel %vm345, 1, 0
      %v1800 = vsel %vm346, 1, 0
      %v1801 = vsel %vm347, 1, 0
      %v1802 = vsel %vm348, 1, 0
      %v1803 = vsel %vm349, 1, 0
      %v1804 = vsel %vm350, 1, 0
      %v1805 = vsel %vm351, 1, 0
      %v1806 = vsel %vm352, 1, 0
      %v1807 = vsel %vm353, 1, 0
      %v1808 = vsel %vm354, 1, 0
      %v1809 = vsel %vm355, 1, 0
      %v1810 = vsel %vm356, 1, 0
      %v1811 = vsel %vm357, 1, 0
      %1812 = vset.pattern.permute.xlu0 0
      %1813 = vperm.xlu0 %1812, %v1780
      %v1814 = vpop.permute.xlu0 %1813
      %1815 = vset.pattern.permute.xlu0 0
      %1816 = vperm.xlu0 %1815, %v1781
      %v1817 = vpop.permute.xlu0 %1816
      %1818 = vset.pattern.permute.xlu0 0
      %1819 = vperm.xlu0 %1818, %v1782
      %v1820 = vpop.permute.xlu0 %1819
      %1821 = vset.pattern.permute.xlu0 0
      %1822 = vperm.xlu0 %1821, %v1783
      %v1823 = vpop.permute.xlu0 %1822
      %1824 = vset.pattern.permute.xlu0 0
      %1825 = vperm.xlu0 %1824, %v1784
      %v1826 = vpop.permute.xlu0 %1825
      %1827 = vset.pattern.permute.xlu0 0
      %1828 = vperm.xlu0 %1827, %v1785
      %v1829 = vpop.permute.xlu0 %1828
      %1830 = vset.pattern.permute.xlu0 0
      %1831 = vperm.xlu0 %1830, %v1786
      %v1832 = vpop.permute.xlu0 %1831
      %1833 = vset.pattern.permute.xlu0 0
      %1834 = vperm.xlu0 %1833, %v1787
      %v1835 = vpop.permute.xlu0 %1834
      %1836 = vset.pattern.permute.xlu0 0
      %1837 = vperm.xlu0 %1836, %v1788
      %v1838 = vpop.permute.xlu0 %1837
      %1839 = vset.pattern.permute.xlu0 0
      %1840 = vperm.xlu0 %1839, %v1789
      %v1841 = vpop.permute.xlu0 %1840
      %1842 = vset.pattern.permute.xlu0 0
      %1843 = vperm.xlu0 %1842, %v1790
      %v1844 = vpop.permute.xlu0 %1843
      %1845 = vset.pattern.permute.xlu0 0
      %1846 = vperm.xlu0 %1845, %v1791
      %v1847 = vpop.permute.xlu0 %1846
      %1848 = vset.pattern.permute.xlu0 0
      %1849 = vperm.xlu0 %1848, %v1792
      %v1850 = vpop.permute.xlu0 %1849
      %1851 = vset.pattern.permute.xlu0 0
      %1852 = vperm.xlu0 %1851, %v1793
      %v1853 = vpop.permute.xlu0 %1852
      %1854 = vset.pattern.permute.xlu0 0
      %1855 = vperm.xlu0 %1854, %v1794
      %v1856 = vpop.permute.xlu0 %1855
      %1857 = vset.pattern.permute.xlu0 0
      %1858 = vperm.xlu0 %1857, %v1795
      %v1859 = vpop.permute.xlu0 %1858
      %1860 = vset.pattern.permute.xlu0 0
      %1861 = vperm.xlu0 %1860, %v1796
      %v1862 = vpop.permute.xlu0 %1861
      %1863 = vset.pattern.permute.xlu0 0
      %1864 = vperm.xlu0 %1863, %v1797
      %v1865 = vpop.permute.xlu0 %1864
      %1866 = vset.pattern.permute.xlu0 0
      %1867 = vperm.xlu0 %1866, %v1798
      %v1868 = vpop.permute.xlu0 %1867
      %1869 = vset.pattern.permute.xlu0 0
      %1870 = vperm.xlu0 %1869, %v1799
      %v1871 = vpop.permute.xlu0 %1870
      %1872 = vset.pattern.permute.xlu0 0
      %1873 = vperm.xlu0 %1872, %v1800
      %v1874 = vpop.permute.xlu0 %1873
      %1875 = vset.pattern.permute.xlu0 0
      %1876 = vperm.xlu0 %1875, %v1801
      %v1877 = vpop.permute.xlu0 %1876
      %1878 = vset.pattern.permute.xlu0 0
      %1879 = vperm.xlu0 %1878, %v1802
      %v1880 = vpop.permute.xlu0 %1879
      %1881 = vset.pattern.permute.xlu0 0
      %1882 = vperm.xlu0 %1881, %v1803
      %v1883 = vpop.permute.xlu0 %1882
      %1884 = vset.pattern.permute.xlu0 0
      %1885 = vperm.xlu0 %1884, %v1804
      %v1886 = vpop.permute.xlu0 %1885
      %1887 = vset.pattern.permute.xlu0 0
      %1888 = vperm.xlu0 %1887, %v1805
      %v1889 = vpop.permute.xlu0 %1888
      %1890 = vset.pattern.permute.xlu0 0
      %1891 = vperm.xlu0 %1890, %v1806
      %v1892 = vpop.permute.xlu0 %1891
      %1893 = vset.pattern.permute.xlu0 0
      %1894 = vperm.xlu0 %1893, %v1807
      %v1895 = vpop.permute.xlu0 %1894
      %1896 = vset.pattern.permute.xlu0 0
      %1897 = vperm.xlu0 %1896, %v1808
      %v1898 = vpop.permute.xlu0 %1897
      %1899 = vset.pattern.permute.xlu0 0
      %1900 = vperm.xlu0 %1899, %v1809
      %v1901 = vpop.permute.xlu0 %1900
      %1902 = vset.pattern.permute.xlu0 0
      %1903 = vperm.xlu0 %1902, %v1810
      %v1904 = vpop.permute.xlu0 %1903
      %1905 = vset.pattern.permute.xlu0 0
      %1906 = vperm.xlu0 %1905, %v1811
      %v1907 = vpop.permute.xlu0 %1906
      %vm1908 = vcmp.eq.s32.totalorder %v1814, 1
      %vm1909 = vcmp.eq.s32.totalorder %v1817, 1
      %vm1910 = vcmp.eq.s32.totalorder %v1820, 1
      %vm1911 = vcmp.eq.s32.totalorder %v1823, 1
      %vm1912 = vcmp.eq.s32.totalorder %v1826, 1
      %vm1913 = vcmp.eq.s32.totalorder %v1829, 1
      %vm1914 = vcmp.eq.s32.totalorder %v1832, 1
      %vm1915 = vcmp.eq.s32.totalorder %v1835, 1
      %vm1916 = vcmp.eq.s32.totalorder %v1838, 1
      %vm1917 = vcmp.eq.s32.totalorder %v1841, 1
      %vm1918 = vcmp.eq.s32.totalorder %v1844, 1
      %vm1919 = vcmp.eq.s32.totalorder %v1847, 1
      %vm1920 = vcmp.eq.s32.totalorder %v1850, 1
      %vm1921 = vcmp.eq.s32.totalorder %v1853, 1
      %vm1922 = vcmp.eq.s32.totalorder %v1856, 1
      %vm1923 = vcmp.eq.s32.totalorder %v1859, 1
      %vm1924 = vcmp.eq.s32.totalorder %v1862, 1
      %vm1925 = vcmp.eq.s32.totalorder %v1865, 1
      %vm1926 = vcmp.eq.s32.totalorder %v1868, 1
      %vm1927 = vcmp.eq.s32.totalorder %v1871, 1
      %vm1928 = vcmp.eq.s32.totalorder %v1874, 1
      %vm1929 = vcmp.eq.s32.totalorder %v1877, 1
      %vm1930 = vcmp.eq.s32.totalorder %v1880, 1
      %vm1931 = vcmp.eq.s32.totalorder %v1883, 1
      %vm1932 = vcmp.eq.s32.totalorder %v1886, 1
      %vm1933 = vcmp.eq.s32.totalorder %v1889, 1
      %vm1934 = vcmp.eq.s32.totalorder %v1892, 1
      %vm1935 = vcmp.eq.s32.totalorder %v1895, 1
      %vm1936 = vcmp.eq.s32.totalorder %v1898, 1
      %vm1937 = vcmp.eq.s32.totalorder %v1901, 1
      %vm1938 = vcmp.eq.s32.totalorder %v1904, 1
      %vm1939 = vcmp.eq.s32.totalorder %v1907, 1
      %v1940 = vsel %vm1908, %v1748, -1e+30
      %v1941 = vsel %vm1909, %v1749, -1e+30
      %v1942 = vsel %vm1910, %v1750, -1e+30
      %v1943 = vsel %vm1911, %v1751, -1e+30
      %v1944 = vsel %vm1912, %v1752, -1e+30
      %v1945 = vsel %vm1913, %v1753, -1e+30
      %v1946 = vsel %vm1914, %v1754, -1e+30
      %v1947 = vsel %vm1915, %v1755, -1e+30
      %v1948 = vsel %vm1916, %v1756, -1e+30
      %v1949 = vsel %vm1917, %v1757, -1e+30
      %v1950 = vsel %vm1918, %v1758, -1e+30
      %v1951 = vsel %vm1919, %v1759, -1e+30
      %v1952 = vsel %vm1920, %v1760, -1e+30
      %v1953 = vsel %vm1921, %v1761, -1e+30
      %v1954 = vsel %vm1922, %v1762, -1e+30
      %v1955 = vsel %vm1923, %v1763, -1e+30
      %v1956 = vsel %vm1924, %v1764, -1e+30
      %v1957 = vsel %vm1925, %v1765, -1e+30
      %v1958 = vsel %vm1926, %v1766, -1e+30
      %v1959 = vsel %vm1927, %v1767, -1e+30
      %v1960 = vsel %vm1928, %v1768, -1e+30
      %v1961 = vsel %vm1929, %v1769, -1e+30
      %v1962 = vsel %vm1930, %v1770, -1e+30
      %v1963 = vsel %vm1931, %v1771, -1e+30
      %v1964 = vsel %vm1932, %v1772, -1e+30
      %v1965 = vsel %vm1933, %v1773, -1e+30
      %v1966 = vsel %vm1934, %v1774, -1e+30
      %v1967 = vsel %vm1935, %v1775, -1e+30
      %v1968 = vsel %vm1936, %v1776, -1e+30
      %v1969 = vsel %vm1937, %v1777, -1e+30
      %v1970 = vsel %vm1938, %v1778, -1e+30
      %v1971 = vsel %vm1939, %v1779, -1e+30
      %v1972 = vmax.f32 %v1716, %v1940
      %v1973 = vmax.f32 %v1717, %v1941
      %v1974 = vmax.f32 %v1718, %v1942
      %v1975 = vmax.f32 %v1719, %v1943
      %v1976 = vmax.f32 %v1720, %v1944
      %v1977 = vmax.f32 %v1721, %v1945
      %v1978 = vmax.f32 %v1722, %v1946
      %v1979 = vmax.f32 %v1723, %v1947
      %v1980 = vmax.f32 %v1724, %v1948
      %v1981 = vmax.f32 %v1725, %v1949
      %v1982 = vmax.f32 %v1726, %v1950
      %v1983 = vmax.f32 %v1727, %v1951
      %v1984 = vmax.f32 %v1728, %v1952
      %v1985 = vmax.f32 %v1729, %v1953
      %v1986 = vmax.f32 %v1730, %v1954
      %v1987 = vmax.f32 %v1731, %v1955
      %v1988 = vmax.f32 %v1732, %v1956
      %v1989 = vmax.f32 %v1733, %v1957
      %v1990 = vmax.f32 %v1734, %v1958
      %v1991 = vmax.f32 %v1735, %v1959
      %v1992 = vmax.f32 %v1736, %v1960
      %v1993 = vmax.f32 %v1737, %v1961
      %v1994 = vmax.f32 %v1738, %v1962
      %v1995 = vmax.f32 %v1739, %v1963
      %v1996 = vmax.f32 %v1740, %v1964
      %v1997 = vmax.f32 %v1741, %v1965
      %v1998 = vmax.f32 %v1742, %v1966
      %v1999 = vmax.f32 %v1743, %v1967
      %v2000 = vmax.f32 %v1744, %v1968
      %v2001 = vmax.f32 %v1745, %v1969
      %v2002 = vmax.f32 %v1746, %v1970
      %v2003 = vmax.f32 %v1747, %v1971
      %v2004 = vld [vmem:[#allocation2 + $0x21] sm:$0xff]
      %v2005 = vld [vmem:[#allocation2 + $0x29] sm:$0xff]
      %v2006 = vld [vmem:[#allocation2 + $0x31] sm:$0xff]
      %v2007 = vld [vmem:[#allocation2 + $0x39] sm:$0xff]
      %v2008 = vld [vmem:[#allocation2 + $0x41] sm:$0xff]
      %v2009 = vld [vmem:[#allocation2 + $0x49] sm:$0xff]
      %v2010 = vld [vmem:[#allocation2 + $0x51] sm:$0xff]
      %v2011 = vld [vmem:[#allocation2 + $0x59] sm:$0xff]
      %v2012 = vld [vmem:[#allocation2 + $0x61] sm:$0xff]
      %v2013 = vld [vmem:[#allocation2 + $0x69] sm:$0xff]
      %v2014 = vld [vmem:[#allocation2 + $0x71] sm:$0xff]
      %v2015 = vld [vmem:[#allocation2 + $0x79] sm:$0xff]
      %v2016 = vld [vmem:[#allocation2 + $0x81] sm:$0xff]
      %v2017 = vld [vmem:[#allocation2 + $0x89] sm:$0xff]
      %v2018 = vld [vmem:[#allocation2 + $0x91] sm:$0xff]
      %v2019 = vld [vmem:[#allocation2 + $0x99] sm:$0xff]
      %v2020 = vld [vmem:[#allocation2 + $0xa1] sm:$0xff]
      %v2021 = vld [vmem:[#allocation2 + $0xa9] sm:$0xff]
      %v2022 = vld [vmem:[#allocation2 + $0xb1] sm:$0xff]
      %v2023 = vld [vmem:[#allocation2 + $0xb9] sm:$0xff]
      %v2024 = vld [vmem:[#allocation2 + $0xc1] sm:$0xff]
      %v2025 = vld [vmem:[#allocation2 + $0xc9] sm:$0xff]
      %v2026 = vld [vmem:[#allocation2 + $0xd1] sm:$0xff]
      %v2027 = vld [vmem:[#allocation2 + $0xd9] sm:$0xff]
      %v2028 = vld [vmem:[#allocation2 + $0xe1] sm:$0xff]
      %v2029 = vld [vmem:[#allocation2 + $0xe9] sm:$0xff]
      %v2030 = vld [vmem:[#allocation2 + $0xf1] sm:$0xff]
      %v2031 = vld [vmem:[#allocation2 + $0xf9] sm:$0xff]
      %v2032 = vld [vmem:[#allocation2 + $0x101] sm:$0xff]
      %v2033 = vld [vmem:[#allocation2 + $0x109] sm:$0xff]
      %v2034 = vld [vmem:[#allocation2 + $0x111] sm:$0xff]
      %v2035 = vld [vmem:[#allocation2 + $0x119] sm:$0xff]
      %v2036 = vsel %vm358, 1, 0
      %v2037 = vsel %vm359, 1, 0
      %v2038 = vsel %vm360, 1, 0
      %v2039 = vsel %vm361, 1, 0
      %v2040 = vsel %vm362, 1, 0
      %v2041 = vsel %vm363, 1, 0
      %v2042 = vsel %vm364, 1, 0
      %v2043 = vsel %vm365, 1, 0
      %v2044 = vsel %vm366, 1, 0
      %v2045 = vsel %vm367, 1, 0
      %v2046 = vsel %vm368, 1, 0
      %v2047 = vsel %vm369, 1, 0
      %v2048 = vsel %vm370, 1, 0
      %v2049 = vsel %vm371, 1, 0
      %v2050 = vsel %vm372, 1, 0
      %v2051 = vsel %vm373, 1, 0
      %v2052 = vsel %vm374, 1, 0
      %v2053 = vsel %vm375, 1, 0
      %v2054 = vsel %vm376, 1, 0
      %v2055 = vsel %vm377, 1, 0
      %v2056 = vsel %vm378, 1, 0
      %v2057 = vsel %vm379, 1, 0
      %v2058 = vsel %vm380, 1, 0
      %v2059 = vsel %vm381, 1, 0
      %v2060 = vsel %vm382, 1, 0
      %v2061 = vsel %vm383, 1, 0
      %v2062 = vsel %vm384, 1, 0
      %v2063 = vsel %vm385, 1, 0
      %v2064 = vsel %vm386, 1, 0
      %v2065 = vsel %vm387, 1, 0
      %v2066 = vsel %vm388, 1, 0
      %v2067 = vsel %vm389, 1, 0
      %2068 = vset.pattern.permute.xlu0 0
      %2069 = vperm.xlu0 %2068, %v2036
      %v2070 = vpop.permute.xlu0 %2069
      %2071 = vset.pattern.permute.xlu0 0
      %2072 = vperm.xlu0 %2071, %v2037
      %v2073 = vpop.permute.xlu0 %2072
      %2074 = vset.pattern.permute.xlu0 0
      %2075 = vperm.xlu0 %2074, %v2038
      %v2076 = vpop.permute.xlu0 %2075
      %2077 = vset.pattern.permute.xlu0 0
      %2078 = vperm.xlu0 %2077, %v2039
      %v2079 = vpop.permute.xlu0 %2078
      %2080 = vset.pattern.permute.xlu0 0
      %2081 = vperm.xlu0 %2080, %v2040
      %v2082 = vpop.permute.xlu0 %2081
      %2083 = vset.pattern.permute.xlu0 0
      %2084 = vperm.xlu0 %2083, %v2041
      %v2085 = vpop.permute.xlu0 %2084
      %2086 = vset.pattern.permute.xlu0 0
      %2087 = vperm.xlu0 %2086, %v2042
      %v2088 = vpop.permute.xlu0 %2087
      %2089 = vset.pattern.permute.xlu0 0
      %2090 = vperm.xlu0 %2089, %v2043
      %v2091 = vpop.permute.xlu0 %2090
      %2092 = vset.pattern.permute.xlu0 0
      %2093 = vperm.xlu0 %2092, %v2044
      %v2094 = vpop.permute.xlu0 %2093
      %2095 = vset.pattern.permute.xlu0 0
      %2096 = vperm.xlu0 %2095, %v2045
      %v2097 = vpop.permute.xlu0 %2096
      %2098 = vset.pattern.permute.xlu0 0
      %2099 = vperm.xlu0 %2098, %v2046
      %v2100 = vpop.permute.xlu0 %2099
      %2101 = vset.pattern.permute.xlu0 0
      %2102 = vperm.xlu0 %2101, %v2047
      %v2103 = vpop.permute.xlu0 %2102
      %2104 = vset.pattern.permute.xlu0 0
      %2105 = vperm.xlu0 %2104, %v2048
      %v2106 = vpop.permute.xlu0 %2105
      %2107 = vset.pattern.permute.xlu0 0
      %2108 = vperm.xlu0 %2107, %v2049
      %v2109 = vpop.permute.xlu0 %2108
      %2110 = vset.pattern.permute.xlu0 0
      %2111 = vperm.xlu0 %2110, %v2050
      %v2112 = vpop.permute.xlu0 %2111
      %2113 = vset.pattern.permute.xlu0 0
      %2114 = vperm.xlu0 %2113, %v2051
      %v2115 = vpop.permute.xlu0 %2114
      %2116 = vset.pattern.permute.xlu0 0
      %2117 = vperm.xlu0 %2116, %v2052
      %v2118 = vpop.permute.xlu0 %2117
      %2119 = vset.pattern.permute.xlu0 0
      %2120 = vperm.xlu0 %2119, %v2053
      %v2121 = vpop.permute.xlu0 %2120
      %2122 = vset.pattern.permute.xlu0 0
      %2123 = vperm.xlu0 %2122, %v2054
      %v2124 = vpop.permute.xlu0 %2123
      %2125 = vset.pattern.permute.xlu0 0
      %2126 = vperm.xlu0 %2125, %v2055
      %v2127 = vpop.permute.xlu0 %2126
      %2128 = vset.pattern.permute.xlu0 0
      %2129 = vperm.xlu0 %2128, %v2056
      %v2130 = vpop.permute.xlu0 %2129
      %2131 = vset.pattern.permute.xlu0 0
      %2132 = vperm.xlu0 %2131, %v2057
      %v2133 = vpop.permute.xlu0 %2132
      %2134 = vset.pattern.permute.xlu0 0
      %2135 = vperm.xlu0 %2134, %v2058
      %v2136 = vpop.permute.xlu0 %2135
      %2137 = vset.pattern.permute.xlu0 0
      %2138 = vperm.xlu0 %2137, %v2059
      %v2139 = vpop.permute.xlu0 %2138
      %2140 = vset.pattern.permute.xlu0 0
      %2141 = vperm.xlu0 %2140, %v2060
      %v2142 = vpop.permute.xlu0 %2141
      %2143 = vset.pattern.permute.xlu0 0
      %2144 = vperm.xlu0 %2143, %v2061
      %v2145 = vpop.permute.xlu0 %2144
      %2146 = vset.pattern.permute.xlu0 0
      %2147 = vperm.xlu0 %2146, %v2062
      %v2148 = vpop.permute.xlu0 %2147
      %2149 = vset.pattern.permute.xlu0 0
      %2150 = vperm.xlu0 %2149, %v2063
      %v2151 = vpop.permute.xlu0 %2150
      %2152 = vset.pattern.permute.xlu0 0
      %2153 = vperm.xlu0 %2152, %v2064
      %v2154 = vpop.permute.xlu0 %2153
      %2155 = vset.pattern.permute.xlu0 0
      %2156 = vperm.xlu0 %2155, %v2065
      %v2157 = vpop.permute.xlu0 %2156
      %2158 = vset.pattern.permute.xlu0 0
      %2159 = vperm.xlu0 %2158, %v2066
      %v2160 = vpop.permute.xlu0 %2159
      %2161 = vset.pattern.permute.xlu0 0
      %2162 = vperm.xlu0 %2161, %v2067
      %v2163 = vpop.permute.xlu0 %2162
      %vm2164 = vcmp.eq.s32.totalorder %v2070, 1
      %vm2165 = vcmp.eq.s32.totalorder %v2073, 1
      %vm2166 = vcmp.eq.s32.totalorder %v2076, 1
      %vm2167 = vcmp.eq.s32.totalorder %v2079, 1
      %vm2168 = vcmp.eq.s32.totalorder %v2082, 1
      %vm2169 = vcmp.eq.s32.totalorder %v2085, 1
      %vm2170 = vcmp.eq.s32.totalorder %v2088, 1
      %vm2171 = vcmp.eq.s32.totalorder %v2091, 1
      %vm2172 = vcmp.eq.s32.totalorder %v2094, 1
      %vm2173 = vcmp.eq.s32.totalorder %v2097, 1
      %vm2174 = vcmp.eq.s32.totalorder %v2100, 1
      %vm2175 = vcmp.eq.s32.totalorder %v2103, 1
      %vm2176 = vcmp.eq.s32.totalorder %v2106, 1
      %vm2177 = vcmp.eq.s32.totalorder %v2109, 1
      %vm2178 = vcmp.eq.s32.totalorder %v2112, 1
      %vm2179 = vcmp.eq.s32.totalorder %v2115, 1
      %vm2180 = vcmp.eq.s32.totalorder %v2118, 1
      %vm2181 = vcmp.eq.s32.totalorder %v2121, 1
      %vm2182 = vcmp.eq.s32.totalorder %v2124, 1
      %vm2183 = vcmp.eq.s32.totalorder %v2127, 1
      %vm2184 = vcmp.eq.s32.totalorder %v2130, 1
      %vm2185 = vcmp.eq.s32.totalorder %v2133, 1
      %vm2186 = vcmp.eq.s32.totalorder %v2136, 1
      %vm2187 = vcmp.eq.s32.totalorder %v2139, 1
      %vm2188 = vcmp.eq.s32.totalorder %v2142, 1
      %vm2189 = vcmp.eq.s32.totalorder %v2145, 1
      %vm2190 = vcmp.eq.s32.totalorder %v2148, 1
      %vm2191 = vcmp.eq.s32.totalorder %v2151, 1
      %vm2192 = vcmp.eq.s32.totalorder %v2154, 1
      %vm2193 = vcmp.eq.s32.totalorder %v2157, 1
      %vm2194 = vcmp.eq.s32.totalorder %v2160, 1
      %vm2195 = vcmp.eq.s32.totalorder %v2163, 1
      %v2196 = vsel %vm2164, %v2004, -1e+30
      %v2197 = vsel %vm2165, %v2005, -1e+30
      %v2198 = vsel %vm2166, %v2006, -1e+30
      %v2199 = vsel %vm2167, %v2007, -1e+30
      %v2200 = vsel %vm2168, %v2008, -1e+30
      %v2201 = vsel %vm2169, %v2009, -1e+30
      %v2202 = vsel %vm2170, %v2010, -1e+30
      %v2203 = vsel %vm2171, %v2011, -1e+30
      %v2204 = vsel %vm2172, %v2012, -1e+30
      %v2205 = vsel %vm2173, %v2013, -1e+30
      %v2206 = vsel %vm2174, %v2014, -1e+30
      %v2207 = vsel %vm2175, %v2015, -1e+30
      %v2208 = vsel %vm2176, %v2016, -1e+30
      %v2209 = vsel %vm2177, %v2017, -1e+30
      %v2210 = vsel %vm2178, %v2018, -1e+30
      %v2211 = vsel %vm2179, %v2019, -1e+30
      %v2212 = vsel %vm2180, %v2020, -1e+30
      %v2213 = vsel %vm2181, %v2021, -1e+30
      %v2214 = vsel %vm2182, %v2022, -1e+30
      %v2215 = vsel %vm2183, %v2023, -1e+30
      %v2216 = vsel %vm2184, %v2024, -1e+30
      %v2217 = vsel %vm2185, %v2025, -1e+30
      %v2218 = vsel %vm2186, %v2026, -1e+30
      %v2219 = vsel %vm2187, %v2027, -1e+30
      %v2220 = vsel %vm2188, %v2028, -1e+30
      %v2221 = vsel %vm2189, %v2029, -1e+30
      %v2222 = vsel %vm2190, %v2030, -1e+30
      %v2223 = vsel %vm2191, %v2031, -1e+30
      %v2224 = vsel %vm2192, %v2032, -1e+30
      %v2225 = vsel %vm2193, %v2033, -1e+30
      %v2226 = vsel %vm2194, %v2034, -1e+30
      %v2227 = vsel %vm2195, %v2035, -1e+30
      %v2228 = vmax.f32 %v1972, %v2196
      %v2229 = vmax.f32 %v1973, %v2197
      %v2230 = vmax.f32 %v1974, %v2198
      %v2231 = vmax.f32 %v1975, %v2199
      %v2232 = vmax.f32 %v1976, %v2200
      %v2233 = vmax.f32 %v1977, %v2201
      %v2234 = vmax.f32 %v1978, %v2202
      %v2235 = vmax.f32 %v1979, %v2203
      %v2236 = vmax.f32 %v1980, %v2204
      %v2237 = vmax.f32 %v1981, %v2205
      %v2238 = vmax.f32 %v1982, %v2206
      %v2239 = vmax.f32 %v1983, %v2207
      %v2240 = vmax.f32 %v1984, %v2208
      %v2241 = vmax.f32 %v1985, %v2209
      %v2242 = vmax.f32 %v1986, %v2210
      %v2243 = vmax.f32 %v1987, %v2211
      %v2244 = vmax.f32 %v1988, %v2212
      %v2245 = vmax.f32 %v1989, %v2213
      %v2246 = vmax.f32 %v1990, %v2214
      %v2247 = vmax.f32 %v1991, %v2215
      %v2248 = vmax.f32 %v1992, %v2216
      %v2249 = vmax.f32 %v1993, %v2217
      %v2250 = vmax.f32 %v1994, %v2218
      %v2251 = vmax.f32 %v1995, %v2219
      %v2252 = vmax.f32 %v1996, %v2220
      %v2253 = vmax.f32 %v1997, %v2221
      %v2254 = vmax.f32 %v1998, %v2222
      %v2255 = vmax.f32 %v1999, %v2223
      %v2256 = vmax.f32 %v2000, %v2224
      %v2257 = vmax.f32 %v2001, %v2225
      %v2258 = vmax.f32 %v2002, %v2226
      %v2259 = vmax.f32 %v2003, %v2227
      %v2260 = vld [vmem:[#allocation2 + $0x22] sm:$0xff]
      %v2261 = vld [vmem:[#allocation2 + $0x2a] sm:$0xff]
      %v2262 = vld [vmem:[#allocation2 + $0x32] sm:$0xff]
      %v2263 = vld [vmem:[#allocation2 + $0x3a] sm:$0xff]
      %v2264 = vld [vmem:[#allocation2 + $0x42] sm:$0xff]
      %v2265 = vld [vmem:[#allocation2 + $0x4a] sm:$0xff]
      %v2266 = vld [vmem:[#allocation2 + $0x52] sm:$0xff]
      %v2267 = vld [vmem:[#allocation2 + $0x5a] sm:$0xff]
      %v2268 = vld [vmem:[#allocation2 + $0x62] sm:$0xff]
      %v2269 = vld [vmem:[#allocation2 + $0x6a] sm:$0xff]
      %v2270 = vld [vmem:[#allocation2 + $0x72] sm:$0xff]
      %v2271 = vld [vmem:[#allocation2 + $0x7a] sm:$0xff]
      %v2272 = vld [vmem:[#allocation2 + $0x82] sm:$0xff]
      %v2273 = vld [vmem:[#allocation2 + $0x8a] sm:$0xff]
      %v2274 = vld [vmem:[#allocation2 + $0x92] sm:$0xff]
      %v2275 = vld [vmem:[#allocation2 + $0x9a] sm:$0xff]
      %v2276 = vld [vmem:[#allocation2 + $0xa2] sm:$0xff]
      %v2277 = vld [vmem:[#allocation2 + $0xaa] sm:$0xff]
      %v2278 = vld [vmem:[#allocation2 + $0xb2] sm:$0xff]
      %v2279 = vld [vmem:[#allocation2 + $0xba] sm:$0xff]
      %v2280 = vld [vmem:[#allocation2 + $0xc2] sm:$0xff]
      %v2281 = vld [vmem:[#allocation2 + $0xca] sm:$0xff]
      %v2282 = vld [vmem:[#allocation2 + $0xd2] sm:$0xff]
      %v2283 = vld [vmem:[#allocation2 + $0xda] sm:$0xff]
      %v2284 = vld [vmem:[#allocation2 + $0xe2] sm:$0xff]
      %v2285 = vld [vmem:[#allocation2 + $0xea] sm:$0xff]
      %v2286 = vld [vmem:[#allocation2 + $0xf2] sm:$0xff]
      %v2287 = vld [vmem:[#allocation2 + $0xfa] sm:$0xff]
      %v2288 = vld [vmem:[#allocation2 + $0x102] sm:$0xff]
      %v2289 = vld [vmem:[#allocation2 + $0x10a] sm:$0xff]
      %v2290 = vld [vmem:[#allocation2 + $0x112] sm:$0xff]
      %v2291 = vld [vmem:[#allocation2 + $0x11a] sm:$0xff]
      %v2292 = vsel %vm390, 1, 0
      %v2293 = vsel %vm391, 1, 0
      %v2294 = vsel %vm392, 1, 0
      %v2295 = vsel %vm393, 1, 0
      %v2296 = vsel %vm394, 1, 0
      %v2297 = vsel %vm395, 1, 0
      %v2298 = vsel %vm396, 1, 0
      %v2299 = vsel %vm397, 1, 0
      %v2300 = vsel %vm398, 1, 0
      %v2301 = vsel %vm399, 1, 0
      %v2302 = vsel %vm400, 1, 0
      %v2303 = vsel %vm401, 1, 0
      %v2304 = vsel %vm402, 1, 0
      %v2305 = vsel %vm403, 1, 0
      %v2306 = vsel %vm404, 1, 0
      %v2307 = vsel %vm405, 1, 0
      %v2308 = vsel %vm406, 1, 0
      %v2309 = vsel %vm407, 1, 0
      %v2310 = vsel %vm408, 1, 0
      %v2311 = vsel %vm409, 1, 0
      %v2312 = vsel %vm410, 1, 0
      %v2313 = vsel %vm411, 1, 0
      %v2314 = vsel %vm412, 1, 0
      %v2315 = vsel %vm413, 1, 0
      %v2316 = vsel %vm414, 1, 0
      %v2317 = vsel %vm415, 1, 0
      %v2318 = vsel %vm416, 1, 0
      %v2319 = vsel %vm417, 1, 0
      %v2320 = vsel %vm418, 1, 0
      %v2321 = vsel %vm419, 1, 0
      %v2322 = vsel %vm420, 1, 0
      %v2323 = vsel %vm421, 1, 0
      %2324 = vset.pattern.permute.xlu0 0
      %2325 = vperm.xlu0 %2324, %v2292
      %v2326 = vpop.permute.xlu0 %2325
      %2327 = vset.pattern.permute.xlu0 0
      %2328 = vperm.xlu0 %2327, %v2293
      %v2329 = vpop.permute.xlu0 %2328
      %2330 = vset.pattern.permute.xlu0 0
      %2331 = vperm.xlu0 %2330, %v2294
      %v2332 = vpop.permute.xlu0 %2331
      %2333 = vset.pattern.permute.xlu0 0
      %2334 = vperm.xlu0 %2333, %v2295
      %v2335 = vpop.permute.xlu0 %2334
      %2336 = vset.pattern.permute.xlu0 0
      %2337 = vperm.xlu0 %2336, %v2296
      %v2338 = vpop.permute.xlu0 %2337
      %2339 = vset.pattern.permute.xlu0 0
      %2340 = vperm.xlu0 %2339, %v2297
      %v2341 = vpop.permute.xlu0 %2340
      %2342 = vset.pattern.permute.xlu0 0
      %2343 = vperm.xlu0 %2342, %v2298
      %v2344 = vpop.permute.xlu0 %2343
      %2345 = vset.pattern.permute.xlu0 0
      %2346 = vperm.xlu0 %2345, %v2299
      %v2347 = vpop.permute.xlu0 %2346
      %2348 = vset.pattern.permute.xlu0 0
      %2349 = vperm.xlu0 %2348, %v2300
      %v2350 = vpop.permute.xlu0 %2349
      %2351 = vset.pattern.permute.xlu0 0
      %2352 = vperm.xlu0 %2351, %v2301
      %v2353 = vpop.permute.xlu0 %2352
      %2354 = vset.pattern.permute.xlu0 0
      %2355 = vperm.xlu0 %2354, %v2302
      %v2356 = vpop.permute.xlu0 %2355
      %2357 = vset.pattern.permute.xlu0 0
      %2358 = vperm.xlu0 %2357, %v2303
      %v2359 = vpop.permute.xlu0 %2358
      %2360 = vset.pattern.permute.xlu0 0
      %2361 = vperm.xlu0 %2360, %v2304
      %v2362 = vpop.permute.xlu0 %2361
      %2363 = vset.pattern.permute.xlu0 0
      %2364 = vperm.xlu0 %2363, %v2305
      %v2365 = vpop.permute.xlu0 %2364
      %2366 = vset.pattern.permute.xlu0 0
      %2367 = vperm.xlu0 %2366, %v2306
      %v2368 = vpop.permute.xlu0 %2367
      %2369 = vset.pattern.permute.xlu0 0
      %2370 = vperm.xlu0 %2369, %v2307
      %v2371 = vpop.permute.xlu0 %2370
      %2372 = vset.pattern.permute.xlu0 0
      %2373 = vperm.xlu0 %2372, %v2308
      %v2374 = vpop.permute.xlu0 %2373
      %2375 = vset.pattern.permute.xlu0 0
      %2376 = vperm.xlu0 %2375, %v2309
      %v2377 = vpop.permute.xlu0 %2376
      %2378 = vset.pattern.permute.xlu0 0
      %2379 = vperm.xlu0 %2378, %v2310
      %v2380 = vpop.permute.xlu0 %2379
      %2381 = vset.pattern.permute.xlu0 0
      %2382 = vperm.xlu0 %2381, %v2311
      %v2383 = vpop.permute.xlu0 %2382
      %2384 = vset.pattern.permute.xlu0 0
      %2385 = vperm.xlu0 %2384, %v2312
      %v2386 = vpop.permute.xlu0 %2385
      %2387 = vset.pattern.permute.xlu0 0
      %2388 = vperm.xlu0 %2387, %v2313
      %v2389 = vpop.permute.xlu0 %2388
      %2390 = vset.pattern.permute.xlu0 0
      %2391 = vperm.xlu0 %2390, %v2314
      %v2392 = vpop.permute.xlu0 %2391
      %2393 = vset.pattern.permute.xlu0 0
      %2394 = vperm.xlu0 %2393, %v2315
      %v2395 = vpop.permute.xlu0 %2394
      %2396 = vset.pattern.permute.xlu0 0
      %2397 = vperm.xlu0 %2396, %v2316
      %v2398 = vpop.permute.xlu0 %2397
      %2399 = vset.pattern.permute.xlu0 0
      %2400 = vperm.xlu0 %2399, %v2317
      %v2401 = vpop.permute.xlu0 %2400
      %2402 = vset.pattern.permute.xlu0 0
      %2403 = vperm.xlu0 %2402, %v2318
      %v2404 = vpop.permute.xlu0 %2403
      %2405 = vset.pattern.permute.xlu0 0
      %2406 = vperm.xlu0 %2405, %v2319
      %v2407 = vpop.permute.xlu0 %2406
      %2408 = vset.pattern.permute.xlu0 0
      %2409 = vperm.xlu0 %2408, %v2320
      %v2410 = vpop.permute.xlu0 %2409
      %2411 = vset.pattern.permute.xlu0 0
      %2412 = vperm.xlu0 %2411, %v2321
      %v2413 = vpop.permute.xlu0 %2412
      %2414 = vset.pattern.permute.xlu0 0
      %2415 = vperm.xlu0 %2414, %v2322
      %v2416 = vpop.permute.xlu0 %2415
      %2417 = vset.pattern.permute.xlu0 0
      %2418 = vperm.xlu0 %2417, %v2323
      %v2419 = vpop.permute.xlu0 %2418
      %vm2420 = vcmp.eq.s32.totalorder %v2326, 1
      %vm2421 = vcmp.eq.s32.totalorder %v2329, 1
      %vm2422 = vcmp.eq.s32.totalorder %v2332, 1
      %vm2423 = vcmp.eq.s32.totalorder %v2335, 1
      %vm2424 = vcmp.eq.s32.totalorder %v2338, 1
      %vm2425 = vcmp.eq.s32.totalorder %v2341, 1
      %vm2426 = vcmp.eq.s32.totalorder %v2344, 1
      %vm2427 = vcmp.eq.s32.totalorder %v2347, 1
      %vm2428 = vcmp.eq.s32.totalorder %v2350, 1
      %vm2429 = vcmp.eq.s32.totalorder %v2353, 1
      %vm2430 = vcmp.eq.s32.totalorder %v2356, 1
      %vm2431 = vcmp.eq.s32.totalorder %v2359, 1
      %vm2432 = vcmp.eq.s32.totalorder %v2362, 1
      %vm2433 = vcmp.eq.s32.totalorder %v2365, 1
      %vm2434 = vcmp.eq.s32.totalorder %v2368, 1
      %vm2435 = vcmp.eq.s32.totalorder %v2371, 1
      %vm2436 = vcmp.eq.s32.totalorder %v2374, 1
      %vm2437 = vcmp.eq.s32.totalorder %v2377, 1
      %vm2438 = vcmp.eq.s32.totalorder %v2380, 1
      %vm2439 = vcmp.eq.s32.totalorder %v2383, 1
      %vm2440 = vcmp.eq.s32.totalorder %v2386, 1
      %vm2441 = vcmp.eq.s32.totalorder %v2389, 1
      %vm2442 = vcmp.eq.s32.totalorder %v2392, 1
      %vm2443 = vcmp.eq.s32.totalorder %v2395, 1
      %vm2444 = vcmp.eq.s32.totalorder %v2398, 1
      %vm2445 = vcmp.eq.s32.totalorder %v2401, 1
      %vm2446 = vcmp.eq.s32.totalorder %v2404, 1
      %vm2447 = vcmp.eq.s32.totalorder %v2407, 1
      %vm2448 = vcmp.eq.s32.totalorder %v2410, 1
      %vm2449 = vcmp.eq.s32.totalorder %v2413, 1
      %vm2450 = vcmp.eq.s32.totalorder %v2416, 1
      %vm2451 = vcmp.eq.s32.totalorder %v2419, 1
      %v2452 = vsel %vm2420, %v2260, -1e+30
      %v2453 = vsel %vm2421, %v2261, -1e+30
      %v2454 = vsel %vm2422, %v2262, -1e+30
      %v2455 = vsel %vm2423, %v2263, -1e+30
      %v2456 = vsel %vm2424, %v2264, -1e+30
      %v2457 = vsel %vm2425, %v2265, -1e+30
      %v2458 = vsel %vm2426, %v2266, -1e+30
      %v2459 = vsel %vm2427, %v2267, -1e+30
      %v2460 = vsel %vm2428, %v2268, -1e+30
      %v2461 = vsel %vm2429, %v2269, -1e+30
      %v2462 = vsel %vm2430, %v2270, -1e+30
      %v2463 = vsel %vm2431, %v2271, -1e+30
      %v2464 = vsel %vm2432, %v2272, -1e+30
      %v2465 = vsel %vm2433, %v2273, -1e+30
      %v2466 = vsel %vm2434, %v2274, -1e+30
      %v2467 = vsel %vm2435, %v2275, -1e+30
      %v2468 = vsel %vm2436, %v2276, -1e+30
      %v2469 = vsel %vm2437, %v2277, -1e+30
      %v2470 = vsel %vm2438, %v2278, -1e+30
      %v2471 = vsel %vm2439, %v2279, -1e+30
      %v2472 = vsel %vm2440, %v2280, -1e+30
      %v2473 = vsel %vm2441, %v2281, -1e+30
      %v2474 = vsel %vm2442, %v2282, -1e+30
      %v2475 = vsel %vm2443, %v2283, -1e+30
      %v2476 = vsel %vm2444, %v2284, -1e+30
      %v2477 = vsel %vm2445, %v2285, -1e+30
      %v2478 = vsel %vm2446, %v2286, -1e+30
      %v2479 = vsel %vm2447, %v2287, -1e+30
      %v2480 = vsel %vm2448, %v2288, -1e+30
      %v2481 = vsel %vm2449, %v2289, -1e+30
      %v2482 = vsel %vm2450, %v2290, -1e+30
      %v2483 = vsel %vm2451, %v2291, -1e+30
      %v2484 = vmax.f32 %v2228, %v2452
      %v2485 = vmax.f32 %v2229, %v2453
      %v2486 = vmax.f32 %v2230, %v2454
      %v2487 = vmax.f32 %v2231, %v2455
      %v2488 = vmax.f32 %v2232, %v2456
      %v2489 = vmax.f32 %v2233, %v2457
      %v2490 = vmax.f32 %v2234, %v2458
      %v2491 = vmax.f32 %v2235, %v2459
      %v2492 = vmax.f32 %v2236, %v2460
      %v2493 = vmax.f32 %v2237, %v2461
      %v2494 = vmax.f32 %v2238, %v2462
      %v2495 = vmax.f32 %v2239, %v2463
      %v2496 = vmax.f32 %v2240, %v2464
      %v2497 = vmax.f32 %v2241, %v2465
      %v2498 = vmax.f32 %v2242, %v2466
      %v2499 = vmax.f32 %v2243, %v2467
      %v2500 = vmax.f32 %v2244, %v2468
      %v2501 = vmax.f32 %v2245, %v2469
      %v2502 = vmax.f32 %v2246, %v2470
      %v2503 = vmax.f32 %v2247, %v2471
      %v2504 = vmax.f32 %v2248, %v2472
      %v2505 = vmax.f32 %v2249, %v2473
      %v2506 = vmax.f32 %v2250, %v2474
      %v2507 = vmax.f32 %v2251, %v2475
      %v2508 = vmax.f32 %v2252, %v2476
      %v2509 = vmax.f32 %v2253, %v2477
      %v2510 = vmax.f32 %v2254, %v2478
      %v2511 = vmax.f32 %v2255, %v2479
      %v2512 = vmax.f32 %v2256, %v2480
      %v2513 = vmax.f32 %v2257, %v2481
      %v2514 = vmax.f32 %v2258, %v2482
      %v2515 = vmax.f32 %v2259, %v2483
      %2516 = vst.msk [vmem:[#allocation2 + $0x20] sm:$0xff] %vm253, %v2484
      %2517 = vst.msk [vmem:[#allocation2 + $0x28] sm:$0xff] %vm253, %v2485
      %2518 = vst.msk [vmem:[#allocation2 + $0x30] sm:$0xff] %vm253, %v2486
      %2519 = vst.msk [vmem:[#allocation2 + $0x38] sm:$0xff] %vm253, %v2487
      %2520 = vst.msk [vmem:[#allocation2 + $0x40] sm:$0xff] %vm253, %v2488
      %2521 = vst.msk [vmem:[#allocation2 + $0x48] sm:$0xff] %vm253, %v2489
      %2522 = vst.msk [vmem:[#allocation2 + $0x50] sm:$0xff] %vm253, %v2490
      %2523 = vst.msk [vmem:[#allocation2 + $0x58] sm:$0xff] %vm253, %v2491
      %2524 = vst.msk [vmem:[#allocation2 + $0x60] sm:$0xff] %vm253, %v2492
      %2525 = vst.msk [vmem:[#allocation2 + $0x68] sm:$0xff] %vm253, %v2493
      %2526 = vst.msk [vmem:[#allocation2 + $0x70] sm:$0xff] %vm253, %v2494
      %2527 = vst.msk [vmem:[#allocation2 + $0x78] sm:$0xff] %vm253, %v2495
      %2528 = vst.msk [vmem:[#allocation2 + $0x80] sm:$0xff] %vm253, %v2496
      %2529 = vst.msk [vmem:[#allocation2 + $0x88] sm:$0xff] %vm253, %v2497
      %2530 = vst.msk [vmem:[#allocation2 + $0x90] sm:$0xff] %vm253, %v2498
      %2531 = vst.msk [vmem:[#allocation2 + $0x98] sm:$0xff] %vm253, %v2499
      %2532 = vst.msk [vmem:[#allocation2 + $0xa0] sm:$0xff] %vm253, %v2500
      %2533 = vst.msk [vmem:[#allocation2 + $0xa8] sm:$0xff] %vm253, %v2501
      %2534 = vst.msk [vmem:[#allocation2 + $0xb0] sm:$0xff] %vm253, %v2502
      %2535 = vst.msk [vmem:[#allocation2 + $0xb8] sm:$0xff] %vm253, %v2503
      %2536 = vst.msk [vmem:[#allocation2 + $0xc0] sm:$0xff] %vm253, %v2504
      %2537 = vst.msk [vmem:[#allocation2 + $0xc8] sm:$0xff] %vm253, %v2505
      %2538 = vst.msk [vmem:[#allocation2 + $0xd0] sm:$0xff] %vm253, %v2506
      %2539 = vst.msk [vmem:[#allocation2 + $0xd8] sm:$0xff] %vm253, %v2507
      %2540 = vst.msk [vmem:[#allocation2 + $0xe0] sm:$0xff] %vm253, %v2508
      %2541 = vst.msk [vmem:[#allocation2 + $0xe8] sm:$0xff] %vm253, %v2509
      %2542 = vst.msk [vmem:[#allocation2 + $0xf0] sm:$0xff] %vm253, %v2510
      %2543 = vst.msk [vmem:[#allocation2 + $0xf8] sm:$0xff] %vm253, %v2511
      %2544 = vst.msk [vmem:[#allocation2 + $0x100] sm:$0xff] %vm253, %v2512
      %2545 = vst.msk [vmem:[#allocation2 + $0x108] sm:$0xff] %vm253, %v2513
      %2546 = vst.msk [vmem:[#allocation2 + $0x110] sm:$0xff] %vm253, %v2514
      %2547 = vst.msk [vmem:[#allocation2 + $0x118] sm:$0xff] %vm253, %v2515
      %v2548 = vld [vmem:[#allocation2] sm:$0xff]
      %v2549 = vld [vmem:[#allocation2 + $0x8] sm:$0xff]
      %v2550 = vld [vmem:[#allocation2 + $0x10] sm:$0xff]
      %v2551 = vld [vmem:[#allocation2 + $0x18] sm:$0xff]
      %v2552 = vld [vmem:[#allocation2 + $0x20] sm:$0xff]
      %v2553 = vld [vmem:[#allocation2 + $0x28] sm:$0xff]
      %v2554 = vld [vmem:[#allocation2 + $0x30] sm:$0xff]
      %v2555 = vld [vmem:[#allocation2 + $0x38] sm:$0xff]
      %v2556 = vld [vmem:[#allocation2 + $0x40] sm:$0xff]
      %v2557 = vld [vmem:[#allocation2 + $0x48] sm:$0xff]
      %v2558 = vld [vmem:[#allocation2 + $0x50] sm:$0xff]
      %v2559 = vld [vmem:[#allocation2 + $0x58] sm:$0xff]
      %v2560 = vld [vmem:[#allocation2 + $0x60] sm:$0xff]
      %v2561 = vld [vmem:[#allocation2 + $0x68] sm:$0xff]
      %v2562 = vld [vmem:[#allocation2 + $0x70] sm:$0xff]
      %v2563 = vld [vmem:[#allocation2 + $0x78] sm:$0xff]
      %v2564 = vld [vmem:[#allocation2 + $0x80] sm:$0xff]
      %v2565 = vld [vmem:[#allocation2 + $0x88] sm:$0xff]
      %v2566 = vld [vmem:[#allocation2 + $0x90] sm:$0xff]
      %v2567 = vld [vmem:[#allocation2 + $0x98] sm:$0xff]
      %v2568 = vld [vmem:[#allocation2 + $0xa0] sm:$0xff]
      %v2569 = vld [vmem:[#allocation2 + $0xa8] sm:$0xff]
      %v2570 = vld [vmem:[#allocation2 + $0xb0] sm:$0xff]
      %v2571 = vld [vmem:[#allocation2 + $0xb8] sm:$0xff]
      %v2572 = vld [vmem:[#allocation2 + $0xc0] sm:$0xff]
      %v2573 = vld [vmem:[#allocation2 + $0xc8] sm:$0xff]
      %v2574 = vld [vmem:[#allocation2 + $0xd0] sm:$0xff]
      %v2575 = vld [vmem:[#allocation2 + $0xd8] sm:$0xff]
      %v2576 = vld [vmem:[#allocation2 + $0xe0] sm:$0xff]
      %v2577 = vld [vmem:[#allocation2 + $0xe8] sm:$0xff]
      %v2578 = vld [vmem:[#allocation2 + $0xf0] sm:$0xff]
      %v2579 = vld [vmem:[#allocation2 + $0xf8] sm:$0xff]
      %v2580 = vmax.f32 %v2484, %v2548
      %v2581 = vmax.f32 %v2485, %v2549
      %v2582 = vmax.f32 %v2486, %v2550
      %v2583 = vmax.f32 %v2487, %v2551
      %v2584 = vmax.f32 %v2488, %v2552
      %v2585 = vmax.f32 %v2489, %v2553
      %v2586 = vmax.f32 %v2490, %v2554
      %v2587 = vmax.f32 %v2491, %v2555
      %v2588 = vmax.f32 %v2492, %v2556
      %v2589 = vmax.f32 %v2493, %v2557
      %v2590 = vmax.f32 %v2494, %v2558
      %v2591 = vmax.f32 %v2495, %v2559
      %v2592 = vmax.f32 %v2496, %v2560
      %v2593 = vmax.f32 %v2497, %v2561
      %v2594 = vmax.f32 %v2498, %v2562
      %v2595 = vmax.f32 %v2499, %v2563
      %v2596 = vmax.f32 %v2500, %v2564
      %v2597 = vmax.f32 %v2501, %v2565
      %v2598 = vmax.f32 %v2502, %v2566
      %v2599 = vmax.f32 %v2503, %v2567
      %v2600 = vmax.f32 %v2504, %v2568
      %v2601 = vmax.f32 %v2505, %v2569
      %v2602 = vmax.f32 %v2506, %v2570
      %v2603 = vmax.f32 %v2507, %v2571
      %v2604 = vmax.f32 %v2508, %v2572
      %v2605 = vmax.f32 %v2509, %v2573
      %v2606 = vmax.f32 %v2510, %v2574
      %v2607 = vmax.f32 %v2511, %v2575
      %v2608 = vmax.f32 %v2512, %v2576
      %v2609 = vmax.f32 %v2513, %v2577
      %v2610 = vmax.f32 %v2514, %v2578
      %v2611 = vmax.f32 %v2515, %v2579
      %v2612 = vld [vmem:[#allocation2 + $0x100] sm:$0xff]
      %v2613 = vld [vmem:[#allocation2 + $0x108] sm:$0xff]
      %v2614 = vmax.f32 %v2580, %v2550
      %v2615 = vmax.f32 %v2581, %v2551
      %v2616 = vmax.f32 %v2582, %v2552
      %v2617 = vmax.f32 %v2583, %v2553
      %v2618 = vmax.f32 %v2584, %v2554
      %v2619 = vmax.f32 %v2585, %v2555
      %v2620 = vmax.f32 %v2586, %v2556
      %v2621 = vmax.f32 %v2587, %v2557
      %v2622 = vmax.f32 %v2588, %v2558
      %v2623 = vmax.f32 %v2589, %v2559
      %v2624 = vmax.f32 %v2590, %v2560
      %v2625 = vmax.f32 %v2591, %v2561
      %v2626 = vmax.f32 %v2592, %v2562
      %v2627 = vmax.f32 %v2593, %v2563
      %v2628 = vmax.f32 %v2594, %v2564
      %v2629 = vmax.f32 %v2595, %v2565
      %v2630 = vmax.f32 %v2596, %v2566
      %v2631 = vmax.f32 %v2597, %v2567
      %v2632 = vmax.f32 %v2598, %v2568
      %v2633 = vmax.f32 %v2599, %v2569
      %v2634 = vmax.f32 %v2600, %v2570
      %v2635 = vmax.f32 %v2601, %v2571
      %v2636 = vmax.f32 %v2602, %v2572
      %v2637 = vmax.f32 %v2603, %v2573
      %v2638 = vmax.f32 %v2604, %v2574
      %v2639 = vmax.f32 %v2605, %v2575
      %v2640 = vmax.f32 %v2606, %v2576
      %v2641 = vmax.f32 %v2607, %v2577
      %v2642 = vmax.f32 %v2608, %v2578
      %v2643 = vmax.f32 %v2609, %v2579
      %v2644 = vmax.f32 %v2610, %v2612
      %v2645 = vmax.f32 %v2611, %v2613
      %v2646 = vld [vmem:[#allocation2 + $0x110] sm:$0xff]
      %v2647 = vld [vmem:[#allocation2 + $0x118] sm:$0xff]
      %v2648 = vld [vmem:[#allocation2 + $0x120] sm:$0xff]
      %v2649 = vld [vmem:[#allocation2 + $0x128] sm:$0xff]
      %v2650 = vmax.f32 %v2614, %v2554
      %v2651 = vmax.f32 %v2615, %v2555
      %v2652 = vmax.f32 %v2616, %v2556
      %v2653 = vmax.f32 %v2617, %v2557
      %v2654 = vmax.f32 %v2618, %v2558
      %v2655 = vmax.f32 %v2619, %v2559
      %v2656 = vmax.f32 %v2620, %v2560
      %v2657 = vmax.f32 %v2621, %v2561
      %v2658 = vmax.f32 %v2622, %v2562
      %v2659 = vmax.f32 %v2623, %v2563
      %v2660 = vmax.f32 %v2624, %v2564
      %v2661 = vmax.f32 %v2625, %v2565
      %v2662 = vmax.f32 %v2626, %v2566
      %v2663 = vmax.f32 %v2627, %v2567
      %v2664 = vmax.f32 %v2628, %v2568
      %v2665 = vmax.f32 %v2629, %v2569
      %v2666 = vmax.f32 %v2630, %v2570
      %v2667 = vmax.f32 %v2631, %v2571
      %v2668 = vmax.f32 %v2632, %v2572
      %v2669 = vmax.f32 %v2633, %v2573
      %v2670 = vmax.f32 %v2634, %v2574
      %v2671 = vmax.f32 %v2635, %v2575
      %v2672 = vmax.f32 %v2636, %v2576
      %v2673 = vmax.f32 %v2637, %v2577
      %v2674 = vmax.f32 %v2638, %v2578
      %v2675 = vmax.f32 %v2639, %v2579
      %v2676 = vmax.f32 %v2640, %v2612
      %v2677 = vmax.f32 %v2641, %v2613
      %v2678 = vmax.f32 %v2642, %v2646
      %v2679 = vmax.f32 %v2643, %v2647
      %v2680 = vmax.f32 %v2644, %v2648
      %v2681 = vmax.f32 %v2645, %v2649
      %v2682 = vld [vmem:[#allocation2 + $0x130] sm:$0xff]
      %v2683 = vld [vmem:[#allocation2 + $0x138] sm:$0xff]
      %v2684 = vmax.f32 %v2650, %v2556
      %v2685 = vmax.f32 %v2651, %v2557
      %v2686 = vmax.f32 %v2652, %v2558
      %v2687 = vmax.f32 %v2653, %v2559
      %v2688 = vmax.f32 %v2654, %v2560
      %v2689 = vmax.f32 %v2655, %v2561
      %v2690 = vmax.f32 %v2656, %v2562
      %v2691 = vmax.f32 %v2657, %v2563
      %v2692 = vmax.f32 %v2658, %v2564
      %v2693 = vmax.f32 %v2659, %v2565
      %v2694 = vmax.f32 %v2660, %v2566
      %v2695 = vmax.f32 %v2661, %v2567
      %v2696 = vmax.f32 %v2662, %v2568
      %v2697 = vmax.f32 %v2663, %v2569
      %v2698 = vmax.f32 %v2664, %v2570
      %v2699 = vmax.f32 %v2665, %v2571
      %v2700 = vmax.f32 %v2666, %v2572
      %v2701 = vmax.f32 %v2667, %v2573
      %v2702 = vmax.f32 %v2668, %v2574
      %v2703 = vmax.f32 %v2669, %v2575
      %v2704 = vmax.f32 %v2670, %v2576
      %v2705 = vmax.f32 %v2671, %v2577
      %v2706 = vmax.f32 %v2672, %v2578
      %v2707 = vmax.f32 %v2673, %v2579
      %v2708 = vmax.f32 %v2674, %v2612
      %v2709 = vmax.f32 %v2675, %v2613
      %v2710 = vmax.f32 %v2676, %v2646
      %v2711 = vmax.f32 %v2677, %v2647
      %v2712 = vmax.f32 %v2678, %v2648
      %v2713 = vmax.f32 %v2679, %v2649
      %v2714 = vmax.f32 %v2680, %v2682
      %v2715 = vmax.f32 %v2681, %v2683
      %2716 = vst.msk [vmem:[#allocation2 + $0x20] sm:$0xff] %vm253, %v2684
      %2717 = vst.msk [vmem:[#allocation2 + $0x28] sm:$0xff] %vm253, %v2685
      %2718 = vst.msk [vmem:[#allocation2 + $0x30] sm:$0xff] %vm253, %v2686
      %2719 = vst.msk [vmem:[#allocation2 + $0x38] sm:$0xff] %vm253, %v2687
      %2720 = vst.msk [vmem:[#allocation2 + $0x40] sm:$0xff] %vm253, %v2688
      %2721 = vst.msk [vmem:[#allocation2 + $0x48] sm:$0xff] %vm253, %v2689
      %2722 = vst.msk [vmem:[#allocation2 + $0x50] sm:$0xff] %vm253, %v2690
      %2723 = vst.msk [vmem:[#allocation2 + $0x58] sm:$0xff] %vm253, %v2691
      %2724 = vst.msk [vmem:[#allocation2 + $0x60] sm:$0xff] %vm253, %v2692
      %2725 = vst.msk [vmem:[#allocation2 + $0x68] sm:$0xff] %vm253, %v2693
      %2726 = vst.msk [vmem:[#allocation2 + $0x70] sm:$0xff] %vm253, %v2694
      %2727 = vst.msk [vmem:[#allocation2 + $0x78] sm:$0xff] %vm253, %v2695
      %2728 = vst.msk [vmem:[#allocation2 + $0x80] sm:$0xff] %vm253, %v2696
      %2729 = vst.msk [vmem:[#allocation2 + $0x88] sm:$0xff] %vm253, %v2697
      %2730 = vst.msk [vmem:[#allocation2 + $0x90] sm:$0xff] %vm253, %v2698
      %2731 = vst.msk [vmem:[#allocation2 + $0x98] sm:$0xff] %vm253, %v2699
      %2732 = vst.msk [vmem:[#allocation2 + $0xa0] sm:$0xff] %vm253, %v2700
      %2733 = vst.msk [vmem:[#allocation2 + $0xa8] sm:$0xff] %vm253, %v2701
      %2734 = vst.msk [vmem:[#allocation2 + $0xb0] sm:$0xff] %vm253, %v2702
      %2735 = vst.msk [vmem:[#allocation2 + $0xb8] sm:$0xff] %vm253, %v2703
      %2736 = vst.msk [vmem:[#allocation2 + $0xc0] sm:$0xff] %vm253, %v2704
      %2737 = vst.msk [vmem:[#allocation2 + $0xc8] sm:$0xff] %vm253, %v2705
      %2738 = vst.msk [vmem:[#allocation2 + $0xd0] sm:$0xff] %vm253, %v2706
      %2739 = vst.msk [vmem:[#allocation2 + $0xd8] sm:$0xff] %vm253, %v2707
      %2740 = vst.msk [vmem:[#allocation2 + $0xe0] sm:$0xff] %vm253, %v2708
      %2741 = vst.msk [vmem:[#allocation2 + $0xe8] sm:$0xff] %vm253, %v2709
      %2742 = vst.msk [vmem:[#allocation2 + $0xf0] sm:$0xff] %vm253, %v2710
      %2743 = vst.msk [vmem:[#allocation2 + $0xf8] sm:$0xff] %vm253, %v2711
      %2744 = vst.msk [vmem:[#allocation2 + $0x100] sm:$0xff] %vm253, %v2712
      %2745 = vst.msk [vmem:[#allocation2 + $0x108] sm:$0xff] %vm253, %v2713
      %2746 = vst.msk [vmem:[#allocation2 + $0x110] sm:$0xff] %vm253, %v2714
      %2747 = vst.msk [vmem:[#allocation2 + $0x118] sm:$0xff] %vm253, %v2715
      %v2748 = vld [vmem:[#allocation2 + $0x1e] sm:$0xff]
      %v2749 = vld [vmem:[#allocation2 + $0x26] sm:$0xff]
      %v2750 = vld [vmem:[#allocation2 + $0x2e] sm:$0xff]
      %v2751 = vld [vmem:[#allocation2 + $0x36] sm:$0xff]
      %v2752 = vld [vmem:[#allocation2 + $0x3e] sm:$0xff]
      %v2753 = vld [vmem:[#allocation2 + $0x46] sm:$0xff]
      %v2754 = vld [vmem:[#allocation2 + $0x4e] sm:$0xff]
      %v2755 = vld [vmem:[#allocation2 + $0x56] sm:$0xff]
      %v2756 = vld [vmem:[#allocation2 + $0x5e] sm:$0xff]
      %v2757 = vld [vmem:[#allocation2 + $0x66] sm:$0xff]
      %v2758 = vld [vmem:[#allocation2 + $0x6e] sm:$0xff]
      %v2759 = vld [vmem:[#allocation2 + $0x76] sm:$0xff]
      %v2760 = vld [vmem:[#allocation2 + $0x7e] sm:$0xff]
      %v2761 = vld [vmem:[#allocation2 + $0x86] sm:$0xff]
      %v2762 = vld [vmem:[#allocation2 + $0x8e] sm:$0xff]
      %v2763 = vld [vmem:[#allocation2 + $0x96] sm:$0xff]
      %v2764 = vld [vmem:[#allocation2 + $0x9e] sm:$0xff]
      %v2765 = vld [vmem:[#allocation2 + $0xa6] sm:$0xff]
      %v2766 = vld [vmem:[#allocation2 + $0xae] sm:$0xff]
      %v2767 = vld [vmem:[#allocation2 + $0xb6] sm:$0xff]
      %v2768 = vld [vmem:[#allocation2 + $0xbe] sm:$0xff]
      %v2769 = vld [vmem:[#allocation2 + $0xc6] sm:$0xff]
      %v2770 = vld [vmem:[#allocation2 + $0xce] sm:$0xff]
      %v2771 = vld [vmem:[#allocation2 + $0xd6] sm:$0xff]
      %v2772 = vld [vmem:[#allocation2 + $0xde] sm:$0xff]
      %v2773 = vld [vmem:[#allocation2 + $0xe6] sm:$0xff]
      %v2774 = vld [vmem:[#allocation2 + $0xee] sm:$0xff]
      %v2775 = vld [vmem:[#allocation2 + $0xf6] sm:$0xff]
      %v2776 = vld [vmem:[#allocation2 + $0xfe] sm:$0xff]
      %v2777 = vld [vmem:[#allocation2 + $0x106] sm:$0xff]
      %v2778 = vld [vmem:[#allocation2 + $0x10e] sm:$0xff]
      %v2779 = vld [vmem:[#allocation2 + $0x116] sm:$0xff]
      %v2780 = vsel %vm1652, %v2748, -1e+30
      %v2781 = vsel %vm1653, %v2749, -1e+30
      %v2782 = vsel %vm1654, %v2750, -1e+30
      %v2783 = vsel %vm1655, %v2751, -1e+30
      %v2784 = vsel %vm1656, %v2752, -1e+30
      %v2785 = vsel %vm1657, %v2753, -1e+30
      %v2786 = vsel %vm1658, %v2754, -1e+30
      %v2787 = vsel %vm1659, %v2755, -1e+30
      %v2788 = vsel %vm1660, %v2756, -1e+30
      %v2789 = vsel %vm1661, %v2757, -1e+30
      %v2790 = vsel %vm1662, %v2758, -1e+30
      %v2791 = vsel %vm1663, %v2759, -1e+30
      %v2792 = vsel %vm1664, %v2760, -1e+30
      %v2793 = vsel %vm1665, %v2761, -1e+30
      %v2794 = vsel %vm1666, %v2762, -1e+30
      %v2795 = vsel %vm1667, %v2763, -1e+30
      %v2796 = vsel %vm1668, %v2764, -1e+30
      %v2797 = vsel %vm1669, %v2765, -1e+30
      %v2798 = vsel %vm1670, %v2766, -1e+30
      %v2799 = vsel %vm1671, %v2767, -1e+30
      %v2800 = vsel %vm1672, %v2768, -1e+30
      %v2801 = vsel %vm1673, %v2769, -1e+30
      %v2802 = vsel %vm1674, %v2770, -1e+30
      %v2803 = vsel %vm1675, %v2771, -1e+30
      %v2804 = vsel %vm1676, %v2772, -1e+30
      %v2805 = vsel %vm1677, %v2773, -1e+30
      %v2806 = vsel %vm1678, %v2774, -1e+30
      %v2807 = vsel %vm1679, %v2775, -1e+30
      %v2808 = vsel %vm1680, %v2776, -1e+30
      %v2809 = vsel %vm1681, %v2777, -1e+30
      %v2810 = vsel %vm1682, %v2778, -1e+30
      %v2811 = vsel %vm1683, %v2779, -1e+30
      %v2812 = vmax.f32 %v2684, %v2780
      %v2813 = vmax.f32 %v2685, %v2781
      %v2814 = vmax.f32 %v2686, %v2782
      %v2815 = vmax.f32 %v2687, %v2783
      %v2816 = vmax.f32 %v2688, %v2784
      %v2817 = vmax.f32 %v2689, %v2785
      %v2818 = vmax.f32 %v2690, %v2786
      %v2819 = vmax.f32 %v2691, %v2787
      %v2820 = vmax.f32 %v2692, %v2788
      %v2821 = vmax.f32 %v2693, %v2789
      %v2822 = vmax.f32 %v2694, %v2790
      %v2823 = vmax.f32 %v2695, %v2791
      %v2824 = vmax.f32 %v2696, %v2792
      %v2825 = vmax.f32 %v2697, %v2793
      %v2826 = vmax.f32 %v2698, %v2794
      %v2827 = vmax.f32 %v2699, %v2795
      %v2828 = vmax.f32 %v2700, %v2796
      %v2829 = vmax.f32 %v2701, %v2797
      %v2830 = vmax.f32 %v2702, %v2798
      %v2831 = vmax.f32 %v2703, %v2799
      %v2832 = vmax.f32 %v2704, %v2800
      %v2833 = vmax.f32 %v2705, %v2801
      %v2834 = vmax.f32 %v2706, %v2802
      %v2835 = vmax.f32 %v2707, %v2803
      %v2836 = vmax.f32 %v2708, %v2804
      %v2837 = vmax.f32 %v2709, %v2805
      %v2838 = vmax.f32 %v2710, %v2806
      %v2839 = vmax.f32 %v2711, %v2807
      %v2840 = vmax.f32 %v2712, %v2808
      %v2841 = vmax.f32 %v2713, %v2809
      %v2842 = vmax.f32 %v2714, %v2810
      %v2843 = vmax.f32 %v2715, %v2811
      %v2844 = vld [vmem:[#allocation2 + $0x1f] sm:$0xff]
      %v2845 = vld [vmem:[#allocation2 + $0x27] sm:$0xff]
      %v2846 = vld [vmem:[#allocation2 + $0x2f] sm:$0xff]
      %v2847 = vld [vmem:[#allocation2 + $0x37] sm:$0xff]
      %v2848 = vld [vmem:[#allocation2 + $0x3f] sm:$0xff]
      %v2849 = vld [vmem:[#allocation2 + $0x47] sm:$0xff]
      %v2850 = vld [vmem:[#allocation2 + $0x4f] sm:$0xff]
      %v2851 = vld [vmem:[#allocation2 + $0x57] sm:$0xff]
      %v2852 = vld [vmem:[#allocation2 + $0x5f] sm:$0xff]
      %v2853 = vld [vmem:[#allocation2 + $0x67] sm:$0xff]
      %v2854 = vld [vmem:[#allocation2 + $0x6f] sm:$0xff]
      %v2855 = vld [vmem:[#allocation2 + $0x77] sm:$0xff]
      %v2856 = vld [vmem:[#allocation2 + $0x7f] sm:$0xff]
      %v2857 = vld [vmem:[#allocation2 + $0x87] sm:$0xff]
      %v2858 = vld [vmem:[#allocation2 + $0x8f] sm:$0xff]
      %v2859 = vld [vmem:[#allocation2 + $0x97] sm:$0xff]
      %v2860 = vld [vmem:[#allocation2 + $0x9f] sm:$0xff]
      %v2861 = vld [vmem:[#allocation2 + $0xa7] sm:$0xff]
      %v2862 = vld [vmem:[#allocation2 + $0xaf] sm:$0xff]
      %v2863 = vld [vmem:[#allocation2 + $0xb7] sm:$0xff]
      %v2864 = vld [vmem:[#allocation2 + $0xbf] sm:$0xff]
      %v2865 = vld [vmem:[#allocation2 + $0xc7] sm:$0xff]
      %v2866 = vld [vmem:[#allocation2 + $0xcf] sm:$0xff]
      %v2867 = vld [vmem:[#allocation2 + $0xd7] sm:$0xff]
      %v2868 = vld [vmem:[#allocation2 + $0xdf] sm:$0xff]
      %v2869 = vld [vmem:[#allocation2 + $0xe7] sm:$0xff]
      %v2870 = vld [vmem:[#allocation2 + $0xef] sm:$0xff]
      %v2871 = vld [vmem:[#allocation2 + $0xf7] sm:$0xff]
      %v2872 = vld [vmem:[#allocation2 + $0xff] sm:$0xff]
      %v2873 = vld [vmem:[#allocation2 + $0x107] sm:$0xff]
      %v2874 = vld [vmem:[#allocation2 + $0x10f] sm:$0xff]
      %v2875 = vld [vmem:[#allocation2 + $0x117] sm:$0xff]
      %v2876 = vsel %vm1908, %v2844, -1e+30
      %v2877 = vsel %vm1909, %v2845, -1e+30
      %v2878 = vsel %vm1910, %v2846, -1e+30
      %v2879 = vsel %vm1911, %v2847, -1e+30
      %v2880 = vsel %vm1912, %v2848, -1e+30
      %v2881 = vsel %vm1913, %v2849, -1e+30
      %v2882 = vsel %vm1914, %v2850, -1e+30
      %v2883 = vsel %vm1915, %v2851, -1e+30
      %v2884 = vsel %vm1916, %v2852, -1e+30
      %v2885 = vsel %vm1917, %v2853, -1e+30
      %v2886 = vsel %vm1918, %v2854, -1e+30
      %v2887 = vsel %vm1919, %v2855, -1e+30
      %v2888 = vsel %vm1920, %v2856, -1e+30
      %v2889 = vsel %vm1921, %v2857, -1e+30
      %v2890 = vsel %vm1922, %v2858, -1e+30
      %v2891 = vsel %vm1923, %v2859, -1e+30
      %v2892 = vsel %vm1924, %v2860, -1e+30
      %v2893 = vsel %vm1925, %v2861, -1e+30
      %v2894 = vsel %vm1926, %v2862, -1e+30
      %v2895 = vsel %vm1927, %v2863, -1e+30
      %v2896 = vsel %vm1928, %v2864, -1e+30
      %v2897 = vsel %vm1929, %v2865, -1e+30
      %v2898 = vsel %vm1930, %v2866, -1e+30
      %v2899 = vsel %vm1931, %v2867, -1e+30
      %v2900 = vsel %vm1932, %v2868, -1e+30
      %v2901 = vsel %vm1933, %v2869, -1e+30
      %v2902 = vsel %vm1934, %v2870, -1e+30
      %v2903 = vsel %vm1935, %v2871, -1e+30
      %v2904 = vsel %vm1936, %v2872, -1e+30
      %v2905 = vsel %vm1937, %v2873, -1e+30
      %v2906 = vsel %vm1938, %v2874, -1e+30
      %v2907 = vsel %vm1939, %v2875, -1e+30
      %v2908 = vmax.f32 %v2812, %v2876
      %v2909 = vmax.f32 %v2813, %v2877
      %v2910 = vmax.f32 %v2814, %v2878
      %v2911 = vmax.f32 %v2815, %v2879
      %v2912 = vmax.f32 %v2816, %v2880
      %v2913 = vmax.f32 %v2817, %v2881
      %v2914 = vmax.f32 %v2818, %v2882
      %v2915 = vmax.f32 %v2819, %v2883
      %v2916 = vmax.f32 %v2820, %v2884
      %v2917 = vmax.f32 %v2821, %v2885
      %v2918 = vmax.f32 %v2822, %v2886
      %v2919 = vmax.f32 %v2823, %v2887
      %v2920 = vmax.f32 %v2824, %v2888
      %v2921 = vmax.f32 %v2825, %v2889
      %v2922 = vmax.f32 %v2826, %v2890
      %v2923 = vmax.f32 %v2827, %v2891
      %v2924 = vmax.f32 %v2828, %v2892
      %v2925 = vmax.f32 %v2829, %v2893
      %v2926 = vmax.f32 %v2830, %v2894
      %v2927 = vmax.f32 %v2831, %v2895
      %v2928 = vmax.f32 %v2832, %v2896
      %v2929 = vmax.f32 %v2833, %v2897
      %v2930 = vmax.f32 %v2834, %v2898
      %v2931 = vmax.f32 %v2835, %v2899
      %v2932 = vmax.f32 %v2836, %v2900
      %v2933 = vmax.f32 %v2837, %v2901
      %v2934 = vmax.f32 %v2838, %v2902
      %v2935 = vmax.f32 %v2839, %v2903
      %v2936 = vmax.f32 %v2840, %v2904
      %v2937 = vmax.f32 %v2841, %v2905
      %v2938 = vmax.f32 %v2842, %v2906
      %v2939 = vmax.f32 %v2843, %v2907
      %v2940 = vld [vmem:[#allocation2 + $0x21] sm:$0xff]
      %v2941 = vld [vmem:[#allocation2 + $0x29] sm:$0xff]
      %v2942 = vld [vmem:[#allocation2 + $0x31] sm:$0xff]
      %v2943 = vld [vmem:[#allocation2 + $0x39] sm:$0xff]
      %v2944 = vld [vmem:[#allocation2 + $0x41] sm:$0xff]
      %v2945 = vld [vmem:[#allocation2 + $0x49] sm:$0xff]
      %v2946 = vld [vmem:[#allocation2 + $0x51] sm:$0xff]
      %v2947 = vld [vmem:[#allocation2 + $0x59] sm:$0xff]
      %v2948 = vld [vmem:[#allocation2 + $0x61] sm:$0xff]
      %v2949 = vld [vmem:[#allocation2 + $0x69] sm:$0xff]
      %v2950 = vld [vmem:[#allocation2 + $0x71] sm:$0xff]
      %v2951 = vld [vmem:[#allocation2 + $0x79] sm:$0xff]
      %v2952 = vld [vmem:[#allocation2 + $0x81] sm:$0xff]
      %v2953 = vld [vmem:[#allocation2 + $0x89] sm:$0xff]
      %v2954 = vld [vmem:[#allocation2 + $0x91] sm:$0xff]
      %v2955 = vld [vmem:[#allocation2 + $0x99] sm:$0xff]
      %v2956 = vld [vmem:[#allocation2 + $0xa1] sm:$0xff]
      %v2957 = vld [vmem:[#allocation2 + $0xa9] sm:$0xff]
      %v2958 = vld [vmem:[#allocation2 + $0xb1] sm:$0xff]
      %v2959 = vld [vmem:[#allocation2 + $0xb9] sm:$0xff]
      %v2960 = vld [vmem:[#allocation2 + $0xc1] sm:$0xff]
      %v2961 = vld [vmem:[#allocation2 + $0xc9] sm:$0xff]
      %v2962 = vld [vmem:[#allocation2 + $0xd1] sm:$0xff]
      %v2963 = vld [vmem:[#allocation2 + $0xd9] sm:$0xff]
      %v2964 = vld [vmem:[#allocation2 + $0xe1] sm:$0xff]
      %v2965 = vld [vmem:[#allocation2 + $0xe9] sm:$0xff]
      %v2966 = vld [vmem:[#allocation2 + $0xf1] sm:$0xff]
      %v2967 = vld [vmem:[#allocation2 + $0xf9] sm:$0xff]
      %v2968 = vld [vmem:[#allocation2 + $0x101] sm:$0xff]
      %v2969 = vld [vmem:[#allocation2 + $0x109] sm:$0xff]
      %v2970 = vld [vmem:[#allocation2 + $0x111] sm:$0xff]
      %v2971 = vld [vmem:[#allocation2 + $0x119] sm:$0xff]
      %v2972 = vsel %vm2164, %v2940, -1e+30
      %v2973 = vsel %vm2165, %v2941, -1e+30
      %v2974 = vsel %vm2166, %v2942, -1e+30
      %v2975 = vsel %vm2167, %v2943, -1e+30
      %v2976 = vsel %vm2168, %v2944, -1e+30
      %v2977 = vsel %vm2169, %v2945, -1e+30
      %v2978 = vsel %vm2170, %v2946, -1e+30
      %v2979 = vsel %vm2171, %v2947, -1e+30
      %v2980 = vsel %vm2172, %v2948, -1e+30
      %v2981 = vsel %vm2173, %v2949, -1e+30
      %v2982 = vsel %vm2174, %v2950, -1e+30
      %v2983 = vsel %vm2175, %v2951, -1e+30
      %v2984 = vsel %vm2176, %v2952, -1e+30
      %v2985 = vsel %vm2177, %v2953, -1e+30
      %v2986 = vsel %vm2178, %v2954, -1e+30
      %v2987 = vsel %vm2179, %v2955, -1e+30
      %v2988 = vsel %vm2180, %v2956, -1e+30
      %v2989 = vsel %vm2181, %v2957, -1e+30
      %v2990 = vsel %vm2182, %v2958, -1e+30
      %v2991 = vsel %vm2183, %v2959, -1e+30
      %v2992 = vsel %vm2184, %v2960, -1e+30
      %v2993 = vsel %vm2185, %v2961, -1e+30
      %v2994 = vsel %vm2186, %v2962, -1e+30
      %v2995 = vsel %vm2187, %v2963, -1e+30
      %v2996 = vsel %vm2188, %v2964, -1e+30
      %v2997 = vsel %vm2189, %v2965, -1e+30
      %v2998 = vsel %vm2190, %v2966, -1e+30
      %v2999 = vsel %vm2191, %v2967, -1e+30
      %v3000 = vsel %vm2192, %v2968, -1e+30
      %v3001 = vsel %vm2193, %v2969, -1e+30
      %v3002 = vsel %vm2194, %v2970, -1e+30
      %v3003 = vsel %vm2195, %v2971, -1e+30
      %v3004 = vmax.f32 %v2908, %v2972
      %v3005 = vmax.f32 %v2909, %v2973
      %v3006 = vmax.f32 %v2910, %v2974
      %v3007 = vmax.f32 %v2911, %v2975
      %v3008 = vmax.f32 %v2912, %v2976
      %v3009 = vmax.f32 %v2913, %v2977
      %v3010 = vmax.f32 %v2914, %v2978
      %v3011 = vmax.f32 %v2915, %v2979
      %v3012 = vmax.f32 %v2916, %v2980
      %v3013 = vmax.f32 %v2917, %v2981
      %v3014 = vmax.f32 %v2918, %v2982
      %v3015 = vmax.f32 %v2919, %v2983
      %v3016 = vmax.f32 %v2920, %v2984
      %v3017 = vmax.f32 %v2921, %v2985
      %v3018 = vmax.f32 %v2922, %v2986
      %v3019 = vmax.f32 %v2923, %v2987
      %v3020 = vmax.f32 %v2924, %v2988
      %v3021 = vmax.f32 %v2925, %v2989
      %v3022 = vmax.f32 %v2926, %v2990
      %v3023 = vmax.f32 %v2927, %v2991
      %v3024 = vmax.f32 %v2928, %v2992
      %v3025 = vmax.f32 %v2929, %v2993
      %v3026 = vmax.f32 %v2930, %v2994
      %v3027 = vmax.f32 %v2931, %v2995
      %v3028 = vmax.f32 %v2932, %v2996
      %v3029 = vmax.f32 %v2933, %v2997
      %v3030 = vmax.f32 %v2934, %v2998
      %v3031 = vmax.f32 %v2935, %v2999
      %v3032 = vmax.f32 %v2936, %v3000
      %v3033 = vmax.f32 %v2937, %v3001
      %v3034 = vmax.f32 %v2938, %v3002
      %v3035 = vmax.f32 %v2939, %v3003
      %v3036 = vld [vmem:[#allocation2 + $0x22] sm:$0xff]
      %v3037 = vld [vmem:[#allocation2 + $0x2a] sm:$0xff]
      %v3038 = vld [vmem:[#allocation2 + $0x32] sm:$0xff]
      %v3039 = vld [vmem:[#allocation2 + $0x3a] sm:$0xff]
      %v3040 = vld [vmem:[#allocation2 + $0x42] sm:$0xff]
      %v3041 = vld [vmem:[#allocation2 + $0x4a] sm:$0xff]
      %v3042 = vld [vmem:[#allocation2 + $0x52] sm:$0xff]
      %v3043 = vld [vmem:[#allocation2 + $0x5a] sm:$0xff]
      %v3044 = vld [vmem:[#allocation2 + $0x62] sm:$0xff]
      %v3045 = vld [vmem:[#allocation2 + $0x6a] sm:$0xff]
      %v3046 = vld [vmem:[#allocation2 + $0x72] sm:$0xff]
      %v3047 = vld [vmem:[#allocation2 + $0x7a] sm:$0xff]
      %v3048 = vld [vmem:[#allocation2 + $0x82] sm:$0xff]
      %v3049 = vld [vmem:[#allocation2 + $0x8a] sm:$0xff]
      %v3050 = vld [vmem:[#allocation2 + $0x92] sm:$0xff]
      %v3051 = vld [vmem:[#allocation2 + $0x9a] sm:$0xff]
      %v3052 = vld [vmem:[#allocation2 + $0xa2] sm:$0xff]
      %v3053 = vld [vmem:[#allocation2 + $0xaa] sm:$0xff]
      %v3054 = vld [vmem:[#allocation2 + $0xb2] sm:$0xff]
      %v3055 = vld [vmem:[#allocation2 + $0xba] sm:$0xff]
      %v3056 = vld [vmem:[#allocation2 + $0xc2] sm:$0xff]
      %v3057 = vld [vmem:[#allocation2 + $0xca] sm:$0xff]
      %v3058 = vld [vmem:[#allocation2 + $0xd2] sm:$0xff]
      %v3059 = vld [vmem:[#allocation2 + $0xda] sm:$0xff]
      %v3060 = vld [vmem:[#allocation2 + $0xe2] sm:$0xff]
      %v3061 = vld [vmem:[#allocation2 + $0xea] sm:$0xff]
      %v3062 = vld [vmem:[#allocation2 + $0xf2] sm:$0xff]
      %v3063 = vld [vmem:[#allocation2 + $0xfa] sm:$0xff]
      %v3064 = vld [vmem:[#allocation2 + $0x102] sm:$0xff]
      %v3065 = vld [vmem:[#allocation2 + $0x10a] sm:$0xff]
      %v3066 = vld [vmem:[#allocation2 + $0x112] sm:$0xff]
      %v3067 = vld [vmem:[#allocation2 + $0x11a] sm:$0xff]
      %v3068 = vsel %vm2420, %v3036, -1e+30
      %v3069 = vsel %vm2421, %v3037, -1e+30
      %v3070 = vsel %vm2422, %v3038, -1e+30
      %v3071 = vsel %vm2423, %v3039, -1e+30
      %v3072 = vsel %vm2424, %v3040, -1e+30
      %v3073 = vsel %vm2425, %v3041, -1e+30
      %v3074 = vsel %vm2426, %v3042, -1e+30
      %v3075 = vsel %vm2427, %v3043, -1e+30
      %v3076 = vsel %vm2428, %v3044, -1e+30
      %v3077 = vsel %vm2429, %v3045, -1e+30
      %v3078 = vsel %vm2430, %v3046, -1e+30
      %v3079 = vsel %vm2431, %v3047, -1e+30
      %v3080 = vsel %vm2432, %v3048, -1e+30
      %v3081 = vsel %vm2433, %v3049, -1e+30
      %v3082 = vsel %vm2434, %v3050, -1e+30
      %v3083 = vsel %vm2435, %v3051, -1e+30
      %v3084 = vsel %vm2436, %v3052, -1e+30
      %v3085 = vsel %vm2437, %v3053, -1e+30
      %v3086 = vsel %vm2438, %v3054, -1e+30
      %v3087 = vsel %vm2439, %v3055, -1e+30
      %v3088 = vsel %vm2440, %v3056, -1e+30
      %v3089 = vsel %vm2441, %v3057, -1e+30
      %v3090 = vsel %vm2442, %v3058, -1e+30
      %v3091 = vsel %vm2443, %v3059, -1e+30
      %v3092 = vsel %vm2444, %v3060, -1e+30
      %v3093 = vsel %vm2445, %v3061, -1e+30
      %v3094 = vsel %vm2446, %v3062, -1e+30
      %v3095 = vsel %vm2447, %v3063, -1e+30
      %v3096 = vsel %vm2448, %v3064, -1e+30
      %v3097 = vsel %vm2449, %v3065, -1e+30
      %v3098 = vsel %vm2450, %v3066, -1e+30
      %v3099 = vsel %vm2451, %v3067, -1e+30
      %v3100 = vmax.f32 %v3004, %v3068
      %v3101 = vmax.f32 %v3005, %v3069
      %v3102 = vmax.f32 %v3006, %v3070
      %v3103 = vmax.f32 %v3007, %v3071
      %v3104 = vmax.f32 %v3008, %v3072
      %v3105 = vmax.f32 %v3009, %v3073
      %v3106 = vmax.f32 %v3010, %v3074
      %v3107 = vmax.f32 %v3011, %v3075
      %v3108 = vmax.f32 %v3012, %v3076
      %v3109 = vmax.f32 %v3013, %v3077
      %v3110 = vmax.f32 %v3014, %v3078
      %v3111 = vmax.f32 %v3015, %v3079
      %v3112 = vmax.f32 %v3016, %v3080
      %v3113 = vmax.f32 %v3017, %v3081
      %v3114 = vmax.f32 %v3018, %v3082
      %v3115 = vmax.f32 %v3019, %v3083
      %v3116 = vmax.f32 %v3020, %v3084
      %v3117 = vmax.f32 %v3021, %v3085
      %v3118 = vmax.f32 %v3022, %v3086
      %v3119 = vmax.f32 %v3023, %v3087
      %v3120 = vmax.f32 %v3024, %v3088
      %v3121 = vmax.f32 %v3025, %v3089
      %v3122 = vmax.f32 %v3026, %v3090
      %v3123 = vmax.f32 %v3027, %v3091
      %v3124 = vmax.f32 %v3028, %v3092
      %v3125 = vmax.f32 %v3029, %v3093
      %v3126 = vmax.f32 %v3030, %v3094
      %v3127 = vmax.f32 %v3031, %v3095
      %v3128 = vmax.f32 %v3032, %v3096
      %v3129 = vmax.f32 %v3033, %v3097
      %v3130 = vmax.f32 %v3034, %v3098
      %v3131 = vmax.f32 %v3035, %v3099
      %3132 = vst.msk [vmem:[#allocation2 + $0x20] sm:$0xff] %vm253, %v3100
      %3133 = vst.msk [vmem:[#allocation2 + $0x28] sm:$0xff] %vm253, %v3101
      %3134 = vst.msk [vmem:[#allocation2 + $0x30] sm:$0xff] %vm253, %v3102
      %3135 = vst.msk [vmem:[#allocation2 + $0x38] sm:$0xff] %vm253, %v3103
      %3136 = vst.msk [vmem:[#allocation2 + $0x40] sm:$0xff] %vm253, %v3104
      %3137 = vst.msk [vmem:[#allocation2 + $0x48] sm:$0xff] %vm253, %v3105
      %3138 = vst.msk [vmem:[#allocation2 + $0x50] sm:$0xff] %vm253, %v3106
      %3139 = vst.msk [vmem:[#allocation2 + $0x58] sm:$0xff] %vm253, %v3107
      %3140 = vst.msk [vmem:[#allocation2 + $0x60] sm:$0xff] %vm253, %v3108
      %3141 = vst.msk [vmem:[#allocation2 + $0x68] sm:$0xff] %vm253, %v3109
      %3142 = vst.msk [vmem:[#allocation2 + $0x70] sm:$0xff] %vm253, %v3110
      %3143 = vst.msk [vmem:[#allocation2 + $0x78] sm:$0xff] %vm253, %v3111
      %3144 = vst.msk [vmem:[#allocation2 + $0x80] sm:$0xff] %vm253, %v3112
      %3145 = vst.msk [vmem:[#allocation2 + $0x88] sm:$0xff] %vm253, %v3113
      %3146 = vst.msk [vmem:[#allocation2 + $0x90] sm:$0xff] %vm253, %v3114
      %3147 = vst.msk [vmem:[#allocation2 + $0x98] sm:$0xff] %vm253, %v3115
      %3148 = vst.msk [vmem:[#allocation2 + $0xa0] sm:$0xff] %vm253, %v3116
      %3149 = vst.msk [vmem:[#allocation2 + $0xa8] sm:$0xff] %vm253, %v3117
      %3150 = vst.msk [vmem:[#allocation2 + $0xb0] sm:$0xff] %vm253, %v3118
      %3151 = vst.msk [vmem:[#allocation2 + $0xb8] sm:$0xff] %vm253, %v3119
      %3152 = vst.msk [vmem:[#allocation2 + $0xc0] sm:$0xff] %vm253, %v3120
      %3153 = vst.msk [vmem:[#allocation2 + $0xc8] sm:$0xff] %vm253, %v3121
      %3154 = vst.msk [vmem:[#allocation2 + $0xd0] sm:$0xff] %vm253, %v3122
      %3155 = vst.msk [vmem:[#allocation2 + $0xd8] sm:$0xff] %vm253, %v3123
      %3156 = vst.msk [vmem:[#allocation2 + $0xe0] sm:$0xff] %vm253, %v3124
      %3157 = vst.msk [vmem:[#allocation2 + $0xe8] sm:$0xff] %vm253, %v3125
      %3158 = vst.msk [vmem:[#allocation2 + $0xf0] sm:$0xff] %vm253, %v3126
      %3159 = vst.msk [vmem:[#allocation2 + $0xf8] sm:$0xff] %vm253, %v3127
      %3160 = vst.msk [vmem:[#allocation2 + $0x100] sm:$0xff] %vm253, %v3128
      %3161 = vst.msk [vmem:[#allocation2 + $0x108] sm:$0xff] %vm253, %v3129
      %3162 = vst.msk [vmem:[#allocation2 + $0x110] sm:$0xff] %vm253, %v3130
      %3163 = vst.msk [vmem:[#allocation2 + $0x118] sm:$0xff] %vm253, %v3131
      %v3164 = vld [vmem:[#allocation2] sm:$0xff]
      %v3165 = vld [vmem:[#allocation2 + $0x8] sm:$0xff]
      %v3166 = vld [vmem:[#allocation2 + $0x10] sm:$0xff]
      %v3167 = vld [vmem:[#allocation2 + $0x18] sm:$0xff]
      %v3168 = vld [vmem:[#allocation2 + $0x20] sm:$0xff]
      %v3169 = vld [vmem:[#allocation2 + $0x28] sm:$0xff]
      %v3170 = vld [vmem:[#allocation2 + $0x30] sm:$0xff]
      %v3171 = vld [vmem:[#allocation2 + $0x38] sm:$0xff]
      %v3172 = vld [vmem:[#allocation2 + $0x40] sm:$0xff]
      %v3173 = vld [vmem:[#allocation2 + $0x48] sm:$0xff]
      %v3174 = vld [vmem:[#allocation2 + $0x50] sm:$0xff]
      %v3175 = vld [vmem:[#allocation2 + $0x58] sm:$0xff]
      %v3176 = vld [vmem:[#allocation2 + $0x60] sm:$0xff]
      %v3177 = vld [vmem:[#allocation2 + $0x68] sm:$0xff]
      %v3178 = vld [vmem:[#allocation2 + $0x70] sm:$0xff]
      %v3179 = vld [vmem:[#allocation2 + $0x78] sm:$0xff]
      %v3180 = vld [vmem:[#allocation2 + $0x80] sm:$0xff]
      %v3181 = vld [vmem:[#allocation2 + $0x88] sm:$0xff]
      %v3182 = vld [vmem:[#allocation2 + $0x90] sm:$0xff]
      %v3183 = vld [vmem:[#allocation2 + $0x98] sm:$0xff]
      %v3184 = vld [vmem:[#allocation2 + $0xa0] sm:$0xff]
      %v3185 = vld [vmem:[#allocation2 + $0xa8] sm:$0xff]
      %v3186 = vld [vmem:[#allocation2 + $0xb0] sm:$0xff]
      %v3187 = vld [vmem:[#allocation2 + $0xb8] sm:$0xff]
      %v3188 = vld [vmem:[#allocation2 + $0xc0] sm:$0xff]
      %v3189 = vld [vmem:[#allocation2 + $0xc8] sm:$0xff]
      %v3190 = vld [vmem:[#allocation2 + $0xd0] sm:$0xff]
      %v3191 = vld [vmem:[#allocation2 + $0xd8] sm:$0xff]
      %v3192 = vld [vmem:[#allocation2 + $0xe0] sm:$0xff]
      %v3193 = vld [vmem:[#allocation2 + $0xe8] sm:$0xff]
      %v3194 = vld [vmem:[#allocation2 + $0xf0] sm:$0xff]
      %v3195 = vld [vmem:[#allocation2 + $0xf8] sm:$0xff]
      %v3196 = vmax.f32 %v3100, %v3164
      %v3197 = vmax.f32 %v3101, %v3165
      %v3198 = vmax.f32 %v3102, %v3166
      %v3199 = vmax.f32 %v3103, %v3167
      %v3200 = vmax.f32 %v3104, %v3168
      %v3201 = vmax.f32 %v3105, %v3169
      %v3202 = vmax.f32 %v3106, %v3170
      %v3203 = vmax.f32 %v3107, %v3171
      %v3204 = vmax.f32 %v3108, %v3172
      %v3205 = vmax.f32 %v3109, %v3173
      %v3206 = vmax.f32 %v3110, %v3174
      %v3207 = vmax.f32 %v3111, %v3175
      %v3208 = vmax.f32 %v3112, %v3176
      %v3209 = vmax.f32 %v3113, %v3177
      %v3210 = vmax.f32 %v3114, %v3178
      %v3211 = vmax.f32 %v3115, %v3179
      %v3212 = vmax.f32 %v3116, %v3180
      %v3213 = vmax.f32 %v3117, %v3181
      %v3214 = vmax.f32 %v3118, %v3182
      %v3215 = vmax.f32 %v3119, %v3183
      %v3216 = vmax.f32 %v3120, %v3184
      %v3217 = vmax.f32 %v3121, %v3185
      %v3218 = vmax.f32 %v3122, %v3186
      %v3219 = vmax.f32 %v3123, %v3187
      %v3220 = vmax.f32 %v3124, %v3188
      %v3221 = vmax.f32 %v3125, %v3189
      %v3222 = vmax.f32 %v3126, %v3190
      %v3223 = vmax.f32 %v3127, %v3191
      %v3224 = vmax.f32 %v3128, %v3192
      %v3225 = vmax.f32 %v3129, %v3193
      %v3226 = vmax.f32 %v3130, %v3194
      %v3227 = vmax.f32 %v3131, %v3195
      %v3228 = vld [vmem:[#allocation2 + $0x100] sm:$0xff]
      %v3229 = vld [vmem:[#allocation2 + $0x108] sm:$0xff]
      %v3230 = vmax.f32 %v3196, %v3166
      %v3231 = vmax.f32 %v3197, %v3167
      %v3232 = vmax.f32 %v3198, %v3168
      %v3233 = vmax.f32 %v3199, %v3169
      %v3234 = vmax.f32 %v3200, %v3170
      %v3235 = vmax.f32 %v3201, %v3171
      %v3236 = vmax.f32 %v3202, %v3172
      %v3237 = vmax.f32 %v3203, %v3173
      %v3238 = vmax.f32 %v3204, %v3174
      %v3239 = vmax.f32 %v3205, %v3175
      %v3240 = vmax.f32 %v3206, %v3176
      %v3241 = vmax.f32 %v3207, %v3177
      %v3242 = vmax.f32 %v3208, %v3178
      %v3243 = vmax.f32 %v3209, %v3179
      %v3244 = vmax.f32 %v3210, %v3180
      %v3245 = vmax.f32 %v3211, %v3181
      %v3246 = vmax.f32 %v3212, %v3182
      %v3247 = vmax.f32 %v3213, %v3183
      %v3248 = vmax.f32 %v3214, %v3184
      %v3249 = vmax.f32 %v3215, %v3185
      %v3250 = vmax.f32 %v3216, %v3186
      %v3251 = vmax.f32 %v3217, %v3187
      %v3252 = vmax.f32 %v3218, %v3188
      %v3253 = vmax.f32 %v3219, %v3189
      %v3254 = vmax.f32 %v3220, %v3190
      %v3255 = vmax.f32 %v3221, %v3191
      %v3256 = vmax.f32 %v3222, %v3192
      %v3257 = vmax.f32 %v3223, %v3193
      %v3258 = vmax.f32 %v3224, %v3194
      %v3259 = vmax.f32 %v3225, %v3195
      %v3260 = vmax.f32 %v3226, %v3228
      %v3261 = vmax.f32 %v3227, %v3229
      %v3262 = vld [vmem:[#allocation2 + $0x110] sm:$0xff]
      %v3263 = vld [vmem:[#allocation2 + $0x118] sm:$0xff]
      %v3264 = vld [vmem:[#allocation2 + $0x120] sm:$0xff]
      %v3265 = vld [vmem:[#allocation2 + $0x128] sm:$0xff]
      %v3266 = vmax.f32 %v3230, %v3170
      %v3267 = vmax.f32 %v3231, %v3171
      %v3268 = vmax.f32 %v3232, %v3172
      %v3269 = vmax.f32 %v3233, %v3173
      %v3270 = vmax.f32 %v3234, %v3174
      %v3271 = vmax.f32 %v3235, %v3175
      %v3272 = vmax.f32 %v3236, %v3176
      %v3273 = vmax.f32 %v3237, %v3177
      %v3274 = vmax.f32 %v3238, %v3178
      %v3275 = vmax.f32 %v3239, %v3179
      %v3276 = vmax.f32 %v3240, %v3180
      %v3277 = vmax.f32 %v3241, %v3181
      %v3278 = vmax.f32 %v3242, %v3182
      %v3279 = vmax.f32 %v3243, %v3183
      %v3280 = vmax.f32 %v3244, %v3184
      %v3281 = vmax.f32 %v3245, %v3185
      %v3282 = vmax.f32 %v3246, %v3186
      %v3283 = vmax.f32 %v3247, %v3187
      %v3284 = vmax.f32 %v3248, %v3188
      %v3285 = vmax.f32 %v3249, %v3189
      %v3286 = vmax.f32 %v3250, %v3190
      %v3287 = vmax.f32 %v3251, %v3191
      %v3288 = vmax.f32 %v3252, %v3192
      %v3289 = vmax.f32 %v3253, %v3193
      %v3290 = vmax.f32 %v3254, %v3194
      %v3291 = vmax.f32 %v3255, %v3195
      %v3292 = vmax.f32 %v3256, %v3228
      %v3293 = vmax.f32 %v3257, %v3229
      %v3294 = vmax.f32 %v3258, %v3262
      %v3295 = vmax.f32 %v3259, %v3263
      %v3296 = vmax.f32 %v3260, %v3264
      %v3297 = vmax.f32 %v3261, %v3265
      %v3298 = vld [vmem:[#allocation2 + $0x130] sm:$0xff]
      %v3299 = vld [vmem:[#allocation2 + $0x138] sm:$0xff]
      %v3300 = vmax.f32 %v3266, %v3172
      %v3301 = vmax.f32 %v3267, %v3173
      %v3302 = vmax.f32 %v3268, %v3174
      %v3303 = vmax.f32 %v3269, %v3175
      %v3304 = vmax.f32 %v3270, %v3176
      %v3305 = vmax.f32 %v3271, %v3177
      %v3306 = vmax.f32 %v3272, %v3178
      %v3307 = vmax.f32 %v3273, %v3179
      %v3308 = vmax.f32 %v3274, %v3180
      %v3309 = vmax.f32 %v3275, %v3181
      %v3310 = vmax.f32 %v3276, %v3182
      %v3311 = vmax.f32 %v3277, %v3183
      %v3312 = vmax.f32 %v3278, %v3184
      %v3313 = vmax.f32 %v3279, %v3185
      %v3314 = vmax.f32 %v3280, %v3186
      %v3315 = vmax.f32 %v3281, %v3187
      %v3316 = vmax.f32 %v3282, %v3188
      %v3317 = vmax.f32 %v3283, %v3189
      %v3318 = vmax.f32 %v3284, %v3190
      %v3319 = vmax.f32 %v3285, %v3191
      %v3320 = vmax.f32 %v3286, %v3192
      %v3321 = vmax.f32 %v3287, %v3193
      %v3322 = vmax.f32 %v3288, %v3194
      %v3323 = vmax.f32 %v3289, %v3195
      %v3324 = vmax.f32 %v3290, %v3228
      %v3325 = vmax.f32 %v3291, %v3229
      %v3326 = vmax.f32 %v3292, %v3262
      %v3327 = vmax.f32 %v3293, %v3263
      %v3328 = vmax.f32 %v3294, %v3264
      %v3329 = vmax.f32 %v3295, %v3265
      %v3330 = vmax.f32 %v3296, %v3298
      %v3331 = vmax.f32 %v3297, %v3299
      %3332 = vst.msk [vmem:[#allocation2 + $0x20] sm:$0xff] %vm253, %v3300
      %3333 = vst.msk [vmem:[#allocation2 + $0x28] sm:$0xff] %vm253, %v3301
      %3334 = vst.msk [vmem:[#allocation2 + $0x30] sm:$0xff] %vm253, %v3302
      %3335 = vst.msk [vmem:[#allocation2 + $0x38] sm:$0xff] %vm253, %v3303
      %3336 = vst.msk [vmem:[#allocation2 + $0x40] sm:$0xff] %vm253, %v3304
      %3337 = vst.msk [vmem:[#allocation2 + $0x48] sm:$0xff] %vm253, %v3305
      %3338 = vst.msk [vmem:[#allocation2 + $0x50] sm:$0xff] %vm253, %v3306
      %3339 = vst.msk [vmem:[#allocation2 + $0x58] sm:$0xff] %vm253, %v3307
      %3340 = vst.msk [vmem:[#allocation2 + $0x60] sm:$0xff] %vm253, %v3308
      %3341 = vst.msk [vmem:[#allocation2 + $0x68] sm:$0xff] %vm253, %v3309
      %3342 = vst.msk [vmem:[#allocation2 + $0x70] sm:$0xff] %vm253, %v3310
      %3343 = vst.msk [vmem:[#allocation2 + $0x78] sm:$0xff] %vm253, %v3311
      %3344 = vst.msk [vmem:[#allocation2 + $0x80] sm:$0xff] %vm253, %v3312
      %3345 = vst.msk [vmem:[#allocation2 + $0x88] sm:$0xff] %vm253, %v3313
      %3346 = vst.msk [vmem:[#allocation2 + $0x90] sm:$0xff] %vm253, %v3314
      %3347 = vst.msk [vmem:[#allocation2 + $0x98] sm:$0xff] %vm253, %v3315
      %3348 = vst.msk [vmem:[#allocation2 + $0xa0] sm:$0xff] %vm253, %v3316
      %3349 = vst.msk [vmem:[#allocation2 + $0xa8] sm:$0xff] %vm253, %v3317
      %3350 = vst.msk [vmem:[#allocation2 + $0xb0] sm:$0xff] %vm253, %v3318
      %3351 = vst.msk [vmem:[#allocation2 + $0xb8] sm:$0xff] %vm253, %v3319
      %3352 = vst.msk [vmem:[#allocation2 + $0xc0] sm:$0xff] %vm253, %v3320
      %3353 = vst.msk [vmem:[#allocation2 + $0xc8] sm:$0xff] %vm253, %v3321
      %3354 = vst.msk [vmem:[#allocation2 + $0xd0] sm:$0xff] %vm253, %v3322
      %3355 = vst.msk [vmem:[#allocation2 + $0xd8] sm:$0xff] %vm253, %v3323
      %3356 = vst.msk [vmem:[#allocation2 + $0xe0] sm:$0xff] %vm253, %v3324
      %3357 = vst.msk [vmem:[#allocation2 + $0xe8] sm:$0xff] %vm253, %v3325
      %3358 = vst.msk [vmem:[#allocation2 + $0xf0] sm:$0xff] %vm253, %v3326
      %3359 = vst.msk [vmem:[#allocation2 + $0xf8] sm:$0xff] %vm253, %v3327
      %3360 = vst.msk [vmem:[#allocation2 + $0x100] sm:$0xff] %vm253, %v3328
      %3361 = vst.msk [vmem:[#allocation2 + $0x108] sm:$0xff] %vm253, %v3329
      %3362 = vst.msk [vmem:[#allocation2 + $0x110] sm:$0xff] %vm253, %v3330
      %3363 = vst.msk [vmem:[#allocation2 + $0x118] sm:$0xff] %vm253, %v3331
      %v3364 = vld [vmem:[#allocation2 + $0x1e] sm:$0xff]
      %v3365 = vld [vmem:[#allocation2 + $0x26] sm:$0xff]
      %v3366 = vld [vmem:[#allocation2 + $0x2e] sm:$0xff]
      %v3367 = vld [vmem:[#allocation2 + $0x36] sm:$0xff]
      %v3368 = vld [vmem:[#allocation2 + $0x3e] sm:$0xff]
      %v3369 = vld [vmem:[#allocation2 + $0x46] sm:$0xff]
      %v3370 = vld [vmem:[#allocation2 + $0x4e] sm:$0xff]
      %v3371 = vld [vmem:[#allocation2 + $0x56] sm:$0xff]
      %v3372 = vld [vmem:[#allocation2 + $0x5e] sm:$0xff]
      %v3373 = vld [vmem:[#allocation2 + $0x66] sm:$0xff]
      %v3374 = vld [vmem:[#allocation2 + $0x6e] sm:$0xff]
      %v3375 = vld [vmem:[#allocation2 + $0x76] sm:$0xff]
      %v3376 = vld [vmem:[#allocation2 + $0x7e] sm:$0xff]
      %v3377 = vld [vmem:[#allocation2 + $0x86] sm:$0xff]
      %v3378 = vld [vmem:[#allocation2 + $0x8e] sm:$0xff]
      %v3379 = vld [vmem:[#allocation2 + $0x96] sm:$0xff]
      %v3380 = vld [vmem:[#allocation2 + $0x9e] sm:$0xff]
      %v3381 = vld [vmem:[#allocation2 + $0xa6] sm:$0xff]
      %v3382 = vld [vmem:[#allocation2 + $0xae] sm:$0xff]
      %v3383 = vld [vmem:[#allocation2 + $0xb6] sm:$0xff]
      %v3384 = vld [vmem:[#allocation2 + $0xbe] sm:$0xff]
      %v3385 = vld [vmem:[#allocation2 + $0xc6] sm:$0xff]
      %v3386 = vld [vmem:[#allocation2 + $0xce] sm:$0xff]
      %v3387 = vld [vmem:[#allocation2 + $0xd6] sm:$0xff]
      %v3388 = vld [vmem:[#allocation2 + $0xde] sm:$0xff]
      %v3389 = vld [vmem:[#allocation2 + $0xe6] sm:$0xff]
      %v3390 = vld [vmem:[#allocation2 + $0xee] sm:$0xff]
      %v3391 = vld [vmem:[#allocation2 + $0xf6] sm:$0xff]
      %v3392 = vld [vmem:[#allocation2 + $0xfe] sm:$0xff]
      %v3393 = vld [vmem:[#allocation2 + $0x106] sm:$0xff]
      %v3394 = vld [vmem:[#allocation2 + $0x10e] sm:$0xff]
      %v3395 = vld [vmem:[#allocation2 + $0x116] sm:$0xff]
      %v3396 = vsel %vm1652, %v3364, -1e+30
      %v3397 = vsel %vm1653, %v3365, -1e+30
      %v3398 = vsel %vm1654, %v3366, -1e+30
      %v3399 = vsel %vm1655, %v3367, -1e+30
      %v3400 = vsel %vm1656, %v3368, -1e+30
      %v3401 = vsel %vm1657, %v3369, -1e+30
      %v3402 = vsel %vm1658, %v3370, -1e+30
      %v3403 = vsel %vm1659, %v3371, -1e+30
      %v3404 = vsel %vm1660, %v3372, -1e+30
      %v3405 = vsel %vm1661, %v3373, -1e+30
      %v3406 = vsel %vm1662, %v3374, -1e+30
      %v3407 = vsel %vm1663, %v3375, -1e+30
      %v3408 = vsel %vm1664, %v3376, -1e+30
      %v3409 = vsel %vm1665, %v3377, -1e+30
      %v3410 = vsel %vm1666, %v3378, -1e+30
      %v3411 = vsel %vm1667, %v3379, -1e+30
      %v3412 = vsel %vm1668, %v3380, -1e+30
      %v3413 = vsel %vm1669, %v3381, -1e+30
      %v3414 = vsel %vm1670, %v3382, -1e+30
      %v3415 = vsel %vm1671, %v3383, -1e+30
      %v3416 = vsel %vm1672, %v3384, -1e+30
      %v3417 = vsel %vm1673, %v3385, -1e+30
      %v3418 = vsel %vm1674, %v3386, -1e+30
      %v3419 = vsel %vm1675, %v3387, -1e+30
      %v3420 = vsel %vm1676, %v3388, -1e+30
      %v3421 = vsel %vm1677, %v3389, -1e+30
      %v3422 = vsel %vm1678, %v3390, -1e+30
      %v3423 = vsel %vm1679, %v3391, -1e+30
      %v3424 = vsel %vm1680, %v3392, -1e+30
      %v3425 = vsel %vm1681, %v3393, -1e+30
      %v3426 = vsel %vm1682, %v3394, -1e+30
      %v3427 = vsel %vm1683, %v3395, -1e+30
      %v3428 = vmax.f32 %v3300, %v3396
      %v3429 = vmax.f32 %v3301, %v3397
      %v3430 = vmax.f32 %v3302, %v3398
      %v3431 = vmax.f32 %v3303, %v3399
      %v3432 = vmax.f32 %v3304, %v3400
      %v3433 = vmax.f32 %v3305, %v3401
      %v3434 = vmax.f32 %v3306, %v3402
      %v3435 = vmax.f32 %v3307, %v3403
      %v3436 = vmax.f32 %v3308, %v3404
      %v3437 = vmax.f32 %v3309, %v3405
      %v3438 = vmax.f32 %v3310, %v3406
      %v3439 = vmax.f32 %v3311, %v3407
      %v3440 = vmax.f32 %v3312, %v3408
      %v3441 = vmax.f32 %v3313, %v3409
      %v3442 = vmax.f32 %v3314, %v3410
      %v3443 = vmax.f32 %v3315, %v3411
      %v3444 = vmax.f32 %v3316, %v3412
      %v3445 = vmax.f32 %v3317, %v3413
      %v3446 = vmax.f32 %v3318, %v3414
      %v3447 = vmax.f32 %v3319, %v3415
      %v3448 = vmax.f32 %v3320, %v3416
      %v3449 = vmax.f32 %v3321, %v3417
      %v3450 = vmax.f32 %v3322, %v3418
      %v3451 = vmax.f32 %v3323, %v3419
      %v3452 = vmax.f32 %v3324, %v3420
      %v3453 = vmax.f32 %v3325, %v3421
      %v3454 = vmax.f32 %v3326, %v3422
      %v3455 = vmax.f32 %v3327, %v3423
      %v3456 = vmax.f32 %v3328, %v3424
      %v3457 = vmax.f32 %v3329, %v3425
      %v3458 = vmax.f32 %v3330, %v3426
      %v3459 = vmax.f32 %v3331, %v3427
      %v3460 = vld [vmem:[#allocation2 + $0x1f] sm:$0xff]
      %v3461 = vld [vmem:[#allocation2 + $0x27] sm:$0xff]
      %v3462 = vld [vmem:[#allocation2 + $0x2f] sm:$0xff]
      %v3463 = vld [vmem:[#allocation2 + $0x37] sm:$0xff]
      %v3464 = vld [vmem:[#allocation2 + $0x3f] sm:$0xff]
      %v3465 = vld [vmem:[#allocation2 + $0x47] sm:$0xff]
      %v3466 = vld [vmem:[#allocation2 + $0x4f] sm:$0xff]
      %v3467 = vld [vmem:[#allocation2 + $0x57] sm:$0xff]
      %v3468 = vld [vmem:[#allocation2 + $0x5f] sm:$0xff]
      %v3469 = vld [vmem:[#allocation2 + $0x67] sm:$0xff]
      %v3470 = vld [vmem:[#allocation2 + $0x6f] sm:$0xff]
      %v3471 = vld [vmem:[#allocation2 + $0x77] sm:$0xff]
      %v3472 = vld [vmem:[#allocation2 + $0x7f] sm:$0xff]
      %v3473 = vld [vmem:[#allocation2 + $0x87] sm:$0xff]
      %v3474 = vld [vmem:[#allocation2 + $0x8f] sm:$0xff]
      %v3475 = vld [vmem:[#allocation2 + $0x97] sm:$0xff]
      %v3476 = vld [vmem:[#allocation2 + $0x9f] sm:$0xff]
      %v3477 = vld [vmem:[#allocation2 + $0xa7] sm:$0xff]
      %v3478 = vld [vmem:[#allocation2 + $0xaf] sm:$0xff]
      %v3479 = vld [vmem:[#allocation2 + $0xb7] sm:$0xff]
      %v3480 = vld [vmem:[#allocation2 + $0xbf] sm:$0xff]
      %v3481 = vld [vmem:[#allocation2 + $0xc7] sm:$0xff]
      %v3482 = vld [vmem:[#allocation2 + $0xcf] sm:$0xff]
      %v3483 = vld [vmem:[#allocation2 + $0xd7] sm:$0xff]
      %v3484 = vld [vmem:[#allocation2 + $0xdf] sm:$0xff]
      %v3485 = vld [vmem:[#allocation2 + $0xe7] sm:$0xff]
      %v3486 = vld [vmem:[#allocation2 + $0xef] sm:$0xff]
      %v3487 = vld [vmem:[#allocation2 + $0xf7] sm:$0xff]
      %v3488 = vld [vmem:[#allocation2 + $0xff] sm:$0xff]
      %v3489 = vld [vmem:[#allocation2 + $0x107] sm:$0xff]
      %v3490 = vld [vmem:[#allocation2 + $0x10f] sm:$0xff]
      %v3491 = vld [vmem:[#allocation2 + $0x117] sm:$0xff]
      %v3492 = vsel %vm1908, %v3460, -1e+30
      %v3493 = vsel %vm1909, %v3461, -1e+30
      %v3494 = vsel %vm1910, %v3462, -1e+30
      %v3495 = vsel %vm1911, %v3463, -1e+30
      %v3496 = vsel %vm1912, %v3464, -1e+30
      %v3497 = vsel %vm1913, %v3465, -1e+30
      %v3498 = vsel %vm1914, %v3466, -1e+30
      %v3499 = vsel %vm1915, %v3467, -1e+30
      %v3500 = vsel %vm1916, %v3468, -1e+30
      %v3501 = vsel %vm1917, %v3469, -1e+30
      %v3502 = vsel %vm1918, %v3470, -1e+30
      %v3503 = vsel %vm1919, %v3471, -1e+30
      %v3504 = vsel %vm1920, %v3472, -1e+30
      %v3505 = vsel %vm1921, %v3473, -1e+30
      %v3506 = vsel %vm1922, %v3474, -1e+30
      %v3507 = vsel %vm1923, %v3475, -1e+30
      %v3508 = vsel %vm1924, %v3476, -1e+30
      %v3509 = vsel %vm1925, %v3477, -1e+30
      %v3510 = vsel %vm1926, %v3478, -1e+30
      %v3511 = vsel %vm1927, %v3479, -1e+30
      %v3512 = vsel %vm1928, %v3480, -1e+30
      %v3513 = vsel %vm1929, %v3481, -1e+30
      %v3514 = vsel %vm1930, %v3482, -1e+30
      %v3515 = vsel %vm1931, %v3483, -1e+30
      %v3516 = vsel %vm1932, %v3484, -1e+30
      %v3517 = vsel %vm1933, %v3485, -1e+30
      %v3518 = vsel %vm1934, %v3486, -1e+30
      %v3519 = vsel %vm1935, %v3487, -1e+30
      %v3520 = vsel %vm1936, %v3488, -1e+30
      %v3521 = vsel %vm1937, %v3489, -1e+30
      %v3522 = vsel %vm1938, %v3490, -1e+30
      %v3523 = vsel %vm1939, %v3491, -1e+30
      %v3524 = vmax.f32 %v3428, %v3492
      %v3525 = vmax.f32 %v3429, %v3493
      %v3526 = vmax.f32 %v3430, %v3494
      %v3527 = vmax.f32 %v3431, %v3495
      %v3528 = vmax.f32 %v3432, %v3496
      %v3529 = vmax.f32 %v3433, %v3497
      %v3530 = vmax.f32 %v3434, %v3498
      %v3531 = vmax.f32 %v3435, %v3499
      %v3532 = vmax.f32 %v3436, %v3500
      %v3533 = vmax.f32 %v3437, %v3501
      %v3534 = vmax.f32 %v3438, %v3502
      %v3535 = vmax.f32 %v3439, %v3503
      %v3536 = vmax.f32 %v3440, %v3504
      %v3537 = vmax.f32 %v3441, %v3505
      %v3538 = vmax.f32 %v3442, %v3506
      %v3539 = vmax.f32 %v3443, %v3507
      %v3540 = vmax.f32 %v3444, %v3508
      %v3541 = vmax.f32 %v3445, %v3509
      %v3542 = vmax.f32 %v3446, %v3510
      %v3543 = vmax.f32 %v3447, %v3511
      %v3544 = vmax.f32 %v3448, %v3512
      %v3545 = vmax.f32 %v3449, %v3513
      %v3546 = vmax.f32 %v3450, %v3514
      %v3547 = vmax.f32 %v3451, %v3515
      %v3548 = vmax.f32 %v3452, %v3516
      %v3549 = vmax.f32 %v3453, %v3517
      %v3550 = vmax.f32 %v3454, %v3518
      %v3551 = vmax.f32 %v3455, %v3519
      %v3552 = vmax.f32 %v3456, %v3520
      %v3553 = vmax.f32 %v3457, %v3521
      %v3554 = vmax.f32 %v3458, %v3522
      %v3555 = vmax.f32 %v3459, %v3523
      %v3556 = vld [vmem:[#allocation2 + $0x21] sm:$0xff]
      %v3557 = vld [vmem:[#allocation2 + $0x29] sm:$0xff]
      %v3558 = vld [vmem:[#allocation2 + $0x31] sm:$0xff]
      %v3559 = vld [vmem:[#allocation2 + $0x39] sm:$0xff]
      %v3560 = vld [vmem:[#allocation2 + $0x41] sm:$0xff]
      %v3561 = vld [vmem:[#allocation2 + $0x49] sm:$0xff]
      %v3562 = vld [vmem:[#allocation2 + $0x51] sm:$0xff]
      %v3563 = vld [vmem:[#allocation2 + $0x59] sm:$0xff]
      %v3564 = vld [vmem:[#allocation2 + $0x61] sm:$0xff]
      %v3565 = vld [vmem:[#allocation2 + $0x69] sm:$0xff]
      %v3566 = vld [vmem:[#allocation2 + $0x71] sm:$0xff]
      %v3567 = vld [vmem:[#allocation2 + $0x79] sm:$0xff]
      %v3568 = vld [vmem:[#allocation2 + $0x81] sm:$0xff]
      %v3569 = vld [vmem:[#allocation2 + $0x89] sm:$0xff]
      %v3570 = vld [vmem:[#allocation2 + $0x91] sm:$0xff]
      %v3571 = vld [vmem:[#allocation2 + $0x99] sm:$0xff]
      %v3572 = vld [vmem:[#allocation2 + $0xa1] sm:$0xff]
      %v3573 = vld [vmem:[#allocation2 + $0xa9] sm:$0xff]
      %v3574 = vld [vmem:[#allocation2 + $0xb1] sm:$0xff]
      %v3575 = vld [vmem:[#allocation2 + $0xb9] sm:$0xff]
      %v3576 = vld [vmem:[#allocation2 + $0xc1] sm:$0xff]
      %v3577 = vld [vmem:[#allocation2 + $0xc9] sm:$0xff]
      %v3578 = vld [vmem:[#allocation2 + $0xd1] sm:$0xff]
      %v3579 = vld [vmem:[#allocation2 + $0xd9] sm:$0xff]
      %v3580 = vld [vmem:[#allocation2 + $0xe1] sm:$0xff]
      %v3581 = vld [vmem:[#allocation2 + $0xe9] sm:$0xff]
      %v3582 = vld [vmem:[#allocation2 + $0xf1] sm:$0xff]
      %v3583 = vld [vmem:[#allocation2 + $0xf9] sm:$0xff]
      %v3584 = vld [vmem:[#allocation2 + $0x101] sm:$0xff]
      %v3585 = vld [vmem:[#allocation2 + $0x109] sm:$0xff]
      %v3586 = vld [vmem:[#allocation2 + $0x111] sm:$0xff]
      %v3587 = vld [vmem:[#allocation2 + $0x119] sm:$0xff]
      %v3588 = vsel %vm2164, %v3556, -1e+30
      %v3589 = vsel %vm2165, %v3557, -1e+30
      %v3590 = vsel %vm2166, %v3558, -1e+30
      %v3591 = vsel %vm2167, %v3559, -1e+30
      %v3592 = vsel %vm2168, %v3560, -1e+30
      %v3593 = vsel %vm2169, %v3561, -1e+30
      %v3594 = vsel %vm2170, %v3562, -1e+30
      %v3595 = vsel %vm2171, %v3563, -1e+30
      %v3596 = vsel %vm2172, %v3564, -1e+30
      %v3597 = vsel %vm2173, %v3565, -1e+30
      %v3598 = vsel %vm2174, %v3566, -1e+30
      %v3599 = vsel %vm2175, %v3567, -1e+30
      %v3600 = vsel %vm2176, %v3568, -1e+30
      %v3601 = vsel %vm2177, %v3569, -1e+30
      %v3602 = vsel %vm2178, %v3570, -1e+30
      %v3603 = vsel %vm2179, %v3571, -1e+30
      %v3604 = vsel %vm2180, %v3572, -1e+30
      %v3605 = vsel %vm2181, %v3573, -1e+30
      %v3606 = vsel %vm2182, %v3574, -1e+30
      %v3607 = vsel %vm2183, %v3575, -1e+30
      %v3608 = vsel %vm2184, %v3576, -1e+30
      %v3609 = vsel %vm2185, %v3577, -1e+30
      %v3610 = vsel %vm2186, %v3578, -1e+30
      %v3611 = vsel %vm2187, %v3579, -1e+30
      %v3612 = vsel %vm2188, %v3580, -1e+30
      %v3613 = vsel %vm2189, %v3581, -1e+30
      %v3614 = vsel %vm2190, %v3582, -1e+30
      %v3615 = vsel %vm2191, %v3583, -1e+30
      %v3616 = vsel %vm2192, %v3584, -1e+30
      %v3617 = vsel %vm2193, %v3585, -1e+30
      %v3618 = vsel %vm2194, %v3586, -1e+30
      %v3619 = vsel %vm2195, %v3587, -1e+30
      %v3620 = vmax.f32 %v3524, %v3588
      %v3621 = vmax.f32 %v3525, %v3589
      %v3622 = vmax.f32 %v3526, %v3590
      %v3623 = vmax.f32 %v3527, %v3591
      %v3624 = vmax.f32 %v3528, %v3592
      %v3625 = vmax.f32 %v3529, %v3593
      %v3626 = vmax.f32 %v3530, %v3594
      %v3627 = vmax.f32 %v3531, %v3595
      %v3628 = vmax.f32 %v3532, %v3596
      %v3629 = vmax.f32 %v3533, %v3597
      %v3630 = vmax.f32 %v3534, %v3598
      %v3631 = vmax.f32 %v3535, %v3599
      %v3632 = vmax.f32 %v3536, %v3600
      %v3633 = vmax.f32 %v3537, %v3601
      %v3634 = vmax.f32 %v3538, %v3602
      %v3635 = vmax.f32 %v3539, %v3603
      %v3636 = vmax.f32 %v3540, %v3604
      %v3637 = vmax.f32 %v3541, %v3605
      %v3638 = vmax.f32 %v3542, %v3606
      %v3639 = vmax.f32 %v3543, %v3607
      %v3640 = vmax.f32 %v3544, %v3608
      %v3641 = vmax.f32 %v3545, %v3609
      %v3642 = vmax.f32 %v3546, %v3610
      %v3643 = vmax.f32 %v3547, %v3611
      %v3644 = vmax.f32 %v3548, %v3612
      %v3645 = vmax.f32 %v3549, %v3613
      %v3646 = vmax.f32 %v3550, %v3614
      %v3647 = vmax.f32 %v3551, %v3615
      %v3648 = vmax.f32 %v3552, %v3616
      %v3649 = vmax.f32 %v3553, %v3617
      %v3650 = vmax.f32 %v3554, %v3618
      %v3651 = vmax.f32 %v3555, %v3619
      %v3652 = vld [vmem:[#allocation2 + $0x22] sm:$0xff]
      %v3653 = vld [vmem:[#allocation2 + $0x2a] sm:$0xff]
      %v3654 = vld [vmem:[#allocation2 + $0x32] sm:$0xff]
      %v3655 = vld [vmem:[#allocation2 + $0x3a] sm:$0xff]
      %v3656 = vld [vmem:[#allocation2 + $0x42] sm:$0xff]
      %v3657 = vld [vmem:[#allocation2 + $0x4a] sm:$0xff]
      %v3658 = vld [vmem:[#allocation2 + $0x52] sm:$0xff]
      %v3659 = vld [vmem:[#allocation2 + $0x5a] sm:$0xff]
      %v3660 = vld [vmem:[#allocation2 + $0x62] sm:$0xff]
      %v3661 = vld [vmem:[#allocation2 + $0x6a] sm:$0xff]
      %v3662 = vld [vmem:[#allocation2 + $0x72] sm:$0xff]
      %v3663 = vld [vmem:[#allocation2 + $0x7a] sm:$0xff]
      %v3664 = vld [vmem:[#allocation2 + $0x82] sm:$0xff]
      %v3665 = vld [vmem:[#allocation2 + $0x8a] sm:$0xff]
      %v3666 = vld [vmem:[#allocation2 + $0x92] sm:$0xff]
      %v3667 = vld [vmem:[#allocation2 + $0x9a] sm:$0xff]
      %v3668 = vld [vmem:[#allocation2 + $0xa2] sm:$0xff]
      %v3669 = vld [vmem:[#allocation2 + $0xaa] sm:$0xff]
      %v3670 = vld [vmem:[#allocation2 + $0xb2] sm:$0xff]
      %v3671 = vld [vmem:[#allocation2 + $0xba] sm:$0xff]
      %v3672 = vld [vmem:[#allocation2 + $0xc2] sm:$0xff]
      %v3673 = vld [vmem:[#allocation2 + $0xca] sm:$0xff]
      %v3674 = vld [vmem:[#allocation2 + $0xd2] sm:$0xff]
      %v3675 = vld [vmem:[#allocation2 + $0xda] sm:$0xff]
      %v3676 = vld [vmem:[#allocation2 + $0xe2] sm:$0xff]
      %v3677 = vld [vmem:[#allocation2 + $0xea] sm:$0xff]
      %v3678 = vld [vmem:[#allocation2 + $0xf2] sm:$0xff]
      %v3679 = vld [vmem:[#allocation2 + $0xfa] sm:$0xff]
      %v3680 = vld [vmem:[#allocation2 + $0x102] sm:$0xff]
      %v3681 = vld [vmem:[#allocation2 + $0x10a] sm:$0xff]
      %v3682 = vld [vmem:[#allocation2 + $0x112] sm:$0xff]
      %v3683 = vld [vmem:[#allocation2 + $0x11a] sm:$0xff]
      %v3684 = vsel %vm2420, %v3652, -1e+30
      %v3685 = vsel %vm2421, %v3653, -1e+30
      %v3686 = vsel %vm2422, %v3654, -1e+30
      %v3687 = vsel %vm2423, %v3655, -1e+30
      %v3688 = vsel %vm2424, %v3656, -1e+30
      %v3689 = vsel %vm2425, %v3657, -1e+30
      %v3690 = vsel %vm2426, %v3658, -1e+30
      %v3691 = vsel %vm2427, %v3659, -1e+30
      %v3692 = vsel %vm2428, %v3660, -1e+30
      %v3693 = vsel %vm2429, %v3661, -1e+30
      %v3694 = vsel %vm2430, %v3662, -1e+30
      %v3695 = vsel %vm2431, %v3663, -1e+30
      %v3696 = vsel %vm2432, %v3664, -1e+30
      %v3697 = vsel %vm2433, %v3665, -1e+30
      %v3698 = vsel %vm2434, %v3666, -1e+30
      %v3699 = vsel %vm2435, %v3667, -1e+30
      %v3700 = vsel %vm2436, %v3668, -1e+30
      %v3701 = vsel %vm2437, %v3669, -1e+30
      %v3702 = vsel %vm2438, %v3670, -1e+30
      %v3703 = vsel %vm2439, %v3671, -1e+30
      %v3704 = vsel %vm2440, %v3672, -1e+30
      %v3705 = vsel %vm2441, %v3673, -1e+30
      %v3706 = vsel %vm2442, %v3674, -1e+30
      %v3707 = vsel %vm2443, %v3675, -1e+30
      %v3708 = vsel %vm2444, %v3676, -1e+30
      %v3709 = vsel %vm2445, %v3677, -1e+30
      %v3710 = vsel %vm2446, %v3678, -1e+30
      %v3711 = vsel %vm2447, %v3679, -1e+30
      %v3712 = vsel %vm2448, %v3680, -1e+30
      %v3713 = vsel %vm2449, %v3681, -1e+30
      %v3714 = vsel %vm2450, %v3682, -1e+30
      %v3715 = vsel %vm2451, %v3683, -1e+30
      %v3716 = vmax.f32 %v3620, %v3684
      %v3717 = vmax.f32 %v3621, %v3685
      %v3718 = vmax.f32 %v3622, %v3686
      %v3719 = vmax.f32 %v3623, %v3687
      %v3720 = vmax.f32 %v3624, %v3688
      %v3721 = vmax.f32 %v3625, %v3689
      %v3722 = vmax.f32 %v3626, %v3690
      %v3723 = vmax.f32 %v3627, %v3691
      %v3724 = vmax.f32 %v3628, %v3692
      %v3725 = vmax.f32 %v3629, %v3693
      %v3726 = vmax.f32 %v3630, %v3694
      %v3727 = vmax.f32 %v3631, %v3695
      %v3728 = vmax.f32 %v3632, %v3696
      %v3729 = vmax.f32 %v3633, %v3697
      %v3730 = vmax.f32 %v3634, %v3698
      %v3731 = vmax.f32 %v3635, %v3699
      %v3732 = vmax.f32 %v3636, %v3700
      %v3733 = vmax.f32 %v3637, %v3701
      %v3734 = vmax.f32 %v3638, %v3702
      %v3735 = vmax.f32 %v3639, %v3703
      %v3736 = vmax.f32 %v3640, %v3704
      %v3737 = vmax.f32 %v3641, %v3705
      %v3738 = vmax.f32 %v3642, %v3706
      %v3739 = vmax.f32 %v3643, %v3707
      %v3740 = vmax.f32 %v3644, %v3708
      %v3741 = vmax.f32 %v3645, %v3709
      %v3742 = vmax.f32 %v3646, %v3710
      %v3743 = vmax.f32 %v3647, %v3711
      %v3744 = vmax.f32 %v3648, %v3712
      %v3745 = vmax.f32 %v3649, %v3713
      %v3746 = vmax.f32 %v3650, %v3714
      %v3747 = vmax.f32 %v3651, %v3715
      %v3748 = vpack.c.bf16 %v1229, %v1228
      %v3749 = vpack.c.bf16 %v1231, %v1230
      %v3750 = vpack.c.bf16 %v1233, %v1232
      %v3751 = vpack.c.bf16 %v1235, %v1234
      %v3752 = vpack.c.bf16 %v1237, %v1236
      %v3753 = vpack.c.bf16 %v1239, %v1238
      %v3754 = vpack.c.bf16 %v1241, %v1240
      %v3755 = vpack.c.bf16 %v1243, %v1242
      %v3756 = vpack.c.bf16 %v1245, %v1244
      %v3757 = vpack.c.bf16 %v1247, %v1246
      %v3758 = vpack.c.bf16 %v1249, %v1248
      %v3759 = vpack.c.bf16 %v1251, %v1250
      %v3760 = vpack.c.bf16 %v1253, %v1252
      %v3761 = vpack.c.bf16 %v1255, %v1254
      %v3762 = vpack.c.bf16 %v1257, %v1256
      %v3763 = vpack.c.bf16 %v1259, %v1258
      %v3764 = vld [vmem:[%s4] sm:$0xf]
      %v3765 = vpack.c.bf16 %v2485, %v2484
      %v3766 = vpack.c.bf16 %v2487, %v2486
      %v3767 = vpack.c.bf16 %v2489, %v2488
      %v3768 = vpack.c.bf16 %v2491, %v2490
      %v3769 = vpack.c.bf16 %v2493, %v2492
      %v3770 = vpack.c.bf16 %v2495, %v2494
      %v3771 = vpack.c.bf16 %v2497, %v2496
      %v3772 = vpack.c.bf16 %v2499, %v2498
      %v3773 = vpack.c.bf16 %v2501, %v2500
      %v3774 = vpack.c.bf16 %v2503, %v2502
      %v3775 = vpack.c.bf16 %v2505, %v2504
      %v3776 = vpack.c.bf16 %v2507, %v2506
      %v3777 = vpack.c.bf16 %v2509, %v2508
      %v3778 = vpack.c.bf16 %v2511, %v2510
      %v3779 = vpack.c.bf16 %v2513, %v2512
      %v3780 = vpack.c.bf16 %v2515, %v2514
      %s3781 = scalar_lea.vmem %s4, 4
      %v3782 = vld [vmem:[%s3781] sm:$0xf]
      %v3784 = vsel %vm253, %v3765, 0
      %v3787 = vsel %vm253, %v3766, 0
      %v3790 = vsel %vm253, %v3767, 0
      %v3793 = vsel %vm253, %v3768, 0
      %v3796 = vsel %vm253, %v3769, 0
      %v3799 = vsel %vm253, %v3770, 0
      %v3802 = vsel %vm253, %v3771, 0
      %v3805 = vsel %vm253, %v3772, 0
      %v3808 = vsel %vm253, %v3773, 0
      %v3811 = vsel %vm253, %v3774, 0
      %v3814 = vsel %vm253, %v3775, 0
      %v3817 = vsel %vm253, %v3776, 0
      %v3820 = vsel %vm253, %v3777, 0
      %v3823 = vsel %vm253, %v3778, 0
      %v3826 = vsel %vm253, %v3779, 0
      %v3829 = vsel %vm253, %v3780, 0
      %vm3831 = vcmask 1043456
      %v3833 = vsel %vm3831, %v3782, 0
      %3835 = vmatpush.bf16.msra.mxu0 0
      %3836 = vmatpush.bf16.msra.mxu0 0
      %3837 = vmatpush.bf16.msra.mxu0 0
      %3838 = vmatpush.bf16.msra.mxu0 0
      %3839 = vmatpush.bf16.msra.mxu0 0
      %3840 = vmatpush.bf16.msra.mxu0 0
      %3841 = vmatpush.bf16.msra.mxu0 0
      %3842 = vmatpush.bf16.msra.mxu0 %v3833
      %3843 = vmatmul.bf16.gmra.mxu0 %v3784
      %v3844 = vpop.f32.mrf.mxu0
      %v3845 = vadd.f32 0.0, %v3844
      %v3846 = vpop.f32.mrf.mxu0
      %v3847 = vadd.f32 0.0, %v3846
      %3848 = vmatmul.bf16.gmra.mxu0 %v3787
      %v3849 = vpop.f32.mrf.mxu0
      %v3850 = vadd.f32 0.0, %v3849
      %v3851 = vpop.f32.mrf.mxu0
      %v3852 = vadd.f32 0.0, %v3851
      %3853 = vmatmul.bf16.gmra.mxu0 %v3790
      %v3854 = vpop.f32.mrf.mxu0
      %v3855 = vadd.f32 0.0, %v3854
      %v3856 = vpop.f32.mrf.mxu0
      %v3857 = vadd.f32 0.0, %v3856
      %3858 = vmatmul.bf16.gmra.mxu0 %v3793
      %v3859 = vpop.f32.mrf.mxu0
      %v3860 = vadd.f32 0.0, %v3859
      %v3861 = vpop.f32.mrf.mxu0
      %v3862 = vadd.f32 0.0, %v3861
      %3863 = vmatmul.bf16.gmra.mxu0 %v3796
      %v3864 = vpop.f32.mrf.mxu0
      %v3865 = vadd.f32 0.0, %v3864
      %v3866 = vpop.f32.mrf.mxu0
      %v3867 = vadd.f32 0.0, %v3866
      %3868 = vmatmul.bf16.gmra.mxu0 %v3799
      %v3869 = vpop.f32.mrf.mxu0
      %v3870 = vadd.f32 0.0, %v3869
      %v3871 = vpop.f32.mrf.mxu0
      %v3872 = vadd.f32 0.0, %v3871
      %3873 = vmatmul.bf16.gmra.mxu0 %v3802
      %v3874 = vpop.f32.mrf.mxu0
      %v3875 = vadd.f32 0.0, %v3874
      %v3876 = vpop.f32.mrf.mxu0
      %v3877 = vadd.f32 0.0, %v3876
      %3878 = vmatmul.bf16.gmra.mxu0 %v3805
      %v3879 = vpop.f32.mrf.mxu0
      %v3880 = vadd.f32 0.0, %v3879
      %v3881 = vpop.f32.mrf.mxu0
      %v3882 = vadd.f32 0.0, %v3881
      %3883 = vmatmul.bf16.gmra.mxu0 %v3808
      %v3884 = vpop.f32.mrf.mxu0
      %v3885 = vadd.f32 0.0, %v3884
      %v3886 = vpop.f32.mrf.mxu0
      %v3887 = vadd.f32 0.0, %v3886
      %3888 = vmatmul.bf16.gmra.mxu0 %v3811
      %v3889 = vpop.f32.mrf.mxu0
      %v3890 = vadd.f32 0.0, %v3889
      %v3891 = vpop.f32.mrf.mxu0
      %v3892 = vadd.f32 0.0, %v3891
      %3893 = vmatmul.bf16.gmra.mxu0 %v3814
      %v3894 = vpop.f32.mrf.mxu0
      %v3895 = vadd.f32 0.0, %v3894
      %v3896 = vpop.f32.mrf.mxu0
      %v3897 = vadd.f32 0.0, %v3896
      %3898 = vmatmul.bf16.gmra.mxu0 %v3817
      %v3899 = vpop.f32.mrf.mxu0
      %v3900 = vadd.f32 0.0, %v3899
      %v3901 = vpop.f32.mrf.mxu0
      %v3902 = vadd.f32 0.0, %v3901
      %3903 = vmatmul.bf16.gmra.mxu0 %v3820
      %v3904 = vpop.f32.mrf.mxu0
      %v3905 = vadd.f32 0.0, %v3904
      %v3906 = vpop.f32.mrf.mxu0
      %v3907 = vadd.f32 0.0, %v3906
      %3908 = vmatmul.bf16.gmra.mxu0 %v3823
      %v3909 = vpop.f32.mrf.mxu0
      %v3910 = vadd.f32 0.0, %v3909
      %v3911 = vpop.f32.mrf.mxu0
      %v3912 = vadd.f32 0.0, %v3911
      %3913 = vmatmul.bf16.gmra.mxu0 %v3826
      %v3914 = vpop.f32.mrf.mxu0
      %v3915 = vadd.f32 0.0, %v3914
      %v3916 = vpop.f32.mrf.mxu0
      %v3917 = vadd.f32 0.0, %v3916
      %3918 = vmatmul.bf16.gmra.mxu0 %v3829
      %v3919 = vpop.f32.mrf.mxu0
      %v3920 = vadd.f32 0.0, %v3919
      %v3921 = vpop.f32.mrf.mxu0
      %v3922 = vadd.f32 0.0, %v3921
      %3923 = vdwg.mxu0
      %v3925 = vsel %vm253, %v3748, 0
      %v3928 = vsel %vm253, %v3749, 0
      %v3931 = vsel %vm253, %v3750, 0
      %v3934 = vsel %vm253, %v3751, 0
      %v3937 = vsel %vm253, %v3752, 0
      %v3940 = vsel %vm253, %v3753, 0
      %v3943 = vsel %vm253, %v3754, 0
      %v3946 = vsel %vm253, %v3755, 0
      %v3949 = vsel %vm253, %v3756, 0
      %v3952 = vsel %vm253, %v3757, 0
      %v3955 = vsel %vm253, %v3758, 0
      %v3958 = vsel %vm253, %v3759, 0
      %v3961 = vsel %vm253, %v3760, 0
      %v3964 = vsel %vm253, %v3761, 0
      %v3967 = vsel %vm253, %v3762, 0
      %v3970 = vsel %vm253, %v3763, 0
      %v3973 = vsel %vm3831, %v3764, 0
      %3975 = vmatpush.bf16.msra.mxu0 0
      %3976 = vmatpush.bf16.msra.mxu0 0
      %3977 = vmatpush.bf16.msra.mxu0 0
      %3978 = vmatpush.bf16.msra.mxu0 0
      %3979 = vmatpush.bf16.msra.mxu0 0
      %3980 = vmatpush.bf16.msra.mxu0 0
      %3981 = vmatpush.bf16.msra.mxu0 0
      %3982 = vmatpush.bf16.msra.mxu0 %v3973
      %3983 = vmatmul.bf16.gmra.mxu0 %v3925
      %v3984 = vpop.f32.mrf.mxu0
      %v3985 = vadd.f32 %v3845, %v3984
      %v3986 = vpop.f32.mrf.mxu0
      %v3987 = vadd.f32 %v3847, %v3986
      %3988 = vmatmul.bf16.gmra.mxu0 %v3928
      %v3989 = vpop.f32.mrf.mxu0
      %v3990 = vadd.f32 %v3850, %v3989
      %v3991 = vpop.f32.mrf.mxu0
      %v3992 = vadd.f32 %v3852, %v3991
      %3993 = vmatmul.bf16.gmra.mxu0 %v3931
      %v3994 = vpop.f32.mrf.mxu0
      %v3995 = vadd.f32 %v3855, %v3994
      %v3996 = vpop.f32.mrf.mxu0
      %v3997 = vadd.f32 %v3857, %v3996
      %3998 = vmatmul.bf16.gmra.mxu0 %v3934
      %v3999 = vpop.f32.mrf.mxu0
      %v4000 = vadd.f32 %v3860, %v3999
      %v4001 = vpop.f32.mrf.mxu0
      %v4002 = vadd.f32 %v3862, %v4001
      %4003 = vmatmul.bf16.gmra.mxu0 %v3937
      %v4004 = vpop.f32.mrf.mxu0
      %v4005 = vadd.f32 %v3865, %v4004
      %v4006 = vpop.f32.mrf.mxu0
      %v4007 = vadd.f32 %v3867, %v4006
      %4008 = vmatmul.bf16.gmra.mxu0 %v3940
      %v4009 = vpop.f32.mrf.mxu0
      %v4010 = vadd.f32 %v3870, %v4009
      %v4011 = vpop.f32.mrf.mxu0
      %v4012 = vadd.f32 %v3872, %v4011
      %4013 = vmatmul.bf16.gmra.mxu0 %v3943
      %v4014 = vpop.f32.mrf.mxu0
      %v4015 = vadd.f32 %v3875, %v4014
      %v4016 = vpop.f32.mrf.mxu0
      %v4017 = vadd.f32 %v3877, %v4016
      %4018 = vmatmul.bf16.gmra.mxu0 %v3946
      %v4019 = vpop.f32.mrf.mxu0
      %v4020 = vadd.f32 %v3880, %v4019
      %v4021 = vpop.f32.mrf.mxu0
      %v4022 = vadd.f32 %v3882, %v4021
      %4023 = vmatmul.bf16.gmra.mxu0 %v3949
      %v4024 = vpop.f32.mrf.mxu0
      %v4025 = vadd.f32 %v3885, %v4024
      %v4026 = vpop.f32.mrf.mxu0
      %v4027 = vadd.f32 %v3887, %v4026
      %4028 = vmatmul.bf16.gmra.mxu0 %v3952
      %v4029 = vpop.f32.mrf.mxu0
      %v4030 = vadd.f32 %v3890, %v4029
      %v4031 = vpop.f32.mrf.mxu0
      %v4032 = vadd.f32 %v3892, %v4031
      %4033 = vmatmul.bf16.gmra.mxu0 %v3955
      %v4034 = vpop.f32.mrf.mxu0
      %v4035 = vadd.f32 %v3895, %v4034
      %v4036 = vpop.f32.mrf.mxu0
      %v4037 = vadd.f32 %v3897, %v4036
      %4038 = vmatmul.bf16.gmra.mxu0 %v3958
      %v4039 = vpop.f32.mrf.mxu0
      %v4040 = vadd.f32 %v3900, %v4039
      %v4041 = vpop.f32.mrf.mxu0
      %v4042 = vadd.f32 %v3902, %v4041
      %4043 = vmatmul.bf16.gmra.mxu0 %v3961
      %v4044 = vpop.f32.mrf.mxu0
      %v4045 = vadd.f32 %v3905, %v4044
      %v4046 = vpop.f32.mrf.mxu0
      %v4047 = vadd.f32 %v3907, %v4046
      %4048 = vmatmul.bf16.gmra.mxu0 %v3964
      %v4049 = vpop.f32.mrf.mxu0
      %v4050 = vadd.f32 %v3910, %v4049
      %v4051 = vpop.f32.mrf.mxu0
      %v4052 = vadd.f32 %v3912, %v4051
      %4053 = vmatmul.bf16.gmra.mxu0 %v3967
      %v4054 = vpop.f32.mrf.mxu0
      %v4055 = vadd.f32 %v3915, %v4054
      %v4056 = vpop.f32.mrf.mxu0
      %v4057 = vadd.f32 %v3917, %v4056
      %4058 = vmatmul.bf16.gmra.mxu0 %v3970
      %v4059 = vpop.f32.mrf.mxu0
      %v4060 = vadd.f32 %v3920, %v4059
      %v4061 = vpop.f32.mrf.mxu0
      %v4062 = vadd.f32 %v3922, %v4061
      %4063 = vdwg.mxu0
      %v4064 = vpack.c.bf16 %v3101, %v3100
      %v4065 = vpack.c.bf16 %v3103, %v3102
      %v4066 = vpack.c.bf16 %v3105, %v3104
      %v4067 = vpack.c.bf16 %v3107, %v3106
      %v4068 = vpack.c.bf16 %v3109, %v3108
      %v4069 = vpack.c.bf16 %v3111, %v3110
      %v4070 = vpack.c.bf16 %v3113, %v3112
      %v4071 = vpack.c.bf16 %v3115, %v3114
      %v4072 = vpack.c.bf16 %v3117, %v3116
      %v4073 = vpack.c.bf16 %v3119, %v3118
      %v4074 = vpack.c.bf16 %v3121, %v3120
      %v4075 = vpack.c.bf16 %v3123, %v3122
      %v4076 = vpack.c.bf16 %v3125, %v3124
      %v4077 = vpack.c.bf16 %v3127, %v3126
      %v4078 = vpack.c.bf16 %v3129, %v3128
      %v4079 = vpack.c.bf16 %v3131, %v3130
      %s4080 = scalar_lea.vmem %s4, 8
      %v4081 = vld [vmem:[%s4080] sm:$0xf]
      %v4083 = vsel %vm253, %v4064, 0
      %v4086 = vsel %vm253, %v4065, 0
      %v4089 = vsel %vm253, %v4066, 0
      %v4092 = vsel %vm253, %v4067, 0
      %v4095 = vsel %vm253, %v4068, 0
      %v4098 = vsel %vm253, %v4069, 0
      %v4101 = vsel %vm253, %v4070, 0
      %v4104 = vsel %vm253, %v4071, 0
      %v4107 = vsel %vm253, %v4072, 0
      %v4110 = vsel %vm253, %v4073, 0
      %v4113 = vsel %vm253, %v4074, 0
      %v4116 = vsel %vm253, %v4075, 0
      %v4119 = vsel %vm253, %v4076, 0
      %v4122 = vsel %vm253, %v4077, 0
      %v4125 = vsel %vm253, %v4078, 0
      %v4128 = vsel %vm253, %v4079, 0
      %v4131 = vsel %vm3831, %v4081, 0
      %4133 = vmatpush.bf16.msra.mxu0 0
      %4134 = vmatpush.bf16.msra.mxu0 0
      %4135 = vmatpush.bf16.msra.mxu0 0
      %4136 = vmatpush.bf16.msra.mxu0 0
      %4137 = vmatpush.bf16.msra.mxu0 0
      %4138 = vmatpush.bf16.msra.mxu0 0
      %4139 = vmatpush.bf16.msra.mxu0 0
      %4140 = vmatpush.bf16.msra.mxu0 %v4131
      %4141 = vmatmul.bf16.gmra.mxu0 %v4083
      %v4142 = vpop.f32.mrf.mxu0
      %v4143 = vadd.f32 0.0, %v4142
      %v4144 = vpop.f32.mrf.mxu0
      %v4145 = vadd.f32 0.0, %v4144
      %4146 = vmatmul.bf16.gmra.mxu0 %v4086
      %v4147 = vpop.f32.mrf.mxu0
      %v4148 = vadd.f32 0.0, %v4147
      %v4149 = vpop.f32.mrf.mxu0
      %v4150 = vadd.f32 0.0, %v4149
      %4151 = vmatmul.bf16.gmra.mxu0 %v4089
      %v4152 = vpop.f32.mrf.mxu0
      %v4153 = vadd.f32 0.0, %v4152
      %v4154 = vpop.f32.mrf.mxu0
      %v4155 = vadd.f32 0.0, %v4154
      %4156 = vmatmul.bf16.gmra.mxu0 %v4092
      %v4157 = vpop.f32.mrf.mxu0
      %v4158 = vadd.f32 0.0, %v4157
      %v4159 = vpop.f32.mrf.mxu0
      %v4160 = vadd.f32 0.0, %v4159
      %4161 = vmatmul.bf16.gmra.mxu0 %v4095
      %v4162 = vpop.f32.mrf.mxu0
      %v4163 = vadd.f32 0.0, %v4162
      %v4164 = vpop.f32.mrf.mxu0
      %v4165 = vadd.f32 0.0, %v4164
      %4166 = vmatmul.bf16.gmra.mxu0 %v4098
      %v4167 = vpop.f32.mrf.mxu0
      %v4168 = vadd.f32 0.0, %v4167
      %v4169 = vpop.f32.mrf.mxu0
      %v4170 = vadd.f32 0.0, %v4169
      %4171 = vmatmul.bf16.gmra.mxu0 %v4101
      %v4172 = vpop.f32.mrf.mxu0
      %v4173 = vadd.f32 0.0, %v4172
      %v4174 = vpop.f32.mrf.mxu0
      %v4175 = vadd.f32 0.0, %v4174
      %4176 = vmatmul.bf16.gmra.mxu0 %v4104
      %v4177 = vpop.f32.mrf.mxu0
      %v4178 = vadd.f32 0.0, %v4177
      %v4179 = vpop.f32.mrf.mxu0
      %v4180 = vadd.f32 0.0, %v4179
      %4181 = vmatmul.bf16.gmra.mxu0 %v4107
      %v4182 = vpop.f32.mrf.mxu0
      %v4183 = vadd.f32 0.0, %v4182
      %v4184 = vpop.f32.mrf.mxu0
      %v4185 = vadd.f32 0.0, %v4184
      %4186 = vmatmul.bf16.gmra.mxu0 %v4110
      %v4187 = vpop.f32.mrf.mxu0
      %v4188 = vadd.f32 0.0, %v4187
      %v4189 = vpop.f32.mrf.mxu0
      %v4190 = vadd.f32 0.0, %v4189
      %4191 = vmatmul.bf16.gmra.mxu0 %v4113
      %v4192 = vpop.f32.mrf.mxu0
      %v4193 = vadd.f32 0.0, %v4192
      %v4194 = vpop.f32.mrf.mxu0
      %v4195 = vadd.f32 0.0, %v4194
      %4196 = vmatmul.bf16.gmra.mxu0 %v4116
      %v4197 = vpop.f32.mrf.mxu0
      %v4198 = vadd.f32 0.0, %v4197
      %v4199 = vpop.f32.mrf.mxu0
      %v4200 = vadd.f32 0.0, %v4199
      %4201 = vmatmul.bf16.gmra.mxu0 %v4119
      %v4202 = vpop.f32.mrf.mxu0
      %v4203 = vadd.f32 0.0, %v4202
      %v4204 = vpop.f32.mrf.mxu0
      %v4205 = vadd.f32 0.0, %v4204
      %4206 = vmatmul.bf16.gmra.mxu0 %v4122
      %v4207 = vpop.f32.mrf.mxu0
      %v4208 = vadd.f32 0.0, %v4207
      %v4209 = vpop.f32.mrf.mxu0
      %v4210 = vadd.f32 0.0, %v4209
      %4211 = vmatmul.bf16.gmra.mxu0 %v4125
      %v4212 = vpop.f32.mrf.mxu0
      %v4213 = vadd.f32 0.0, %v4212
      %v4214 = vpop.f32.mrf.mxu0
      %v4215 = vadd.f32 0.0, %v4214
      %4216 = vmatmul.bf16.gmra.mxu0 %v4128
      %v4217 = vpop.f32.mrf.mxu0
      %v4218 = vadd.f32 0.0, %v4217
      %v4219 = vpop.f32.mrf.mxu0
      %v4220 = vadd.f32 0.0, %v4219
      %4221 = vdwg.mxu0
      %v4222 = vadd.f32 %v3985, %v4143
      %v4223 = vadd.f32 %v3987, %v4145
      %v4224 = vadd.f32 %v3990, %v4148
      %v4225 = vadd.f32 %v3992, %v4150
      %v4226 = vadd.f32 %v3995, %v4153
      %v4227 = vadd.f32 %v3997, %v4155
      %v4228 = vadd.f32 %v4000, %v4158
      %v4229 = vadd.f32 %v4002, %v4160
      %v4230 = vadd.f32 %v4005, %v4163
      %v4231 = vadd.f32 %v4007, %v4165
      %v4232 = vadd.f32 %v4010, %v4168
      %v4233 = vadd.f32 %v4012, %v4170
      %v4234 = vadd.f32 %v4015, %v4173
      %v4235 = vadd.f32 %v4017, %v4175
      %v4236 = vadd.f32 %v4020, %v4178
      %v4237 = vadd.f32 %v4022, %v4180
      %v4238 = vadd.f32 %v4025, %v4183
      %v4239 = vadd.f32 %v4027, %v4185
      %v4240 = vadd.f32 %v4030, %v4188
      %v4241 = vadd.f32 %v4032, %v4190
      %v4242 = vadd.f32 %v4035, %v4193
      %v4243 = vadd.f32 %v4037, %v4195
      %v4244 = vadd.f32 %v4040, %v4198
      %v4245 = vadd.f32 %v4042, %v4200
      %v4246 = vadd.f32 %v4045, %v4203
      %v4247 = vadd.f32 %v4047, %v4205
      %v4248 = vadd.f32 %v4050, %v4208
      %v4249 = vadd.f32 %v4052, %v4210
      %v4250 = vadd.f32 %v4055, %v4213
      %v4251 = vadd.f32 %v4057, %v4215
      %v4252 = vadd.f32 %v4060, %v4218
      %v4253 = vadd.f32 %v4062, %v4220
      %v4254 = vpack.c.bf16 %v3717, %v3716
      %v4255 = vpack.c.bf16 %v3719, %v3718
      %v4256 = vpack.c.bf16 %v3721, %v3720
      %v4257 = vpack.c.bf16 %v3723, %v3722
      %v4258 = vpack.c.bf16 %v3725, %v3724
      %v4259 = vpack.c.bf16 %v3727, %v3726
      %v4260 = vpack.c.bf16 %v3729, %v3728
      %v4261 = vpack.c.bf16 %v3731, %v3730
      %v4262 = vpack.c.bf16 %v3733, %v3732
      %v4263 = vpack.c.bf16 %v3735, %v3734
      %v4264 = vpack.c.bf16 %v3737, %v3736
      %v4265 = vpack.c.bf16 %v3739, %v3738
      %v4266 = vpack.c.bf16 %v3741, %v3740
      %v4267 = vpack.c.bf16 %v3743, %v3742
      %v4268 = vpack.c.bf16 %v3745, %v3744
      %v4269 = vpack.c.bf16 %v3747, %v3746
      %s4270 = scalar_lea.vmem %s4, 12
      %v4271 = vld [vmem:[%s4270] sm:$0xf]
      %v4273 = vsel %vm253, %v4254, 0
      %v4276 = vsel %vm253, %v4255, 0
      %v4279 = vsel %vm253, %v4256, 0
      %v4282 = vsel %vm253, %v4257, 0
      %v4285 = vsel %vm253, %v4258, 0
      %v4288 = vsel %vm253, %v4259, 0
      %v4291 = vsel %vm253, %v4260, 0
      %v4294 = vsel %vm253, %v4261, 0
      %v4297 = vsel %vm253, %v4262, 0
      %v4300 = vsel %vm253, %v4263, 0
      %v4303 = vsel %vm253, %v4264, 0
      %v4306 = vsel %vm253, %v4265, 0
      %v4309 = vsel %vm253, %v4266, 0
      %v4312 = vsel %vm253, %v4267, 0
      %v4315 = vsel %vm253, %v4268, 0
      %v4318 = vsel %vm253, %v4269, 0
      %v4321 = vsel %vm3831, %v4271, 0
      %4323 = vmatpush.bf16.msra.mxu0 0
      %4324 = vmatpush.bf16.msra.mxu0 0
      %4325 = vmatpush.bf16.msra.mxu0 0
      %4326 = vmatpush.bf16.msra.mxu0 0
      %4327 = vmatpush.bf16.msra.mxu0 0
      %4328 = vmatpush.bf16.msra.mxu0 0
      %4329 = vmatpush.bf16.msra.mxu0 0
      %4330 = vmatpush.bf16.msra.mxu0 %v4321
      %4331 = vmatmul.bf16.gmra.mxu0 %v4273
      %v4332 = vpop.f32.mrf.mxu0
      %v4333 = vadd.f32 0.0, %v4332
      %v4334 = vpop.f32.mrf.mxu0
      %v4335 = vadd.f32 0.0, %v4334
      %4336 = vmatmul.bf16.gmra.mxu0 %v4276
      %v4337 = vpop.f32.mrf.mxu0
      %v4338 = vadd.f32 0.0, %v4337
      %v4339 = vpop.f32.mrf.mxu0
      %v4340 = vadd.f32 0.0, %v4339
      %4341 = vmatmul.bf16.gmra.mxu0 %v4279
      %v4342 = vpop.f32.mrf.mxu0
      %v4343 = vadd.f32 0.0, %v4342
      %v4344 = vpop.f32.mrf.mxu0
      %v4345 = vadd.f32 0.0, %v4344
      %4346 = vmatmul.bf16.gmra.mxu0 %v4282
      %v4347 = vpop.f32.mrf.mxu0
      %v4348 = vadd.f32 0.0, %v4347
      %v4349 = vpop.f32.mrf.mxu0
      %v4350 = vadd.f32 0.0, %v4349
      %4351 = vmatmul.bf16.gmra.mxu0 %v4285
      %v4352 = vpop.f32.mrf.mxu0
      %v4353 = vadd.f32 0.0, %v4352
      %v4354 = vpop.f32.mrf.mxu0
      %v4355 = vadd.f32 0.0, %v4354
      %4356 = vmatmul.bf16.gmra.mxu0 %v4288
      %v4357 = vpop.f32.mrf.mxu0
      %v4358 = vadd.f32 0.0, %v4357
      %v4359 = vpop.f32.mrf.mxu0
      %v4360 = vadd.f32 0.0, %v4359
      %4361 = vmatmul.bf16.gmra.mxu0 %v4291
      %v4362 = vpop.f32.mrf.mxu0
      %v4363 = vadd.f32 0.0, %v4362
      %v4364 = vpop.f32.mrf.mxu0
      %v4365 = vadd.f32 0.0, %v4364
      %4366 = vmatmul.bf16.gmra.mxu0 %v4294
      %v4367 = vpop.f32.mrf.mxu0
      %v4368 = vadd.f32 0.0, %v4367
      %v4369 = vpop.f32.mrf.mxu0
      %v4370 = vadd.f32 0.0, %v4369
      %4371 = vmatmul.bf16.gmra.mxu0 %v4297
      %v4372 = vpop.f32.mrf.mxu0
      %v4373 = vadd.f32 0.0, %v4372
      %v4374 = vpop.f32.mrf.mxu0
      %v4375 = vadd.f32 0.0, %v4374
      %4376 = vmatmul.bf16.gmra.mxu0 %v4300
      %v4377 = vpop.f32.mrf.mxu0
      %v4378 = vadd.f32 0.0, %v4377
      %v4379 = vpop.f32.mrf.mxu0
      %v4380 = vadd.f32 0.0, %v4379
      %4381 = vmatmul.bf16.gmra.mxu0 %v4303
      %v4382 = vpop.f32.mrf.mxu0
      %v4383 = vadd.f32 0.0, %v4382
      %v4384 = vpop.f32.mrf.mxu0
      %v4385 = vadd.f32 0.0, %v4384
      %4386 = vmatmul.bf16.gmra.mxu0 %v4306
      %v4387 = vpop.f32.mrf.mxu0
      %v4388 = vadd.f32 0.0, %v4387
      %v4389 = vpop.f32.mrf.mxu0
      %v4390 = vadd.f32 0.0, %v4389
      %4391 = vmatmul.bf16.gmra.mxu0 %v4309
      %v4392 = vpop.f32.mrf.mxu0
      %v4393 = vadd.f32 0.0, %v4392
      %v4394 = vpop.f32.mrf.mxu0
      %v4395 = vadd.f32 0.0, %v4394
      %4396 = vmatmul.bf16.gmra.mxu0 %v4312
      %v4397 = vpop.f32.mrf.mxu0
      %v4398 = vadd.f32 0.0, %v4397
      %v4399 = vpop.f32.mrf.mxu0
      %v4400 = vadd.f32 0.0, %v4399
      %4401 = vmatmul.bf16.gmra.mxu0 %v4315
      %v4402 = vpop.f32.mrf.mxu0
      %v4403 = vadd.f32 0.0, %v4402
      %v4404 = vpop.f32.mrf.mxu0
      %v4405 = vadd.f32 0.0, %v4404
      %4406 = vmatmul.bf16.gmra.mxu0 %v4318
      %v4407 = vpop.f32.mrf.mxu0
      %v4408 = vadd.f32 0.0, %v4407
      %v4409 = vpop.f32.mrf.mxu0
      %v4410 = vadd.f32 0.0, %v4409
      %4411 = vdwg.mxu0
      %v4412 = vadd.f32 %v4222, %v4333
      %v4413 = vadd.f32 %v4223, %v4335
      %v4414 = vadd.f32 %v4224, %v4338
      %v4415 = vadd.f32 %v4225, %v4340
      %v4416 = vadd.f32 %v4226, %v4343
      %v4417 = vadd.f32 %v4227, %v4345
      %v4418 = vadd.f32 %v4228, %v4348
      %v4419 = vadd.f32 %v4229, %v4350
      %v4420 = vadd.f32 %v4230, %v4353
      %v4421 = vadd.f32 %v4231, %v4355
      %v4422 = vadd.f32 %v4232, %v4358
      %v4423 = vadd.f32 %v4233, %v4360
      %v4424 = vadd.f32 %v4234, %v4363
      %v4425 = vadd.f32 %v4235, %v4365
      %v4426 = vadd.f32 %v4236, %v4368
      %v4427 = vadd.f32 %v4237, %v4370
      %v4428 = vadd.f32 %v4238, %v4373
      %v4429 = vadd.f32 %v4239, %v4375
      %v4430 = vadd.f32 %v4240, %v4378
      %v4431 = vadd.f32 %v4241, %v4380
      %v4432 = vadd.f32 %v4242, %v4383
      %v4433 = vadd.f32 %v4243, %v4385
      %v4434 = vadd.f32 %v4244, %v4388
      %v4435 = vadd.f32 %v4245, %v4390
      %v4436 = vadd.f32 %v4246, %v4393
      %v4437 = vadd.f32 %v4247, %v4395
      %v4438 = vadd.f32 %v4248, %v4398
      %v4439 = vadd.f32 %v4249, %v4400
      %v4440 = vadd.f32 %v4250, %v4403
      %v4441 = vadd.f32 %v4251, %v4405
      %v4442 = vadd.f32 %v4252, %v4408
      %v4443 = vadd.f32 %v4253, %v4410
      %v4444 = vld [vmem:[%s5] sm:$0x1]
      %v4446 = vperm.slane %v4444, 0
      %v4448 = vadd.f32 %v4412, %v4446
      %v4449 = vadd.f32 %v4413, %v4446
      %v4450 = vadd.f32 %v4414, %v4446
      %v4451 = vadd.f32 %v4415, %v4446
      %v4452 = vadd.f32 %v4416, %v4446
      %v4453 = vadd.f32 %v4417, %v4446
      %v4454 = vadd.f32 %v4418, %v4446
      %v4455 = vadd.f32 %v4419, %v4446
      %v4456 = vadd.f32 %v4420, %v4446
      %v4457 = vadd.f32 %v4421, %v4446
      %v4458 = vadd.f32 %v4422, %v4446
      %v4459 = vadd.f32 %v4423, %v4446
      %v4460 = vadd.f32 %v4424, %v4446
      %v4461 = vadd.f32 %v4425, %v4446
      %v4462 = vadd.f32 %v4426, %v4446
      %v4463 = vadd.f32 %v4427, %v4446
      %v4464 = vadd.f32 %v4428, %v4446
      %v4465 = vadd.f32 %v4429, %v4446
      %v4466 = vadd.f32 %v4430, %v4446
      %v4467 = vadd.f32 %v4431, %v4446
      %v4468 = vadd.f32 %v4432, %v4446
      %v4469 = vadd.f32 %v4433, %v4446
      %v4470 = vadd.f32 %v4434, %v4446
      %v4471 = vadd.f32 %v4435, %v4446
      %v4472 = vadd.f32 %v4436, %v4446
      %v4473 = vadd.f32 %v4437, %v4446
      %v4474 = vadd.f32 %v4438, %v4446
      %v4475 = vadd.f32 %v4439, %v4446
      %v4476 = vadd.f32 %v4440, %v4446
      %v4477 = vadd.f32 %v4441, %v4446
      %v4478 = vadd.f32 %v4442, %v4446
      %v4479 = vadd.f32 %v4443, %v4446
      %v4480 = vxor.u32 %v4448, 2147483648
      %v4481 = vxor.u32 %v4449, 2147483648
      %v4482 = vxor.u32 %v4450, 2147483648
      %v4483 = vxor.u32 %v4451, 2147483648
      %v4484 = vxor.u32 %v4452, 2147483648
      %v4485 = vxor.u32 %v4453, 2147483648
      %v4486 = vxor.u32 %v4454, 2147483648
      %v4487 = vxor.u32 %v4455, 2147483648
      %v4488 = vxor.u32 %v4456, 2147483648
      %v4489 = vxor.u32 %v4457, 2147483648
      %v4490 = vxor.u32 %v4458, 2147483648
      %v4491 = vxor.u32 %v4459, 2147483648
      %v4492 = vxor.u32 %v4460, 2147483648
      %v4493 = vxor.u32 %v4461, 2147483648
      %v4494 = vxor.u32 %v4462, 2147483648
      %v4495 = vxor.u32 %v4463, 2147483648
      %v4496 = vxor.u32 %v4464, 2147483648
      %v4497 = vxor.u32 %v4465, 2147483648
      %v4498 = vxor.u32 %v4466, 2147483648
      %v4499 = vxor.u32 %v4467, 2147483648
      %v4500 = vxor.u32 %v4468, 2147483648
      %v4501 = vxor.u32 %v4469, 2147483648
      %v4502 = vxor.u32 %v4470, 2147483648
      %v4503 = vxor.u32 %v4471, 2147483648
      %v4504 = vxor.u32 %v4472, 2147483648
      %v4505 = vxor.u32 %v4473, 2147483648
      %v4506 = vxor.u32 %v4474, 2147483648
      %v4507 = vxor.u32 %v4475, 2147483648
      %v4508 = vxor.u32 %v4476, 2147483648
      %v4509 = vxor.u32 %v4477, 2147483648
      %v4510 = vxor.u32 %v4478, 2147483648
      %v4511 = vxor.u32 %v4479, 2147483648
      %v4512 = vmul.f32 %v4480, 1.442695
      %v4513 = vpow.pop %v4512
      %v4514 = vmul.f32 %v4481, 1.442695
      %v4515 = vpow.pop %v4514
      %v4516 = vmul.f32 %v4482, 1.442695
      %v4517 = vpow.pop %v4516
      %v4518 = vmul.f32 %v4483, 1.442695
      %v4519 = vpow.pop %v4518
      %v4520 = vmul.f32 %v4484, 1.442695
      %v4521 = vpow.pop %v4520
      %v4522 = vmul.f32 %v4485, 1.442695
      %v4523 = vpow.pop %v4522
      %v4524 = vmul.f32 %v4486, 1.442695
      %v4525 = vpow.pop %v4524
      %v4526 = vmul.f32 %v4487, 1.442695
      %v4527 = vpow.pop %v4526
      %v4528 = vmul.f32 %v4488, 1.442695
      %v4529 = vpow.pop %v4528
      %v4530 = vmul.f32 %v4489, 1.442695
      %v4531 = vpow.pop %v4530
      %v4532 = vmul.f32 %v4490, 1.442695
      %v4533 = vpow.pop %v4532
      %v4534 = vmul.f32 %v4491, 1.442695
      %v4535 = vpow.pop %v4534
      %v4536 = vmul.f32 %v4492, 1.442695
      %v4537 = vpow.pop %v4536
      %v4538 = vmul.f32 %v4493, 1.442695
      %v4539 = vpow.pop %v4538
      %v4540 = vmul.f32 %v4494, 1.442695
      %v4541 = vpow.pop %v4540
      %v4542 = vmul.f32 %v4495, 1.442695
      %v4543 = vpow.pop %v4542
      %v4544 = vmul.f32 %v4496, 1.442695
      %v4545 = vpow.pop %v4544
      %v4546 = vmul.f32 %v4497, 1.442695
      %v4547 = vpow.pop %v4546
      %v4548 = vmul.f32 %v4498, 1.442695
      %v4549 = vpow.pop %v4548
      %v4550 = vmul.f32 %v4499, 1.442695
      %v4551 = vpow.pop %v4550
      %v4552 = vmul.f32 %v4500, 1.442695
      %v4553 = vpow.pop %v4552
      %v4554 = vmul.f32 %v4501, 1.442695
      %v4555 = vpow.pop %v4554
      %v4556 = vmul.f32 %v4502, 1.442695
      %v4557 = vpow.pop %v4556
      %v4558 = vmul.f32 %v4503, 1.442695
      %v4559 = vpow.pop %v4558
      %v4560 = vmul.f32 %v4504, 1.442695
      %v4561 = vpow.pop %v4560
      %v4562 = vmul.f32 %v4505, 1.442695
      %v4563 = vpow.pop %v4562
      %v4564 = vmul.f32 %v4506, 1.442695
      %v4565 = vpow.pop %v4564
      %v4566 = vmul.f32 %v4507, 1.442695
      %v4567 = vpow.pop %v4566
      %v4568 = vmul.f32 %v4508, 1.442695
      %v4569 = vpow.pop %v4568
      %v4570 = vmul.f32 %v4509, 1.442695
      %v4571 = vpow.pop %v4570
      %v4572 = vmul.f32 %v4510, 1.442695
      %v4573 = vpow.pop %v4572
      %v4574 = vmul.f32 %v4511, 1.442695
      %v4575 = vpow.pop %v4574
      %v4576 = vadd.f32 %v4513, 1.0
      %v4577 = vadd.f32 %v4515, 1.0
      %v4578 = vadd.f32 %v4517, 1.0
      %v4579 = vadd.f32 %v4519, 1.0
      %v4580 = vadd.f32 %v4521, 1.0
      %v4581 = vadd.f32 %v4523, 1.0
      %v4582 = vadd.f32 %v4525, 1.0
      %v4583 = vadd.f32 %v4527, 1.0
      %v4584 = vadd.f32 %v4529, 1.0
      %v4585 = vadd.f32 %v4531, 1.0
      %v4586 = vadd.f32 %v4533, 1.0
      %v4587 = vadd.f32 %v4535, 1.0
      %v4588 = vadd.f32 %v4537, 1.0
      %v4589 = vadd.f32 %v4539, 1.0
      %v4590 = vadd.f32 %v4541, 1.0
      %v4591 = vadd.f32 %v4543, 1.0
      %v4592 = vadd.f32 %v4545, 1.0
      %v4593 = vadd.f32 %v4547, 1.0
      %v4594 = vadd.f32 %v4549, 1.0
      %v4595 = vadd.f32 %v4551, 1.0
      %v4596 = vadd.f32 %v4553, 1.0
      %v4597 = vadd.f32 %v4555, 1.0
      %v4598 = vadd.f32 %v4557, 1.0
      %v4599 = vadd.f32 %v4559, 1.0
      %v4600 = vadd.f32 %v4561, 1.0
      %v4601 = vadd.f32 %v4563, 1.0
      %v4602 = vadd.f32 %v4565, 1.0
      %v4603 = vadd.f32 %v4567, 1.0
      %v4604 = vadd.f32 %v4569, 1.0
      %v4605 = vadd.f32 %v4571, 1.0
      %v4606 = vadd.f32 %v4573, 1.0
      %v4607 = vadd.f32 %v4575, 1.0
      %v4608 = vrcp.pop %v4576
      %v4609 = vmul.f32 %v4576, %v4608
      %v4610 = vsub.f32 1.0, %v4609
      %v4611 = vmul.f32 %v4608, %v4610
      %v4612 = vadd.f32 %v4608, %v4611
      %vm4613 = vweird.f32 %v4576
      %vm4614 = vweird.f32 %v4608
      %vm4615 = vmor %vm4613, %vm4614
      %v4616 = vsel %vm4615, %v4608, %v4612
      %v4617 = vand.u32 2147483647, %v4576
      %vm4618 = vcmp.eq.f32.partialorder %v4617, 8.507059e+37
      %v4619 = vand.u32 %v4576, 2147483648
      %v4620 = vor.u32 1.1754944e-38, %v4619
      %v4621 = vsel %vm4618, %v4620, %v4616
      %v4622 = vmul.f32 1.0, %v4621
      %v4623 = vrcp.pop %v4577
      %v4624 = vmul.f32 %v4577, %v4623
      %v4625 = vsub.f32 1.0, %v4624
      %v4626 = vmul.f32 %v4623, %v4625
      %v4627 = vadd.f32 %v4623, %v4626
      %vm4628 = vweird.f32 %v4577
      %vm4629 = vweird.f32 %v4623
      %vm4630 = vmor %vm4628, %vm4629
      %v4631 = vsel %vm4630, %v4623, %v4627
      %v4632 = vand.u32 2147483647, %v4577
      %vm4633 = vcmp.eq.f32.partialorder %v4632, 8.507059e+37
      %v4634 = vand.u32 %v4577, 2147483648
      %v4635 = vor.u32 1.1754944e-38, %v4634
      %v4636 = vsel %vm4633, %v4635, %v4631
      %v4637 = vmul.f32 1.0, %v4636
      %v4638 = vrcp.pop %v4578
      %v4639 = vmul.f32 %v4578, %v4638
      %v4640 = vsub.f32 1.0, %v4639
      %v4641 = vmul.f32 %v4638, %v4640
      %v4642 = vadd.f32 %v4638, %v4641
      %vm4643 = vweird.f32 %v4578
      %vm4644 = vweird.f32 %v4638
      %vm4645 = vmor %vm4643, %vm4644
      %v4646 = vsel %vm4645, %v4638, %v4642
      %v4647 = vand.u32 2147483647, %v4578
      %vm4648 = vcmp.eq.f32.partialorder %v4647, 8.507059e+37
      %v4649 = vand.u32 %v4578, 2147483648
      %v4650 = vor.u32 1.1754944e-38, %v4649
      %v4651 = vsel %vm4648, %v4650, %v4646
      %v4652 = vmul.f32 1.0, %v4651
      %v4653 = vrcp.pop %v4579
      %v4654 = vmul.f32 %v4579, %v4653
      %v4655 = vsub.f32 1.0, %v4654
      %v4656 = vmul.f32 %v4653, %v4655
      %v4657 = vadd.f32 %v4653, %v4656
      %vm4658 = vweird.f32 %v4579
      %vm4659 = vweird.f32 %v4653
      %vm4660 = vmor %vm4658, %vm4659
      %v4661 = vsel %vm4660, %v4653, %v4657
      %v4662 = vand.u32 2147483647, %v4579
      %vm4663 = vcmp.eq.f32.partialorder %v4662, 8.507059e+37
      %v4664 = vand.u32 %v4579, 2147483648
      %v4665 = vor.u32 1.1754944e-38, %v4664
      %v4666 = vsel %vm4663, %v4665, %v4661
      %v4667 = vmul.f32 1.0, %v4666
      %v4668 = vrcp.pop %v4580
      %v4669 = vmul.f32 %v4580, %v4668
      %v4670 = vsub.f32 1.0, %v4669
      %v4671 = vmul.f32 %v4668, %v4670
      %v4672 = vadd.f32 %v4668, %v4671
      %vm4673 = vweird.f32 %v4580
      %vm4674 = vweird.f32 %v4668
      %vm4675 = vmor %vm4673, %vm4674
      %v4676 = vsel %vm4675, %v4668, %v4672
      %v4677 = vand.u32 2147483647, %v4580
      %vm4678 = vcmp.eq.f32.partialorder %v4677, 8.507059e+37
      %v4679 = vand.u32 %v4580, 2147483648
      %v4680 = vor.u32 1.1754944e-38, %v4679
      %v4681 = vsel %vm4678, %v4680, %v4676
      %v4682 = vmul.f32 1.0, %v4681
      %v4683 = vrcp.pop %v4581
      %v4684 = vmul.f32 %v4581, %v4683
      %v4685 = vsub.f32 1.0, %v4684
      %v4686 = vmul.f32 %v4683, %v4685
      %v4687 = vadd.f32 %v4683, %v4686
      %vm4688 = vweird.f32 %v4581
      %vm4689 = vweird.f32 %v4683
      %vm4690 = vmor %vm4688, %vm4689
      %v4691 = vsel %vm4690, %v4683, %v4687
      %v4692 = vand.u32 2147483647, %v4581
      %vm4693 = vcmp.eq.f32.partialorder %v4692, 8.507059e+37
      %v4694 = vand.u32 %v4581, 2147483648
      %v4695 = vor.u32 1.1754944e-38, %v4694
      %v4696 = vsel %vm4693, %v4695, %v4691
      %v4697 = vmul.f32 1.0, %v4696
      %v4698 = vrcp.pop %v4582
      %v4699 = vmul.f32 %v4582, %v4698
      %v4700 = vsub.f32 1.0, %v4699
      %v4701 = vmul.f32 %v4698, %v4700
      %v4702 = vadd.f32 %v4698, %v4701
      %vm4703 = vweird.f32 %v4582
      %vm4704 = vweird.f32 %v4698
      %vm4705 = vmor %vm4703, %vm4704
      %v4706 = vsel %vm4705, %v4698, %v4702
      %v4707 = vand.u32 2147483647, %v4582
      %vm4708 = vcmp.eq.f32.partialorder %v4707, 8.507059e+37
      %v4709 = vand.u32 %v4582, 2147483648
      %v4710 = vor.u32 1.1754944e-38, %v4709
      %v4711 = vsel %vm4708, %v4710, %v4706
      %v4712 = vmul.f32 1.0, %v4711
      %v4713 = vrcp.pop %v4583
      %v4714 = vmul.f32 %v4583, %v4713
      %v4715 = vsub.f32 1.0, %v4714
      %v4716 = vmul.f32 %v4713, %v4715
      %v4717 = vadd.f32 %v4713, %v4716
      %vm4718 = vweird.f32 %v4583
      %vm4719 = vweird.f32 %v4713
      %vm4720 = vmor %vm4718, %vm4719
      %v4721 = vsel %vm4720, %v4713, %v4717
      %v4722 = vand.u32 2147483647, %v4583
      %vm4723 = vcmp.eq.f32.partialorder %v4722, 8.507059e+37
      %v4724 = vand.u32 %v4583, 2147483648
      %v4725 = vor.u32 1.1754944e-38, %v4724
      %v4726 = vsel %vm4723, %v4725, %v4721
      %v4727 = vmul.f32 1.0, %v4726
      %v4728 = vrcp.pop %v4584
      %v4729 = vmul.f32 %v4584, %v4728
      %v4730 = vsub.f32 1.0, %v4729
      %v4731 = vmul.f32 %v4728, %v4730
      %v4732 = vadd.f32 %v4728, %v4731
      %vm4733 = vweird.f32 %v4584
      %vm4734 = vweird.f32 %v4728
      %vm4735 = vmor %vm4733, %vm4734
      %v4736 = vsel %vm4735, %v4728, %v4732
      %v4737 = vand.u32 2147483647, %v4584
      %vm4738 = vcmp.eq.f32.partialorder %v4737, 8.507059e+37
      %v4739 = vand.u32 %v4584, 2147483648
      %v4740 = vor.u32 1.1754944e-38, %v4739
      %v4741 = vsel %vm4738, %v4740, %v4736
      %v4742 = vmul.f32 1.0, %v4741
      %v4743 = vrcp.pop %v4585
      %v4744 = vmul.f32 %v4585, %v4743
      %v4745 = vsub.f32 1.0, %v4744
      %v4746 = vmul.f32 %v4743, %v4745
      %v4747 = vadd.f32 %v4743, %v4746
      %vm4748 = vweird.f32 %v4585
      %vm4749 = vweird.f32 %v4743
      %vm4750 = vmor %vm4748, %vm4749
      %v4751 = vsel %vm4750, %v4743, %v4747
      %v4752 = vand.u32 2147483647, %v4585
      %vm4753 = vcmp.eq.f32.partialorder %v4752, 8.507059e+37
      %v4754 = vand.u32 %v4585, 2147483648
      %v4755 = vor.u32 1.1754944e-38, %v4754
      %v4756 = vsel %vm4753, %v4755, %v4751
      %v4757 = vmul.f32 1.0, %v4756
      %v4758 = vrcp.pop %v4586
      %v4759 = vmul.f32 %v4586, %v4758
      %v4760 = vsub.f32 1.0, %v4759
      %v4761 = vmul.f32 %v4758, %v4760
      %v4762 = vadd.f32 %v4758, %v4761
      %vm4763 = vweird.f32 %v4586
      %vm4764 = vweird.f32 %v4758
      %vm4765 = vmor %vm4763, %vm4764
      %v4766 = vsel %vm4765, %v4758, %v4762
      %v4767 = vand.u32 2147483647, %v4586
      %vm4768 = vcmp.eq.f32.partialorder %v4767, 8.507059e+37
      %v4769 = vand.u32 %v4586, 2147483648
      %v4770 = vor.u32 1.1754944e-38, %v4769
      %v4771 = vsel %vm4768, %v4770, %v4766
      %v4772 = vmul.f32 1.0, %v4771
      %v4773 = vrcp.pop %v4587
      %v4774 = vmul.f32 %v4587, %v4773
      %v4775 = vsub.f32 1.0, %v4774
      %v4776 = vmul.f32 %v4773, %v4775
      %v4777 = vadd.f32 %v4773, %v4776
      %vm4778 = vweird.f32 %v4587
      %vm4779 = vweird.f32 %v4773
      %vm4780 = vmor %vm4778, %vm4779
      %v4781 = vsel %vm4780, %v4773, %v4777
      %v4782 = vand.u32 2147483647, %v4587
      %vm4783 = vcmp.eq.f32.partialorder %v4782, 8.507059e+37
      %v4784 = vand.u32 %v4587, 2147483648
      %v4785 = vor.u32 1.1754944e-38, %v4784
      %v4786 = vsel %vm4783, %v4785, %v4781
      %v4787 = vmul.f32 1.0, %v4786
      %v4788 = vrcp.pop %v4588
      %v4789 = vmul.f32 %v4588, %v4788
      %v4790 = vsub.f32 1.0, %v4789
      %v4791 = vmul.f32 %v4788, %v4790
      %v4792 = vadd.f32 %v4788, %v4791
      %vm4793 = vweird.f32 %v4588
      %vm4794 = vweird.f32 %v4788
      %vm4795 = vmor %vm4793, %vm4794
      %v4796 = vsel %vm4795, %v4788, %v4792
      %v4797 = vand.u32 2147483647, %v4588
      %vm4798 = vcmp.eq.f32.partialorder %v4797, 8.507059e+37
      %v4799 = vand.u32 %v4588, 2147483648
      %v4800 = vor.u32 1.1754944e-38, %v4799
      %v4801 = vsel %vm4798, %v4800, %v4796
      %v4802 = vmul.f32 1.0, %v4801
      %v4803 = vrcp.pop %v4589
      %v4804 = vmul.f32 %v4589, %v4803
      %v4805 = vsub.f32 1.0, %v4804
      %v4806 = vmul.f32 %v4803, %v4805
      %v4807 = vadd.f32 %v4803, %v4806
      %vm4808 = vweird.f32 %v4589
      %vm4809 = vweird.f32 %v4803
      %vm4810 = vmor %vm4808, %vm4809
      %v4811 = vsel %vm4810, %v4803, %v4807
      %v4812 = vand.u32 2147483647, %v4589
      %vm4813 = vcmp.eq.f32.partialorder %v4812, 8.507059e+37
      %v4814 = vand.u32 %v4589, 2147483648
      %v4815 = vor.u32 1.1754944e-38, %v4814
      %v4816 = vsel %vm4813, %v4815, %v4811
      %v4817 = vmul.f32 1.0, %v4816
      %v4818 = vrcp.pop %v4590
      %v4819 = vmul.f32 %v4590, %v4818
      %v4820 = vsub.f32 1.0, %v4819
      %v4821 = vmul.f32 %v4818, %v4820
      %v4822 = vadd.f32 %v4818, %v4821
      %vm4823 = vweird.f32 %v4590
      %vm4824 = vweird.f32 %v4818
      %vm4825 = vmor %vm4823, %vm4824
      %v4826 = vsel %vm4825, %v4818, %v4822
      %v4827 = vand.u32 2147483647, %v4590
      %vm4828 = vcmp.eq.f32.partialorder %v4827, 8.507059e+37
      %v4829 = vand.u32 %v4590, 2147483648
      %v4830 = vor.u32 1.1754944e-38, %v4829
      %v4831 = vsel %vm4828, %v4830, %v4826
      %v4832 = vmul.f32 1.0, %v4831
      %v4833 = vrcp.pop %v4591
      %v4834 = vmul.f32 %v4591, %v4833
      %v4835 = vsub.f32 1.0, %v4834
      %v4836 = vmul.f32 %v4833, %v4835
      %v4837 = vadd.f32 %v4833, %v4836
      %vm4838 = vweird.f32 %v4591
      %vm4839 = vweird.f32 %v4833
      %vm4840 = vmor %vm4838, %vm4839
      %v4841 = vsel %vm4840, %v4833, %v4837
      %v4842 = vand.u32 2147483647, %v4591
      %vm4843 = vcmp.eq.f32.partialorder %v4842, 8.507059e+37
      %v4844 = vand.u32 %v4591, 2147483648
      %v4845 = vor.u32 1.1754944e-38, %v4844
      %v4846 = vsel %vm4843, %v4845, %v4841
      %v4847 = vmul.f32 1.0, %v4846
      %v4848 = vrcp.pop %v4592
      %v4849 = vmul.f32 %v4592, %v4848
      %v4850 = vsub.f32 1.0, %v4849
      %v4851 = vmul.f32 %v4848, %v4850
      %v4852 = vadd.f32 %v4848, %v4851
      %vm4853 = vweird.f32 %v4592
      %vm4854 = vweird.f32 %v4848
      %vm4855 = vmor %vm4853, %vm4854
      %v4856 = vsel %vm4855, %v4848, %v4852
      %v4857 = vand.u32 2147483647, %v4592
      %vm4858 = vcmp.eq.f32.partialorder %v4857, 8.507059e+37
      %v4859 = vand.u32 %v4592, 2147483648
      %v4860 = vor.u32 1.1754944e-38, %v4859
      %v4861 = vsel %vm4858, %v4860, %v4856
      %v4862 = vmul.f32 1.0, %v4861
      %v4863 = vrcp.pop %v4593
      %v4864 = vmul.f32 %v4593, %v4863
      %v4865 = vsub.f32 1.0, %v4864
      %v4866 = vmul.f32 %v4863, %v4865
      %v4867 = vadd.f32 %v4863, %v4866
      %vm4868 = vweird.f32 %v4593
      %vm4869 = vweird.f32 %v4863
      %vm4870 = vmor %vm4868, %vm4869
      %v4871 = vsel %vm4870, %v4863, %v4867
      %v4872 = vand.u32 2147483647, %v4593
      %vm4873 = vcmp.eq.f32.partialorder %v4872, 8.507059e+37
      %v4874 = vand.u32 %v4593, 2147483648
      %v4875 = vor.u32 1.1754944e-38, %v4874
      %v4876 = vsel %vm4873, %v4875, %v4871
      %v4877 = vmul.f32 1.0, %v4876
      %v4878 = vrcp.pop %v4594
      %v4879 = vmul.f32 %v4594, %v4878
      %v4880 = vsub.f32 1.0, %v4879
      %v4881 = vmul.f32 %v4878, %v4880
      %v4882 = vadd.f32 %v4878, %v4881
      %vm4883 = vweird.f32 %v4594
      %vm4884 = vweird.f32 %v4878
      %vm4885 = vmor %vm4883, %vm4884
      %v4886 = vsel %vm4885, %v4878, %v4882
      %v4887 = vand.u32 2147483647, %v4594
      %vm4888 = vcmp.eq.f32.partialorder %v4887, 8.507059e+37
      %v4889 = vand.u32 %v4594, 2147483648
      %v4890 = vor.u32 1.1754944e-38, %v4889
      %v4891 = vsel %vm4888, %v4890, %v4886
      %v4892 = vmul.f32 1.0, %v4891
      %v4893 = vrcp.pop %v4595
      %v4894 = vmul.f32 %v4595, %v4893
      %v4895 = vsub.f32 1.0, %v4894
      %v4896 = vmul.f32 %v4893, %v4895
      %v4897 = vadd.f32 %v4893, %v4896
      %vm4898 = vweird.f32 %v4595
      %vm4899 = vweird.f32 %v4893
      %vm4900 = vmor %vm4898, %vm4899
      %v4901 = vsel %vm4900, %v4893, %v4897
      %v4902 = vand.u32 2147483647, %v4595
      %vm4903 = vcmp.eq.f32.partialorder %v4902, 8.507059e+37
      %v4904 = vand.u32 %v4595, 2147483648
      %v4905 = vor.u32 1.1754944e-38, %v4904
      %v4906 = vsel %vm4903, %v4905, %v4901
      %v4907 = vmul.f32 1.0, %v4906
      %v4908 = vrcp.pop %v4596
      %v4909 = vmul.f32 %v4596, %v4908
      %v4910 = vsub.f32 1.0, %v4909
      %v4911 = vmul.f32 %v4908, %v4910
      %v4912 = vadd.f32 %v4908, %v4911
      %vm4913 = vweird.f32 %v4596
      %vm4914 = vweird.f32 %v4908
      %vm4915 = vmor %vm4913, %vm4914
      %v4916 = vsel %vm4915, %v4908, %v4912
      %v4917 = vand.u32 2147483647, %v4596
      %vm4918 = vcmp.eq.f32.partialorder %v4917, 8.507059e+37
      %v4919 = vand.u32 %v4596, 2147483648
      %v4920 = vor.u32 1.1754944e-38, %v4919
      %v4921 = vsel %vm4918, %v4920, %v4916
      %v4922 = vmul.f32 1.0, %v4921
      %v4923 = vrcp.pop %v4597
      %v4924 = vmul.f32 %v4597, %v4923
      %v4925 = vsub.f32 1.0, %v4924
      %v4926 = vmul.f32 %v4923, %v4925
      %v4927 = vadd.f32 %v4923, %v4926
      %vm4928 = vweird.f32 %v4597
      %vm4929 = vweird.f32 %v4923
      %vm4930 = vmor %vm4928, %vm4929
      %v4931 = vsel %vm4930, %v4923, %v4927
      %v4932 = vand.u32 2147483647, %v4597
      %vm4933 = vcmp.eq.f32.partialorder %v4932, 8.507059e+37
      %v4934 = vand.u32 %v4597, 2147483648
      %v4935 = vor.u32 1.1754944e-38, %v4934
      %v4936 = vsel %vm4933, %v4935, %v4931
      %v4937 = vmul.f32 1.0, %v4936
      %v4938 = vrcp.pop %v4598
      %v4939 = vmul.f32 %v4598, %v4938
      %v4940 = vsub.f32 1.0, %v4939
      %v4941 = vmul.f32 %v4938, %v4940
      %v4942 = vadd.f32 %v4938, %v4941
      %vm4943 = vweird.f32 %v4598
      %vm4944 = vweird.f32 %v4938
      %vm4945 = vmor %vm4943, %vm4944
      %v4946 = vsel %vm4945, %v4938, %v4942
      %v4947 = vand.u32 2147483647, %v4598
      %vm4948 = vcmp.eq.f32.partialorder %v4947, 8.507059e+37
      %v4949 = vand.u32 %v4598, 2147483648
      %v4950 = vor.u32 1.1754944e-38, %v4949
      %v4951 = vsel %vm4948, %v4950, %v4946
      %v4952 = vmul.f32 1.0, %v4951
      %v4953 = vrcp.pop %v4599
      %v4954 = vmul.f32 %v4599, %v4953
      %v4955 = vsub.f32 1.0, %v4954
      %v4956 = vmul.f32 %v4953, %v4955
      %v4957 = vadd.f32 %v4953, %v4956
      %vm4958 = vweird.f32 %v4599
      %vm4959 = vweird.f32 %v4953
      %vm4960 = vmor %vm4958, %vm4959
      %v4961 = vsel %vm4960, %v4953, %v4957
      %v4962 = vand.u32 2147483647, %v4599
      %vm4963 = vcmp.eq.f32.partialorder %v4962, 8.507059e+37
      %v4964 = vand.u32 %v4599, 2147483648
      %v4965 = vor.u32 1.1754944e-38, %v4964
      %v4966 = vsel %vm4963, %v4965, %v4961
      %v4967 = vmul.f32 1.0, %v4966
      %v4968 = vrcp.pop %v4600
      %v4969 = vmul.f32 %v4600, %v4968
      %v4970 = vsub.f32 1.0, %v4969
      %v4971 = vmul.f32 %v4968, %v4970
      %v4972 = vadd.f32 %v4968, %v4971
      %vm4973 = vweird.f32 %v4600
      %vm4974 = vweird.f32 %v4968
      %vm4975 = vmor %vm4973, %vm4974
      %v4976 = vsel %vm4975, %v4968, %v4972
      %v4977 = vand.u32 2147483647, %v4600
      %vm4978 = vcmp.eq.f32.partialorder %v4977, 8.507059e+37
      %v4979 = vand.u32 %v4600, 2147483648
      %v4980 = vor.u32 1.1754944e-38, %v4979
      %v4981 = vsel %vm4978, %v4980, %v4976
      %v4982 = vmul.f32 1.0, %v4981
      %v4983 = vrcp.pop %v4601
      %v4984 = vmul.f32 %v4601, %v4983
      %v4985 = vsub.f32 1.0, %v4984
      %v4986 = vmul.f32 %v4983, %v4985
      %v4987 = vadd.f32 %v4983, %v4986
      %vm4988 = vweird.f32 %v4601
      %vm4989 = vweird.f32 %v4983
      %vm4990 = vmor %vm4988, %vm4989
      %v4991 = vsel %vm4990, %v4983, %v4987
      %v4992 = vand.u32 2147483647, %v4601
      %vm4993 = vcmp.eq.f32.partialorder %v4992, 8.507059e+37
      %v4994 = vand.u32 %v4601, 2147483648
      %v4995 = vor.u32 1.1754944e-38, %v4994
      %v4996 = vsel %vm4993, %v4995, %v4991
      %v4997 = vmul.f32 1.0, %v4996
      %v4998 = vrcp.pop %v4602
      %v4999 = vmul.f32 %v4602, %v4998
      %v5000 = vsub.f32 1.0, %v4999
      %v5001 = vmul.f32 %v4998, %v5000
      %v5002 = vadd.f32 %v4998, %v5001
      %vm5003 = vweird.f32 %v4602
      %vm5004 = vweird.f32 %v4998
      %vm5005 = vmor %vm5003, %vm5004
      %v5006 = vsel %vm5005, %v4998, %v5002
      %v5007 = vand.u32 2147483647, %v4602
      %vm5008 = vcmp.eq.f32.partialorder %v5007, 8.507059e+37
      %v5009 = vand.u32 %v4602, 2147483648
      %v5010 = vor.u32 1.1754944e-38, %v5009
      %v5011 = vsel %vm5008, %v5010, %v5006
      %v5012 = vmul.f32 1.0, %v5011
      %v5013 = vrcp.pop %v4603
      %v5014 = vmul.f32 %v4603, %v5013
      %v5015 = vsub.f32 1.0, %v5014
      %v5016 = vmul.f32 %v5013, %v5015
      %v5017 = vadd.f32 %v5013, %v5016
      %vm5018 = vweird.f32 %v4603
      %vm5019 = vweird.f32 %v5013
      %vm5020 = vmor %vm5018, %vm5019
      %v5021 = vsel %vm5020, %v5013, %v5017
      %v5022 = vand.u32 2147483647, %v4603
      %vm5023 = vcmp.eq.f32.partialorder %v5022, 8.507059e+37
      %v5024 = vand.u32 %v4603, 2147483648
      %v5025 = vor.u32 1.1754944e-38, %v5024
      %v5026 = vsel %vm5023, %v5025, %v5021
      %v5027 = vmul.f32 1.0, %v5026
      %v5028 = vrcp.pop %v4604
      %v5029 = vmul.f32 %v4604, %v5028
      %v5030 = vsub.f32 1.0, %v5029
      %v5031 = vmul.f32 %v5028, %v5030
      %v5032 = vadd.f32 %v5028, %v5031
      %vm5033 = vweird.f32 %v4604
      %vm5034 = vweird.f32 %v5028
      %vm5035 = vmor %vm5033, %vm5034
      %v5036 = vsel %vm5035, %v5028, %v5032
      %v5037 = vand.u32 2147483647, %v4604
      %vm5038 = vcmp.eq.f32.partialorder %v5037, 8.507059e+37
      %v5039 = vand.u32 %v4604, 2147483648
      %v5040 = vor.u32 1.1754944e-38, %v5039
      %v5041 = vsel %vm5038, %v5040, %v5036
      %v5042 = vmul.f32 1.0, %v5041
      %v5043 = vrcp.pop %v4605
      %v5044 = vmul.f32 %v4605, %v5043
      %v5045 = vsub.f32 1.0, %v5044
      %v5046 = vmul.f32 %v5043, %v5045
      %v5047 = vadd.f32 %v5043, %v5046
      %vm5048 = vweird.f32 %v4605
      %vm5049 = vweird.f32 %v5043
      %vm5050 = vmor %vm5048, %vm5049
      %v5051 = vsel %vm5050, %v5043, %v5047
      %v5052 = vand.u32 2147483647, %v4605
      %vm5053 = vcmp.eq.f32.partialorder %v5052, 8.507059e+37
      %v5054 = vand.u32 %v4605, 2147483648
      %v5055 = vor.u32 1.1754944e-38, %v5054
      %v5056 = vsel %vm5053, %v5055, %v5051
      %v5057 = vmul.f32 1.0, %v5056
      %v5058 = vrcp.pop %v4606
      %v5059 = vmul.f32 %v4606, %v5058
      %v5060 = vsub.f32 1.0, %v5059
      %v5061 = vmul.f32 %v5058, %v5060
      %v5062 = vadd.f32 %v5058, %v5061
      %vm5063 = vweird.f32 %v4606
      %vm5064 = vweird.f32 %v5058
      %vm5065 = vmor %vm5063, %vm5064
      %v5066 = vsel %vm5065, %v5058, %v5062
      %v5067 = vand.u32 2147483647, %v4606
      %vm5068 = vcmp.eq.f32.partialorder %v5067, 8.507059e+37
      %v5069 = vand.u32 %v4606, 2147483648
      %v5070 = vor.u32 1.1754944e-38, %v5069
      %v5071 = vsel %vm5068, %v5070, %v5066
      %v5072 = vmul.f32 1.0, %v5071
      %v5073 = vrcp.pop %v4607
      %v5074 = vmul.f32 %v4607, %v5073
      %v5075 = vsub.f32 1.0, %v5074
      %v5076 = vmul.f32 %v5073, %v5075
      %v5077 = vadd.f32 %v5073, %v5076
      %vm5078 = vweird.f32 %v4607
      %vm5079 = vweird.f32 %v5073
      %vm5080 = vmor %vm5078, %vm5079
      %v5081 = vsel %vm5080, %v5073, %v5077
      %v5082 = vand.u32 2147483647, %v4607
      %vm5083 = vcmp.eq.f32.partialorder %v5082, 8.507059e+37
      %v5084 = vand.u32 %v4607, 2147483648
      %v5085 = vor.u32 1.1754944e-38, %v5084
      %v5086 = vsel %vm5083, %v5085, %v5081
      %v5087 = vmul.f32 1.0, %v5086
      %v5088 = vmul.f32 %v4448, %v4622
      %v5089 = vmul.f32 %v4449, %v4637
      %v5090 = vmul.f32 %v4450, %v4652
      %v5091 = vmul.f32 %v4451, %v4667
      %v5092 = vmul.f32 %v4452, %v4682
      %v5093 = vmul.f32 %v4453, %v4697
      %v5094 = vmul.f32 %v4454, %v4712
      %v5095 = vmul.f32 %v4455, %v4727
      %v5096 = vmul.f32 %v4456, %v4742
      %v5097 = vmul.f32 %v4457, %v4757
      %v5098 = vmul.f32 %v4458, %v4772
      %v5099 = vmul.f32 %v4459, %v4787
      %v5100 = vmul.f32 %v4460, %v4802
      %v5101 = vmul.f32 %v4461, %v4817
      %v5102 = vmul.f32 %v4462, %v4832
      %v5103 = vmul.f32 %v4463, %v4847
      %v5104 = vmul.f32 %v4464, %v4862
      %v5105 = vmul.f32 %v4465, %v4877
      %v5106 = vmul.f32 %v4466, %v4892
      %v5107 = vmul.f32 %v4467, %v4907
      %v5108 = vmul.f32 %v4468, %v4922
      %v5109 = vmul.f32 %v4469, %v4937
      %v5110 = vmul.f32 %v4470, %v4952
      %v5111 = vmul.f32 %v4471, %v4967
      %v5112 = vmul.f32 %v4472, %v4982
      %v5113 = vmul.f32 %v4473, %v4997
      %v5114 = vmul.f32 %v4474, %v5012
      %v5115 = vmul.f32 %v4475, %v5027
      %v5116 = vmul.f32 %v4476, %v5042
      %v5117 = vmul.f32 %v4477, %v5057
      %v5118 = vmul.f32 %v4478, %v5072
      %v5119 = vmul.f32 %v4479, %v5087
      %5120 = vst.msk [vmem:[%s251] sm:$0xff] %vm482, %v5088
      %5121 = vst.msk [vmem:[%s251 + $0x8] sm:$0xff] %vm482, %v5089
      %5122 = vst.msk [vmem:[%s251 + $0x10] sm:$0xff] %vm482, %v5090
      %5123 = vst.msk [vmem:[%s251 + $0x18] sm:$0xff] %vm482, %v5091
      %5124 = vst.msk [vmem:[%s251 + $0x20] sm:$0xff] %vm482, %v5092
      %5125 = vst.msk [vmem:[%s251 + $0x28] sm:$0xff] %vm482, %v5093
      %5126 = vst.msk [vmem:[%s251 + $0x30] sm:$0xff] %vm482, %v5094
      %5127 = vst.msk [vmem:[%s251 + $0x38] sm:$0xff] %vm482, %v5095
      %5128 = vst.msk [vmem:[%s251 + $0x40] sm:$0xff] %vm482, %v5096
      %5129 = vst.msk [vmem:[%s251 + $0x48] sm:$0xff] %vm482, %v5097
      %5130 = vst.msk [vmem:[%s251 + $0x50] sm:$0xff] %vm482, %v5098
      %5131 = vst.msk [vmem:[%s251 + $0x58] sm:$0xff] %vm482, %v5099
      %5132 = vst.msk [vmem:[%s251 + $0x60] sm:$0xff] %vm482, %v5100
      %5133 = vst.msk [vmem:[%s251 + $0x68] sm:$0xff] %vm482, %v5101
      %5134 = vst.msk [vmem:[%s251 + $0x70] sm:$0xff] %vm482, %v5102
      %5135 = vst.msk [vmem:[%s251 + $0x78] sm:$0xff] %vm482, %v5103
      %5136 = vst.msk [vmem:[%s251 + $0x80] sm:$0xff] %vm482, %v5104
      %5137 = vst.msk [vmem:[%s251 + $0x88] sm:$0xff] %vm482, %v5105
      %5138 = vst.msk [vmem:[%s251 + $0x90] sm:$0xff] %vm482, %v5106
      %5139 = vst.msk [vmem:[%s251 + $0x98] sm:$0xff] %vm482, %v5107
      %5140 = vst.msk [vmem:[%s251 + $0xa0] sm:$0xff] %vm482, %v5108
      %5141 = vst.msk [vmem:[%s251 + $0xa8] sm:$0xff] %vm482, %v5109
      %5142 = vst.msk [vmem:[%s251 + $0xb0] sm:$0xff] %vm482, %v5110
      %5143 = vst.msk [vmem:[%s251 + $0xb8] sm:$0xff] %vm482, %v5111
      %5144 = vst.msk [vmem:[%s251 + $0xc0] sm:$0xff] %vm482, %v5112
      %5145 = vst.msk [vmem:[%s251 + $0xc8] sm:$0xff] %vm482, %v5113
      %5146 = vst.msk [vmem:[%s251 + $0xd0] sm:$0xff] %vm482, %v5114
      %5147 = vst.msk [vmem:[%s251 + $0xd8] sm:$0xff] %vm482, %v5115
      %5148 = vst.msk [vmem:[%s251 + $0xe0] sm:$0xff] %vm482, %v5116
      %5149 = vst.msk [vmem:[%s251 + $0xe8] sm:$0xff] %vm482, %v5117
      %5150 = vst.msk [vmem:[%s251 + $0xf0] sm:$0xff] %vm482, %v5118
      %5151 = vst.msk [vmem:[%s251 + $0xf8] sm:$0xff] %vm482, %v5119
      %p5152 = scmp.lt.s32.totalorder %s17, 1
      %s5153 = scalar_select %p5152, %s17, 1
      %s5154 = smul.addr %s5153, 32
      %s5155 = smul.addr %s5154, 8
      %s5156 = scalar_lea.vmem %s6, %s5155
      // Predicated region
      $region45: #{tpu_custom_call.1} parent=43 // pred_check
        %p5157 = pneg %p166
      $region46: #{tpu_custom_call.1} parent=43 // pred_check_branch
        %5159 = sbr.rel (%p5157) target = $region48
      $region47: #{tpu_custom_call.1} parent=43 // pred_region
        _
      $region48: #{tpu_custom_call.1} parent=43 // pred_fallthru
        _
    $region44: #{tpu_custom_call.1} parent=5 // pred_fallthru
      _
    %p5160 = scmp.le.s32.totalorder 2, %s12
    // Predicated region
    $region49: #{tpu_custom_call.1} parent=5 // pred_check
      %p5161 = pneg %p5160
    $region50: #{tpu_custom_call.1} parent=5 // pred_check_branch
      %5163 = sbr.rel (%p5161) target = $region52
    $region51: #{tpu_custom_call.1} parent=5 // pred_region
      %s5164 = ssub.s32 %s12, 2
      // Predicated region
      $region53: #{tpu_custom_call.1} parent=51 // pred_check
        %p5165 = pneg %p172
      $region54: #{tpu_custom_call.1} parent=51 // pred_check_branch
        %5167 = sbr.rel (%p5165) target = $region56
      $region55: #{tpu_custom_call.1} parent=51 // pred_region
        %p5168 = scmp.lt.s32.totalorder %s18, 1
        %s5169 = scalar_select %p5168, %s18, 1
        %s5170 = smul.addr %s5169, 32
        %s5171 = smul.addr %s5170, 8
        %s5172 = scalar_lea.vmem %s6, %s5171
      $region56: #{tpu_custom_call.1} parent=51 // pred_fallthru
        _
    $region52: #{tpu_custom_call.1} parent=5 // pred_fallthru
      _
  $region6: #{tpu_custom_call.1} parent=0 // loop_footer
    %s16 = sadd.s32 1, %s12
  $region7: #{tpu_custom_call.1} parent=0 // loop_footer_branch
    %11 = sbr.rel target = $region3
  $region8: #{tpu_custom_call.1} parent=0 // loop_exit
    _

</llo_original>
